<compile_context>
chip_gen: v6e
topology: v6e:2x2x1
jax: 0.10.0
libtpu: 0.0.40
codegen_flags: <defaults>
</compile_context>

<pallas_src>
import functools
import math

import jax
import jax.numpy as jnp
from jax import lax
from jax.experimental import pallas as pl
from jax.experimental.pallas import tpu as pltpu

# ----- synthetic config (small shapes) -----
VOCAB = 64
MAX_POS = 64
D = 32           # model_dim
H = 4            # num heads
DH = D // H      # head dim
FF = 64          # feed-forward inner dim
N_LAYERS = 2
PAD_ID = 0
EPS_DEFAULT = 1e-5   # nn.LayerNorm(model_dim) default eps (layer_norm1)
EPS_CFG = 1e-12      # config.layer_norm_eps (layer_norm2, lm-head LN)


def _gelu(x):
    return jax.nn.gelu(x, approximate=True)


def _layernorm(h, g, b, eps):
    mean = jnp.mean(h, axis=-1, keepdims=True)
    var = jnp.mean((h - mean) ** 2, axis=-1, keepdims=True)
    return (h - mean) * lax.rsqrt(var + eps) * g + b


def _softmax_rows(s):
    m = jnp.max(s, axis=-1, keepdims=True)
    p = jnp.exp(s - m)
    return p * pl.reciprocal(jnp.sum(p, axis=-1, keepdims=True), approx=True)


# ---------------- fused Pallas kernel ----------------

def fused_forward_kernel(
    x_ref,                                    # [S, D]   one batch element
    wqkv_ref, bqkv_ref, wo_ref, bo_ref,       # [L,D,3D] [L,1,3D] [L,D,D] [L,1,D]
    w1_ref, b1_ref, w2_ref, b2_ref,           # [L,D,FF] [L,1,FF] [L,FF,D] [L,1,D]
    ln1g_ref, ln1b_ref, ln2g_ref, ln2b_ref,   # [L,1,D] each
    hdw_ref, hdb_ref, hlng_ref, hlnb_ref,     # [D,D] [1,D] [1,D] [1,D]
    decw_ref, decb_ref,                       # [D,VOCAB] [1,VOCAB]
    o_ref,                                    # [S, VOCAB]
    *, n_layers, n_heads, dh, scale):
    x = x_ref[...]                            # [S, D] resident in vregs/VMEM
    d = n_heads * dh

    for l in range(n_layers):                 # static unroll (N_LAYERS small)
        # ---- fused QKV projection: single MXU pass, lane-dense [S, 3D] ----
        qkv = jnp.dot(x, wqkv_ref[l], preferred_element_type=jnp.float32) + bqkv_ref[l]
        q = qkv[:, 0 * d:1 * d]
        k = qkv[:, 1 * d:2 * d]
        v = qkv[:, 2 * d:3 * d]

        # ---- multi-head scaled dot-product attention (all heads in-kernel) ----
        heads = []
        for h in range(n_heads):              # static unroll, no grid steps / DMA
            qh = q[:, h * dh:(h + 1) * dh] * scale
            kh = k[:, h * dh:(h + 1) * dh]
            vh = v[:, h * dh:(h + 1) * dh]
            # q @ k^T via dot_general contracting the head dim (no explicit k.T)
            s = lax.dot_general(qh, kh, (((1,), (1,)), ((), ())),
                                preferred_element_type=jnp.float32)     # [S, S]
            p = _softmax_rows(s)
            heads.append(jnp.dot(p, vh, preferred_element_type=jnp.float32))
        attn = jnp.concatenate(heads, axis=-1)                           # [S, D]

        attn = jnp.dot(attn, wo_ref[l], preferred_element_type=jnp.float32) + bo_ref[l]
        # residual + layer_norm1 (default eps)
        x = _layernorm(x + attn, ln1g_ref[l], ln1b_ref[l], EPS_DEFAULT)

        # ---- position-wise feed-forward ----
        ff = _gelu(jnp.dot(x, w1_ref[l], preferred_element_type=jnp.float32) + b1_ref[l])
        ff = jnp.dot(ff, w2_ref[l], preferred_element_type=jnp.float32) + b2_ref[l]
        # residual + layer_norm2 (config eps)
        x = _layernorm(x + ff, ln2g_ref[l], ln2b_ref[l], EPS_CFG)

    # ---- LM head: dense -> gelu -> layernorm -> decoder ----
    hdn = _gelu(jnp.dot(x, hdw_ref[...], preferred_element_type=jnp.float32) + hdb_ref[...])
    hdn = _layernorm(hdn, hlng_ref[...], hlnb_ref[...], EPS_CFG)
    o_ref[...] = (jnp.dot(hdn, decw_ref[...], preferred_element_type=jnp.float32)
                  + decb_ref[...])


# ---------------- parameters ----------------

def init_params(key):
    keys = iter(jax.random.split(key, 64))

    def nrm(shape, scale=0.02):
        return (scale * jax.random.normal(next(keys), shape)).astype(jnp.float32)

    params = {}
    word_emb = nrm((VOCAB, D))
    word_emb = word_emb.at[PAD_ID].set(0.0)   # nn.Embedding padding_idx row is zero
    params["word_emb"] = word_emb
    params["pos_emb"] = nrm((MAX_POS, D))

    wqkv, bqkv, wo, bo = [], [], [], []
    w1, b1, w2, b2 = [], [], [], []
    ln1g, ln1b, ln2g, ln2b = [], [], [], []
    for _ in range(N_LAYERS):
        wq, wk, wv = nrm((D, D)), nrm((D, D)), nrm((D, D))
        bq, bk, bv = nrm((D,)), nrm((D,)), nrm((D,))
        wqkv.append(jnp.concatenate([wq, wk, wv], axis=1))       # [D, 3D] fused QKV
        bqkv.append(jnp.concatenate([bq, bk, bv])[None, :])      # [1, 3D]
        wo.append(nrm((D, D)));  bo.append(nrm((D,))[None, :])
        w1.append(nrm((D, FF))); b1.append(nrm((FF,))[None, :])
        w2.append(nrm((FF, D))); b2.append(nrm((D,))[None, :])
        ln1g.append(jnp.ones((1, D), jnp.float32)); ln1b.append(jnp.zeros((1, D), jnp.float32))
        ln2g.append(jnp.ones((1, D), jnp.float32)); ln2b.append(jnp.zeros((1, D), jnp.float32))

    stack = lambda xs: jnp.stack(xs, axis=0)
    params.update(
        wqkv=stack(wqkv), bqkv=stack(bqkv), wo=stack(wo), bo=stack(bo),
        w1=stack(w1), b1=stack(b1), w2=stack(w2), b2=stack(b2),
        ln1_g=stack(ln1g), ln1_b=stack(ln1b), ln2_g=stack(ln2g), ln2_b=stack(ln2b),
    )

    params["head_dense_w"] = nrm((D, D))
    params["head_dense_b"] = nrm((D,))[None, :]
    params["head_ln_g"] = jnp.ones((1, D), jnp.float32)
    params["head_ln_b"] = jnp.zeros((1, D), jnp.float32)
    params["dec_w"] = nrm((D, VOCAB))       # TODO(synk): HF ties decoder to word_emb; spec here uses an independent nn.Linear.
    params["dec_b"] = nrm((VOCAB,))[None, :]
    return params


# ---------------- full forward ----------------

def _full_block_spec(arr):
    nd = arr.ndim
    return pl.BlockSpec(arr.shape, lambda b, _nd=nd: (0,) * _nd)


def longformer_mlm_forward(params, input_ids):
    B, S = input_ids.shape

    # Embeddings: gather stays in plain JAX (glue); dropout = identity (eval).
    pos_ids = jnp.arange(S, dtype=jnp.int32)
    x = params["word_emb"][input_ids] + params["pos_emb"][pos_ids][None, :, :]  # [B,S,D]
    x = x.reshape(B * S, D).astype(jnp.float32)

    weight_args = (
        params["wqkv"], params["bqkv"], params["wo"], params["bo"],
        params["w1"], params["b1"], params["w2"], params["b2"],
        params["ln1_g"], params["ln1_b"], params["ln2_g"], params["ln2_b"],
        params["head_dense_w"], params["head_dense_b"],
        params["head_ln_g"], params["head_ln_b"],
        params["dec_w"], params["dec_b"],
    )

    in_specs = [pl.BlockSpec((S, D), lambda b: (b, 0))]           # per-batch row slab
    in_specs += [_full_block_spec(a) for a in weight_args]        # weights resident in VMEM

    logits = pl.pallas_call(
        functools.partial(fused_forward_kernel,
                          n_layers=N_LAYERS, n_heads=H, dh=DH,
                          scale=1.0 / math.sqrt(DH)),
        out_shape=jax.ShapeDtypeStruct((B * S, VOCAB), jnp.float32),
        grid=(B,),
        in_specs=in_specs,
        out_specs=pl.BlockSpec((S, VOCAB), lambda b: (b, 0)),
        compiler_params=pltpu.CompilerParams(
            dimension_semantics=("parallel",)),    # shards batches across TCs on v7x
    )(x, *weight_args)
    return logits.reshape(B, S, VOCAB)


if __name__ == "__main__":
    key = jax.random.PRNGKey(0)
    pkey, ikey = jax.random.split(key)
    params = init_params(pkey)

    B, S = 2, 8
    input_tokens = jax.random.randint(ikey, (B, S), 0, VOCAB, dtype=jnp.int32)

    logits = jax.jit(longformer_mlm_forward)(params, input_tokens)
    jax.block_until_ready(logits)
    assert logits.shape == (B, S, VOCAB)
    assert jnp.all(jnp.isfinite(logits))
    print("KERNEL_OK")
</pallas_src>

<mosaic_0001>
module attributes {stable_mosaic.version = 11 : i64} {
  func.func @fused_forward_kernel(%arg0: i32, %arg1: memref<8x32xf32, #tpu.memory_space<vmem>>, %arg2: memref<2x32x96xf32, #tpu.memory_space<vmem>>, %arg3: memref<2x1x96xf32, #tpu.memory_space<vmem>>, %arg4: memref<2x32x32xf32, #tpu.memory_space<vmem>>, %arg5: memref<2x1x32xf32, #tpu.memory_space<vmem>>, %arg6: memref<2x32x64xf32, #tpu.memory_space<vmem>>, %arg7: memref<2x1x64xf32, #tpu.memory_space<vmem>>, %arg8: memref<2x64x32xf32, #tpu.memory_space<vmem>>, %arg9: memref<2x1x32xf32, #tpu.memory_space<vmem>>, %arg10: memref<2x1x32xf32, #tpu.memory_space<vmem>>, %arg11: memref<2x1x32xf32, #tpu.memory_space<vmem>>, %arg12: memref<2x1x32xf32, #tpu.memory_space<vmem>>, %arg13: memref<2x1x32xf32, #tpu.memory_space<vmem>>, %arg14: memref<32x32xf32, #tpu.memory_space<vmem>>, %arg15: memref<1x32xf32, #tpu.memory_space<vmem>>, %arg16: memref<1x32xf32, #tpu.memory_space<vmem>>, %arg17: memref<1x32xf32, #tpu.memory_space<vmem>>, %arg18: memref<32x64xf32, #tpu.memory_space<vmem>>, %arg19: memref<1x64xf32, #tpu.memory_space<vmem>>, %arg20: memref<8x64xf32, #tpu.memory_space<vmem>>) attributes {dimension_semantics = [#tpu.dimension_semantics<parallel>], iteration_bounds = array<i64: 2>, scalar_prefetch = 0 : i64, scratch_operands = 0 : i64, tpu.core_type = #tpu.core_type<tc>, window_params = [{transform_indices = @transform_0, window_bounds = array<i64: 8, 32>}, {pipeline_mode = #tpu.pipeline_mode<synchronous>, transform_indices = @transform_1, window_bounds = array<i64: 2, 32, 96>}, {pipeline_mode = #tpu.pipeline_mode<synchronous>, transform_indices = @transform_2, window_bounds = array<i64: 2, 1, 96>}, {pipeline_mode = #tpu.pipeline_mode<synchronous>, transform_indices = @transform_3, window_bounds = array<i64: 2, 32, 32>}, {pipeline_mode = #tpu.pipeline_mode<synchronous>, transform_indices = @transform_4, window_bounds = array<i64: 2, 1, 32>}, {pipeline_mode = #tpu.pipeline_mode<synchronous>, transform_indices = @transform_5, window_bounds = array<i64: 2, 32, 64>}, {pipeline_mode = #tpu.pipeline_mode<synchronous>, transform_indices = @transform_6, window_bounds = array<i64: 2, 1, 64>}, {pipeline_mode = #tpu.pipeline_mode<synchronous>, transform_indices = @transform_7, window_bounds = array<i64: 2, 64, 32>}, {pipeline_mode = #tpu.pipeline_mode<synchronous>, transform_indices = @transform_8, window_bounds = array<i64: 2, 1, 32>}, {pipeline_mode = #tpu.pipeline_mode<synchronous>, transform_indices = @transform_9, window_bounds = array<i64: 2, 1, 32>}, {pipeline_mode = #tpu.pipeline_mode<synchronous>, transform_indices = @transform_10, window_bounds = array<i64: 2, 1, 32>}, {pipeline_mode = #tpu.pipeline_mode<synchronous>, transform_indices = @transform_11, window_bounds = array<i64: 2, 1, 32>}, {pipeline_mode = #tpu.pipeline_mode<synchronous>, transform_indices = @transform_12, window_bounds = array<i64: 2, 1, 32>}, {pipeline_mode = #tpu.pipeline_mode<synchronous>, transform_indices = @transform_13, window_bounds = array<i64: 32, 32>}, {pipeline_mode = #tpu.pipeline_mode<synchronous>, transform_indices = @transform_14, window_bounds = array<i64: 1, 32>}, {pipeline_mode = #tpu.pipeline_mode<synchronous>, transform_indices = @transform_15, window_bounds = array<i64: 1, 32>}, {pipeline_mode = #tpu.pipeline_mode<synchronous>, transform_indices = @transform_16, window_bounds = array<i64: 1, 32>}, {pipeline_mode = #tpu.pipeline_mode<synchronous>, transform_indices = @transform_17, window_bounds = array<i64: 32, 64>}, {pipeline_mode = #tpu.pipeline_mode<synchronous>, transform_indices = @transform_18, window_bounds = array<i64: 1, 64>}, {transform_indices = @transform_19, window_bounds = array<i64: 8, 64>}]} {
    %c0 = arith.constant 0 : index
    %c0_0 = arith.constant 0 : index
    %0 = vector.load %arg1[%c0, %c0_0] : memref<8x32xf32, #tpu.memory_space<vmem>>, vector<8x32xf32>
    %c0_1 = arith.constant 0 : index
    %c0_2 = arith.constant 0 : index
    %c0_3 = arith.constant 0 : index
    %1 = vector.load %arg2[%c0_1, %c0_2, %c0_3] : memref<2x32x96xf32, #tpu.memory_space<vmem>>, vector<1x32x96xf32>
    %2 = vector.shape_cast %1 : vector<1x32x96xf32> to vector<32x96xf32>
    %cst = arith.constant dense<0.000000e+00> : vector<8x96xf32>
    %3 = tpu.matmul %0, %2, %cst {dimension_numbers = #tpu.dot_dimension_numbers<[1], [0], [0], [1], [0, 0, 1, 1], [], []>} : vector<8x32xf32>, vector<32x96xf32>, vector<8x96xf32> -> vector<8x96xf32>
    %c0_4 = arith.constant 0 : index
    %c0_5 = arith.constant 0 : index
    %c0_6 = arith.constant 0 : index
    %4 = vector.load %arg3[%c0_4, %c0_5, %c0_6] : memref<2x1x96xf32, #tpu.memory_space<vmem>>, vector<1x1x96xf32>
    %5 = vector.shape_cast %4 : vector<1x1x96xf32> to vector<1x96xf32>
    %6 = vector.broadcast %5 : vector<1x96xf32> to vector<8x96xf32>
    %7 = arith.addf %3, %6 : vector<8x96xf32>
    %8 = vector.extract_strided_slice %7 {offsets = [0, 0], sizes = [8, 32], strides = [1, 1]} : vector<8x96xf32> to vector<8x32xf32>
    %9 = vector.extract_strided_slice %7 {offsets = [0, 32], sizes = [8, 32], strides = [1, 1]} : vector<8x96xf32> to vector<8x32xf32>
    %10 = vector.extract_strided_slice %7 {offsets = [0, 64], sizes = [8, 32], strides = [1, 1]} : vector<8x96xf32> to vector<8x32xf32>
    %11 = vector.extract_strided_slice %8 {offsets = [0, 0], sizes = [8, 8], strides = [1, 1]} : vector<8x32xf32> to vector<8x8xf32>
    %cst_7 = arith.constant 0.353553385 : f32
    %12 = vector.broadcast %cst_7 : f32 to vector<8x8xf32>
    %13 = arith.mulf %11, %12 : vector<8x8xf32>
    %14 = vector.extract_strided_slice %9 {offsets = [0, 0], sizes = [8, 8], strides = [1, 1]} : vector<8x32xf32> to vector<8x8xf32>
    %15 = vector.extract_strided_slice %10 {offsets = [0, 0], sizes = [8, 8], strides = [1, 1]} : vector<8x32xf32> to vector<8x8xf32>
    %cst_8 = arith.constant dense<0.000000e+00> : vector<8x8xf32>
    %16 = tpu.matmul %13, %14, %cst_8 {dimension_numbers = #tpu.dot_dimension_numbers<[1], [1], [0], [0], [0, 0, 1, 0], [], []>} : vector<8x8xf32>, vector<8x8xf32>, vector<8x8xf32> -> vector<8x8xf32>
    %cst_9 = arith.constant dense<0xFF800000> : vector<8xf32>
    %17 = vector.multi_reduction <maximumf>, %16, %cst_9 [1] : vector<8x8xf32> to vector<8xf32>
    %18 = vector.shape_cast %17 : vector<8xf32> to vector<8x1xf32>
    %19 = vector.broadcast %18 : vector<8x1xf32> to vector<8x8xf32>
    %20 = arith.subf %16, %19 : vector<8x8xf32>
    %21 = math.exp %20 : vector<8x8xf32>
    %cst_10 = arith.constant dense<0.000000e+00> : vector<8xf32>
    %22 = vector.multi_reduction <add>, %21, %cst_10 [1] : vector<8x8xf32> to vector<8xf32>
    %23 = vector.shape_cast %22 : vector<8xf32> to vector<8x1xf32>
    %24 = tpu.reciprocal %23 {approx = true} : vector<8x1xf32> -> vector<8x1xf32>
    %25 = vector.broadcast %24 : vector<8x1xf32> to vector<8x8xf32>
    %26 = arith.mulf %21, %25 : vector<8x8xf32>
    %cst_11 = arith.constant dense<0.000000e+00> : vector<8x8xf32>
    %27 = tpu.matmul %26, %15, %cst_11 {dimension_numbers = #tpu.dot_dimension_numbers<[1], [0], [0], [1], [0, 0, 1, 1], [], []>} : vector<8x8xf32>, vector<8x8xf32>, vector<8x8xf32> -> vector<8x8xf32>
    %28 = vector.extract_strided_slice %8 {offsets = [0, 8], sizes = [8, 8], strides = [1, 1]} : vector<8x32xf32> to vector<8x8xf32>
    %cst_12 = arith.constant 0.353553385 : f32
    %29 = vector.broadcast %cst_12 : f32 to vector<8x8xf32>
    %30 = arith.mulf %28, %29 : vector<8x8xf32>
    %31 = vector.extract_strided_slice %9 {offsets = [0, 8], sizes = [8, 8], strides = [1, 1]} : vector<8x32xf32> to vector<8x8xf32>
    %32 = vector.extract_strided_slice %10 {offsets = [0, 8], sizes = [8, 8], strides = [1, 1]} : vector<8x32xf32> to vector<8x8xf32>
    %cst_13 = arith.constant dense<0.000000e+00> : vector<8x8xf32>
    %33 = tpu.matmul %30, %31, %cst_13 {dimension_numbers = #tpu.dot_dimension_numbers<[1], [1], [0], [0], [0, 0, 1, 0], [], []>} : vector<8x8xf32>, vector<8x8xf32>, vector<8x8xf32> -> vector<8x8xf32>
    %cst_14 = arith.constant dense<0xFF800000> : vector<8xf32>
    %34 = vector.multi_reduction <maximumf>, %33, %cst_14 [1] : vector<8x8xf32> to vector<8xf32>
    %35 = vector.shape_cast %34 : vector<8xf32> to vector<8x1xf32>
    %36 = vector.broadcast %35 : vector<8x1xf32> to vector<8x8xf32>
    %37 = arith.subf %33, %36 : vector<8x8xf32>
    %38 = math.exp %37 : vector<8x8xf32>
    %cst_15 = arith.constant dense<0.000000e+00> : vector<8xf32>
    %39 = vector.multi_reduction <add>, %38, %cst_15 [1] : vector<8x8xf32> to vector<8xf32>
    %40 = vector.shape_cast %39 : vector<8xf32> to vector<8x1xf32>
    %41 = tpu.reciprocal %40 {approx = true} : vector<8x1xf32> -> vector<8x1xf32>
    %42 = vector.broadcast %41 : vector<8x1xf32> to vector<8x8xf32>
    %43 = arith.mulf %38, %42 : vector<8x8xf32>
    %cst_16 = arith.constant dense<0.000000e+00> : vector<8x8xf32>
    %44 = tpu.matmul %43, %32, %cst_16 {dimension_numbers = #tpu.dot_dimension_numbers<[1], [0], [0], [1], [0, 0, 1, 1], [], []>} : vector<8x8xf32>, vector<8x8xf32>, vector<8x8xf32> -> vector<8x8xf32>
    %45 = vector.extract_strided_slice %8 {offsets = [0, 16], sizes = [8, 8], strides = [1, 1]} : vector<8x32xf32> to vector<8x8xf32>
    %cst_17 = arith.constant 0.353553385 : f32
    %46 = vector.broadcast %cst_17 : f32 to vector<8x8xf32>
    %47 = arith.mulf %45, %46 : vector<8x8xf32>
    %48 = vector.extract_strided_slice %9 {offsets = [0, 16], sizes = [8, 8], strides = [1, 1]} : vector<8x32xf32> to vector<8x8xf32>
    %49 = vector.extract_strided_slice %10 {offsets = [0, 16], sizes = [8, 8], strides = [1, 1]} : vector<8x32xf32> to vector<8x8xf32>
    %cst_18 = arith.constant dense<0.000000e+00> : vector<8x8xf32>
    %50 = tpu.matmul %47, %48, %cst_18 {dimension_numbers = #tpu.dot_dimension_numbers<[1], [1], [0], [0], [0, 0, 1, 0], [], []>} : vector<8x8xf32>, vector<8x8xf32>, vector<8x8xf32> -> vector<8x8xf32>
    %cst_19 = arith.constant dense<0xFF800000> : vector<8xf32>
    %51 = vector.multi_reduction <maximumf>, %50, %cst_19 [1] : vector<8x8xf32> to vector<8xf32>
    %52 = vector.shape_cast %51 : vector<8xf32> to vector<8x1xf32>
    %53 = vector.broadcast %52 : vector<8x1xf32> to vector<8x8xf32>
    %54 = arith.subf %50, %53 : vector<8x8xf32>
    %55 = math.exp %54 : vector<8x8xf32>
    %cst_20 = arith.constant dense<0.000000e+00> : vector<8xf32>
    %56 = vector.multi_reduction <add>, %55, %cst_20 [1] : vector<8x8xf32> to vector<8xf32>
    %57 = vector.shape_cast %56 : vector<8xf32> to vector<8x1xf32>
    %58 = tpu.reciprocal %57 {approx = true} : vector<8x1xf32> -> vector<8x1xf32>
    %59 = vector.broadcast %58 : vector<8x1xf32> to vector<8x8xf32>
    %60 = arith.mulf %55, %59 : vector<8x8xf32>
    %cst_21 = arith.constant dense<0.000000e+00> : vector<8x8xf32>
    %61 = tpu.matmul %60, %49, %cst_21 {dimension_numbers = #tpu.dot_dimension_numbers<[1], [0], [0], [1], [0, 0, 1, 1], [], []>} : vector<8x8xf32>, vector<8x8xf32>, vector<8x8xf32> -> vector<8x8xf32>
    %62 = vector.extract_strided_slice %8 {offsets = [0, 24], sizes = [8, 8], strides = [1, 1]} : vector<8x32xf32> to vector<8x8xf32>
    %cst_22 = arith.constant 0.353553385 : f32
    %63 = vector.broadcast %cst_22 : f32 to vector<8x8xf32>
    %64 = arith.mulf %62, %63 : vector<8x8xf32>
    %65 = vector.extract_strided_slice %9 {offsets = [0, 24], sizes = [8, 8], strides = [1, 1]} : vector<8x32xf32> to vector<8x8xf32>
    %66 = vector.extract_strided_slice %10 {offsets = [0, 24], sizes = [8, 8], strides = [1, 1]} : vector<8x32xf32> to vector<8x8xf32>
    %cst_23 = arith.constant dense<0.000000e+00> : vector<8x8xf32>
    %67 = tpu.matmul %64, %65, %cst_23 {dimension_numbers = #tpu.dot_dimension_numbers<[1], [1], [0], [0], [0, 0, 1, 0], [], []>} : vector<8x8xf32>, vector<8x8xf32>, vector<8x8xf32> -> vector<8x8xf32>
    %cst_24 = arith.constant dense<0xFF800000> : vector<8xf32>
    %68 = vector.multi_reduction <maximumf>, %67, %cst_24 [1] : vector<8x8xf32> to vector<8xf32>
    %69 = vector.shape_cast %68 : vector<8xf32> to vector<8x1xf32>
    %70 = vector.broadcast %69 : vector<8x1xf32> to vector<8x8xf32>
    %71 = arith.subf %67, %70 : vector<8x8xf32>
    %72 = math.exp %71 : vector<8x8xf32>
    %cst_25 = arith.constant dense<0.000000e+00> : vector<8xf32>
    %73 = vector.multi_reduction <add>, %72, %cst_25 [1] : vector<8x8xf32> to vector<8xf32>
    %74 = vector.shape_cast %73 : vector<8xf32> to vector<8x1xf32>
    %75 = tpu.reciprocal %74 {approx = true} : vector<8x1xf32> -> vector<8x1xf32>
    %76 = vector.broadcast %75 : vector<8x1xf32> to vector<8x8xf32>
    %77 = arith.mulf %72, %76 : vector<8x8xf32>
    %cst_26 = arith.constant dense<0.000000e+00> : vector<8x8xf32>
    %78 = tpu.matmul %77, %66, %cst_26 {dimension_numbers = #tpu.dot_dimension_numbers<[1], [0], [0], [1], [0, 0, 1, 1], [], []>} : vector<8x8xf32>, vector<8x8xf32>, vector<8x8xf32> -> vector<8x8xf32>
    %79 = tpu.concatenate %27, %44, %61, %78 in 1 : vector<8x8xf32>, vector<8x8xf32>, vector<8x8xf32>, vector<8x8xf32> -> vector<8x32xf32>
    %c0_27 = arith.constant 0 : index
    %c0_28 = arith.constant 0 : index
    %c0_29 = arith.constant 0 : index
    %80 = vector.load %arg4[%c0_27, %c0_28, %c0_29] : memref<2x32x32xf32, #tpu.memory_space<vmem>>, vector<1x32x32xf32>
    %81 = vector.shape_cast %80 : vector<1x32x32xf32> to vector<32x32xf32>
    %cst_30 = arith.constant dense<0.000000e+00> : vector<8x32xf32>
    %82 = tpu.matmul %79, %81, %cst_30 {dimension_numbers = #tpu.dot_dimension_numbers<[1], [0], [0], [1], [0, 0, 1, 1], [], []>} : vector<8x32xf32>, vector<32x32xf32>, vector<8x32xf32> -> vector<8x32xf32>
    %c0_31 = arith.constant 0 : index
    %c0_32 = arith.constant 0 : index
    %c0_33 = arith.constant 0 : index
    %83 = vector.load %arg5[%c0_31, %c0_32, %c0_33] : memref<2x1x32xf32, #tpu.memory_space<vmem>>, vector<1x1x32xf32>
    %84 = vector.shape_cast %83 : vector<1x1x32xf32> to vector<1x32xf32>
    %85 = vector.broadcast %84 : vector<1x32xf32> to vector<8x32xf32>
    %86 = arith.addf %82, %85 : vector<8x32xf32>
    %87 = arith.addf %0, %86 : vector<8x32xf32>
    %c0_34 = arith.constant 0 : index
    %c0_35 = arith.constant 0 : index
    %c0_36 = arith.constant 0 : index
    %88 = vector.load %arg10[%c0_34, %c0_35, %c0_36] : memref<2x1x32xf32, #tpu.memory_space<vmem>>, vector<1x1x32xf32>
    %89 = vector.shape_cast %88 : vector<1x1x32xf32> to vector<1x32xf32>
    %c0_37 = arith.constant 0 : index
    %c0_38 = arith.constant 0 : index
    %c0_39 = arith.constant 0 : index
    %90 = vector.load %arg11[%c0_37, %c0_38, %c0_39] : memref<2x1x32xf32, #tpu.memory_space<vmem>>, vector<1x1x32xf32>
    %91 = vector.shape_cast %90 : vector<1x1x32xf32> to vector<1x32xf32>
    %cst_40 = arith.constant dense<0.000000e+00> : vector<8xf32>
    %92 = vector.multi_reduction <add>, %87, %cst_40 [1] : vector<8x32xf32> to vector<8xf32>
    %93 = vector.shape_cast %92 : vector<8xf32> to vector<8x1xf32>
    %cst_41 = arith.constant 3.200000e+01 : f32
    %94 = vector.broadcast %cst_41 : f32 to vector<8x1xf32>
    %95 = arith.divf %93, %94 : vector<8x1xf32>
    %96 = vector.broadcast %95 : vector<8x1xf32> to vector<8x32xf32>
    %97 = arith.subf %87, %96 : vector<8x32xf32>
    %98 = arith.mulf %97, %97 : vector<8x32xf32>
    %cst_42 = arith.constant dense<0.000000e+00> : vector<8xf32>
    %99 = vector.multi_reduction <add>, %98, %cst_42 [1] : vector<8x32xf32> to vector<8xf32>
    %100 = vector.shape_cast %99 : vector<8xf32> to vector<8x1xf32>
    %cst_43 = arith.constant 3.200000e+01 : f32
    %101 = vector.broadcast %cst_43 : f32 to vector<8x1xf32>
    %102 = arith.divf %100, %101 : vector<8x1xf32>
    %103 = vector.broadcast %95 : vector<8x1xf32> to vector<8x32xf32>
    %104 = arith.subf %87, %103 : vector<8x32xf32>
    %cst_44 = arith.constant 9.99999974E-6 : f32
    %105 = vector.broadcast %cst_44 : f32 to vector<8x1xf32>
    %106 = arith.addf %102, %105 : vector<8x1xf32>
    %107 = math.rsqrt %106 : vector<8x1xf32>
    %108 = vector.broadcast %107 : vector<8x1xf32> to vector<8x32xf32>
    %109 = arith.mulf %104, %108 : vector<8x32xf32>
    %110 = vector.broadcast %89 : vector<1x32xf32> to vector<8x32xf32>
    %111 = arith.mulf %109, %110 : vector<8x32xf32>
    %112 = vector.broadcast %91 : vector<1x32xf32> to vector<8x32xf32>
    %113 = arith.addf %111, %112 : vector<8x32xf32>
    %c0_45 = arith.constant 0 : index
    %c0_46 = arith.constant 0 : index
    %c0_47 = arith.constant 0 : index
    %114 = vector.load %arg6[%c0_45, %c0_46, %c0_47] : memref<2x32x64xf32, #tpu.memory_space<vmem>>, vector<1x32x64xf32>
    %115 = vector.shape_cast %114 : vector<1x32x64xf32> to vector<32x64xf32>
    %cst_48 = arith.constant dense<0.000000e+00> : vector<8x64xf32>
    %116 = tpu.matmul %113, %115, %cst_48 {dimension_numbers = #tpu.dot_dimension_numbers<[1], [0], [0], [1], [0, 0, 1, 1], [], []>} : vector<8x32xf32>, vector<32x64xf32>, vector<8x64xf32> -> vector<8x64xf32>
    %c0_49 = arith.constant 0 : index
    %c0_50 = arith.constant 0 : index
    %c0_51 = arith.constant 0 : index
    %117 = vector.load %arg7[%c0_49, %c0_50, %c0_51] : memref<2x1x64xf32, #tpu.memory_space<vmem>>, vector<1x1x64xf32>
    %118 = vector.shape_cast %117 : vector<1x1x64xf32> to vector<1x64xf32>
    %119 = vector.broadcast %118 : vector<1x64xf32> to vector<8x64xf32>
    %120 = arith.addf %116, %119 : vector<8x64xf32>
    %121 = arith.mulf %120, %120 : vector<8x64xf32>
    %122 = arith.mulf %120, %121 : vector<8x64xf32>
    %cst_52 = arith.constant 4.471500e-02 : f32
    %123 = vector.broadcast %cst_52 : f32 to vector<8x64xf32>
    %124 = arith.mulf %123, %122 : vector<8x64xf32>
    %125 = arith.addf %120, %124 : vector<8x64xf32>
    %cst_53 = arith.constant 0.797884583 : f32
    %126 = vector.broadcast %cst_53 : f32 to vector<8x64xf32>
    %127 = arith.mulf %126, %125 : vector<8x64xf32>
    %128 = math.tanh %127 : vector<8x64xf32>
    %cst_54 = arith.constant 1.000000e+00 : f32
    %129 = vector.broadcast %cst_54 : f32 to vector<8x64xf32>
    %130 = arith.addf %129, %128 : vector<8x64xf32>
    %cst_55 = arith.constant 5.000000e-01 : f32
    %131 = vector.broadcast %cst_55 : f32 to vector<8x64xf32>
    %132 = arith.mulf %131, %130 : vector<8x64xf32>
    %133 = arith.mulf %120, %132 : vector<8x64xf32>
    %c0_56 = arith.constant 0 : index
    %c0_57 = arith.constant 0 : index
    %c0_58 = arith.constant 0 : index
    %134 = vector.load %arg8[%c0_56, %c0_57, %c0_58] : memref<2x64x32xf32, #tpu.memory_space<vmem>>, vector<1x64x32xf32>
    %135 = vector.shape_cast %134 : vector<1x64x32xf32> to vector<64x32xf32>
    %cst_59 = arith.constant dense<0.000000e+00> : vector<8x32xf32>
    %136 = tpu.matmul %133, %135, %cst_59 {dimension_numbers = #tpu.dot_dimension_numbers<[1], [0], [0], [1], [0, 0, 1, 1], [], []>} : vector<8x64xf32>, vector<64x32xf32>, vector<8x32xf32> -> vector<8x32xf32>
    %c0_60 = arith.constant 0 : index
    %c0_61 = arith.constant 0 : index
    %c0_62 = arith.constant 0 : index
    %137 = vector.load %arg9[%c0_60, %c0_61, %c0_62] : memref<2x1x32xf32, #tpu.memory_space<vmem>>, vector<1x1x32xf32>
    %138 = vector.shape_cast %137 : vector<1x1x32xf32> to vector<1x32xf32>
    %139 = vector.broadcast %138 : vector<1x32xf32> to vector<8x32xf32>
    %140 = arith.addf %136, %139 : vector<8x32xf32>
    %141 = arith.addf %113, %140 : vector<8x32xf32>
    %c0_63 = arith.constant 0 : index
    %c0_64 = arith.constant 0 : index
    %c0_65 = arith.constant 0 : index
    %142 = vector.load %arg12[%c0_63, %c0_64, %c0_65] : memref<2x1x32xf32, #tpu.memory_space<vmem>>, vector<1x1x32xf32>
    %143 = vector.shape_cast %142 : vector<1x1x32xf32> to vector<1x32xf32>
    %c0_66 = arith.constant 0 : index
    %c0_67 = arith.constant 0 : index
    %c0_68 = arith.constant 0 : index
    %144 = vector.load %arg13[%c0_66, %c0_67, %c0_68] : memref<2x1x32xf32, #tpu.memory_space<vmem>>, vector<1x1x32xf32>
    %145 = vector.shape_cast %144 : vector<1x1x32xf32> to vector<1x32xf32>
    %cst_69 = arith.constant dense<0.000000e+00> : vector<8xf32>
    %146 = vector.multi_reduction <add>, %141, %cst_69 [1] : vector<8x32xf32> to vector<8xf32>
    %147 = vector.shape_cast %146 : vector<8xf32> to vector<8x1xf32>
    %cst_70 = arith.constant 3.200000e+01 : f32
    %148 = vector.broadcast %cst_70 : f32 to vector<8x1xf32>
    %149 = arith.divf %147, %148 : vector<8x1xf32>
    %150 = vector.broadcast %149 : vector<8x1xf32> to vector<8x32xf32>
    %151 = arith.subf %141, %150 : vector<8x32xf32>
    %152 = arith.mulf %151, %151 : vector<8x32xf32>
    %cst_71 = arith.constant dense<0.000000e+00> : vector<8xf32>
    %153 = vector.multi_reduction <add>, %152, %cst_71 [1] : vector<8x32xf32> to vector<8xf32>
    %154 = vector.shape_cast %153 : vector<8xf32> to vector<8x1xf32>
    %cst_72 = arith.constant 3.200000e+01 : f32
    %155 = vector.broadcast %cst_72 : f32 to vector<8x1xf32>
    %156 = arith.divf %154, %155 : vector<8x1xf32>
    %157 = vector.broadcast %149 : vector<8x1xf32> to vector<8x32xf32>
    %158 = arith.subf %141, %157 : vector<8x32xf32>
    %cst_73 = arith.constant 9.99999996E-13 : f32
    %159 = vector.broadcast %cst_73 : f32 to vector<8x1xf32>
    %160 = arith.addf %156, %159 : vector<8x1xf32>
    %161 = math.rsqrt %160 : vector<8x1xf32>
    %162 = vector.broadcast %161 : vector<8x1xf32> to vector<8x32xf32>
    %163 = arith.mulf %158, %162 : vector<8x32xf32>
    %164 = vector.broadcast %143 : vector<1x32xf32> to vector<8x32xf32>
    %165 = arith.mulf %163, %164 : vector<8x32xf32>
    %166 = vector.broadcast %145 : vector<1x32xf32> to vector<8x32xf32>
    %167 = arith.addf %165, %166 : vector<8x32xf32>
    %c1 = arith.constant 1 : index
    %c0_74 = arith.constant 0 : index
    %c0_75 = arith.constant 0 : index
    %168 = vector.load %arg2[%c1, %c0_74, %c0_75] : memref<2x32x96xf32, #tpu.memory_space<vmem>>, vector<1x32x96xf32>
    %169 = vector.shape_cast %168 : vector<1x32x96xf32> to vector<32x96xf32>
    %cst_76 = arith.constant dense<0.000000e+00> : vector<8x96xf32>
    %170 = tpu.matmul %167, %169, %cst_76 {dimension_numbers = #tpu.dot_dimension_numbers<[1], [0], [0], [1], [0, 0, 1, 1], [], []>} : vector<8x32xf32>, vector<32x96xf32>, vector<8x96xf32> -> vector<8x96xf32>
    %c1_77 = arith.constant 1 : index
    %c0_78 = arith.constant 0 : index
    %c0_79 = arith.constant 0 : index
    %171 = vector.load %arg3[%c1_77, %c0_78, %c0_79] : memref<2x1x96xf32, #tpu.memory_space<vmem>>, vector<1x1x96xf32>
    %172 = vector.shape_cast %171 : vector<1x1x96xf32> to vector<1x96xf32>
    %173 = vector.broadcast %172 : vector<1x96xf32> to vector<8x96xf32>
    %174 = arith.addf %170, %173 : vector<8x96xf32>
    %175 = vector.extract_strided_slice %174 {offsets = [0, 0], sizes = [8, 32], strides = [1, 1]} : vector<8x96xf32> to vector<8x32xf32>
    %176 = vector.extract_strided_slice %174 {offsets = [0, 32], sizes = [8, 32], strides = [1, 1]} : vector<8x96xf32> to vector<8x32xf32>
    %177 = vector.extract_strided_slice %174 {offsets = [0, 64], sizes = [8, 32], strides = [1, 1]} : vector<8x96xf32> to vector<8x32xf32>
    %178 = vector.extract_strided_slice %175 {offsets = [0, 0], sizes = [8, 8], strides = [1, 1]} : vector<8x32xf32> to vector<8x8xf32>
    %cst_80 = arith.constant 0.353553385 : f32
    %179 = vector.broadcast %cst_80 : f32 to vector<8x8xf32>
    %180 = arith.mulf %178, %179 : vector<8x8xf32>
    %181 = vector.extract_strided_slice %176 {offsets = [0, 0], sizes = [8, 8], strides = [1, 1]} : vector<8x32xf32> to vector<8x8xf32>
    %182 = vector.extract_strided_slice %177 {offsets = [0, 0], sizes = [8, 8], strides = [1, 1]} : vector<8x32xf32> to vector<8x8xf32>
    %cst_81 = arith.constant dense<0.000000e+00> : vector<8x8xf32>
    %183 = tpu.matmul %180, %181, %cst_81 {dimension_numbers = #tpu.dot_dimension_numbers<[1], [1], [0], [0], [0, 0, 1, 0], [], []>} : vector<8x8xf32>, vector<8x8xf32>, vector<8x8xf32> -> vector<8x8xf32>
    %cst_82 = arith.constant dense<0xFF800000> : vector<8xf32>
    %184 = vector.multi_reduction <maximumf>, %183, %cst_82 [1] : vector<8x8xf32> to vector<8xf32>
    %185 = vector.shape_cast %184 : vector<8xf32> to vector<8x1xf32>
    %186 = vector.broadcast %185 : vector<8x1xf32> to vector<8x8xf32>
    %187 = arith.subf %183, %186 : vector<8x8xf32>
    %188 = math.exp %187 : vector<8x8xf32>
    %cst_83 = arith.constant dense<0.000000e+00> : vector<8xf32>
    %189 = vector.multi_reduction <add>, %188, %cst_83 [1] : vector<8x8xf32> to vector<8xf32>
    %190 = vector.shape_cast %189 : vector<8xf32> to vector<8x1xf32>
    %191 = tpu.reciprocal %190 {approx = true} : vector<8x1xf32> -> vector<8x1xf32>
    %192 = vector.broadcast %191 : vector<8x1xf32> to vector<8x8xf32>
    %193 = arith.mulf %188, %192 : vector<8x8xf32>
    %cst_84 = arith.constant dense<0.000000e+00> : vector<8x8xf32>
    %194 = tpu.matmul %193, %182, %cst_84 {dimension_numbers = #tpu.dot_dimension_numbers<[1], [0], [0], [1], [0, 0, 1, 1], [], []>} : vector<8x8xf32>, vector<8x8xf32>, vector<8x8xf32> -> vector<8x8xf32>
    %195 = vector.extract_strided_slice %175 {offsets = [0, 8], sizes = [8, 8], strides = [1, 1]} : vector<8x32xf32> to vector<8x8xf32>
    %cst_85 = arith.constant 0.353553385 : f32
    %196 = vector.broadcast %cst_85 : f32 to vector<8x8xf32>
    %197 = arith.mulf %195, %196 : vector<8x8xf32>
    %198 = vector.extract_strided_slice %176 {offsets = [0, 8], sizes = [8, 8], strides = [1, 1]} : vector<8x32xf32> to vector<8x8xf32>
    %199 = vector.extract_strided_slice %177 {offsets = [0, 8], sizes = [8, 8], strides = [1, 1]} : vector<8x32xf32> to vector<8x8xf32>
    %cst_86 = arith.constant dense<0.000000e+00> : vector<8x8xf32>
    %200 = tpu.matmul %197, %198, %cst_86 {dimension_numbers = #tpu.dot_dimension_numbers<[1], [1], [0], [0], [0, 0, 1, 0], [], []>} : vector<8x8xf32>, vector<8x8xf32>, vector<8x8xf32> -> vector<8x8xf32>
    %cst_87 = arith.constant dense<0xFF800000> : vector<8xf32>
    %201 = vector.multi_reduction <maximumf>, %200, %cst_87 [1] : vector<8x8xf32> to vector<8xf32>
    %202 = vector.shape_cast %201 : vector<8xf32> to vector<8x1xf32>
    %203 = vector.broadcast %202 : vector<8x1xf32> to vector<8x8xf32>
    %204 = arith.subf %200, %203 : vector<8x8xf32>
    %205 = math.exp %204 : vector<8x8xf32>
    %cst_88 = arith.constant dense<0.000000e+00> : vector<8xf32>
    %206 = vector.multi_reduction <add>, %205, %cst_88 [1] : vector<8x8xf32> to vector<8xf32>
    %207 = vector.shape_cast %206 : vector<8xf32> to vector<8x1xf32>
    %208 = tpu.reciprocal %207 {approx = true} : vector<8x1xf32> -> vector<8x1xf32>
    %209 = vector.broadcast %208 : vector<8x1xf32> to vector<8x8xf32>
    %210 = arith.mulf %205, %209 : vector<8x8xf32>
    %cst_89 = arith.constant dense<0.000000e+00> : vector<8x8xf32>
    %211 = tpu.matmul %210, %199, %cst_89 {dimension_numbers = #tpu.dot_dimension_numbers<[1], [0], [0], [1], [0, 0, 1, 1], [], []>} : vector<8x8xf32>, vector<8x8xf32>, vector<8x8xf32> -> vector<8x8xf32>
    %212 = vector.extract_strided_slice %175 {offsets = [0, 16], sizes = [8, 8], strides = [1, 1]} : vector<8x32xf32> to vector<8x8xf32>
    %cst_90 = arith.constant 0.353553385 : f32
    %213 = vector.broadcast %cst_90 : f32 to vector<8x8xf32>
    %214 = arith.mulf %212, %213 : vector<8x8xf32>
    %215 = vector.extract_strided_slice %176 {offsets = [0, 16], sizes = [8, 8], strides = [1, 1]} : vector<8x32xf32> to vector<8x8xf32>
    %216 = vector.extract_strided_slice %177 {offsets = [0, 16], sizes = [8, 8], strides = [1, 1]} : vector<8x32xf32> to vector<8x8xf32>
    %cst_91 = arith.constant dense<0.000000e+00> : vector<8x8xf32>
    %217 = tpu.matmul %214, %215, %cst_91 {dimension_numbers = #tpu.dot_dimension_numbers<[1], [1], [0], [0], [0, 0, 1, 0], [], []>} : vector<8x8xf32>, vector<8x8xf32>, vector<8x8xf32> -> vector<8x8xf32>
    %cst_92 = arith.constant dense<0xFF800000> : vector<8xf32>
    %218 = vector.multi_reduction <maximumf>, %217, %cst_92 [1] : vector<8x8xf32> to vector<8xf32>
    %219 = vector.shape_cast %218 : vector<8xf32> to vector<8x1xf32>
    %220 = vector.broadcast %219 : vector<8x1xf32> to vector<8x8xf32>
    %221 = arith.subf %217, %220 : vector<8x8xf32>
    %222 = math.exp %221 : vector<8x8xf32>
    %cst_93 = arith.constant dense<0.000000e+00> : vector<8xf32>
    %223 = vector.multi_reduction <add>, %222, %cst_93 [1] : vector<8x8xf32> to vector<8xf32>
    %224 = vector.shape_cast %223 : vector<8xf32> to vector<8x1xf32>
    %225 = tpu.reciprocal %224 {approx = true} : vector<8x1xf32> -> vector<8x1xf32>
    %226 = vector.broadcast %225 : vector<8x1xf32> to vector<8x8xf32>
    %227 = arith.mulf %222, %226 : vector<8x8xf32>
    %cst_94 = arith.constant dense<0.000000e+00> : vector<8x8xf32>
    %228 = tpu.matmul %227, %216, %cst_94 {dimension_numbers = #tpu.dot_dimension_numbers<[1], [0], [0], [1], [0, 0, 1, 1], [], []>} : vector<8x8xf32>, vector<8x8xf32>, vector<8x8xf32> -> vector<8x8xf32>
    %229 = vector.extract_strided_slice %175 {offsets = [0, 24], sizes = [8, 8], strides = [1, 1]} : vector<8x32xf32> to vector<8x8xf32>
    %cst_95 = arith.constant 0.353553385 : f32
    %230 = vector.broadcast %cst_95 : f32 to vector<8x8xf32>
    %231 = arith.mulf %229, %230 : vector<8x8xf32>
    %232 = vector.extract_strided_slice %176 {offsets = [0, 24], sizes = [8, 8], strides = [1, 1]} : vector<8x32xf32> to vector<8x8xf32>
    %233 = vector.extract_strided_slice %177 {offsets = [0, 24], sizes = [8, 8], strides = [1, 1]} : vector<8x32xf32> to vector<8x8xf32>
    %cst_96 = arith.constant dense<0.000000e+00> : vector<8x8xf32>
    %234 = tpu.matmul %231, %232, %cst_96 {dimension_numbers = #tpu.dot_dimension_numbers<[1], [1], [0], [0], [0, 0, 1, 0], [], []>} : vector<8x8xf32>, vector<8x8xf32>, vector<8x8xf32> -> vector<8x8xf32>
    %cst_97 = arith.constant dense<0xFF800000> : vector<8xf32>
    %235 = vector.multi_reduction <maximumf>, %234, %cst_97 [1] : vector<8x8xf32> to vector<8xf32>
    %236 = vector.shape_cast %235 : vector<8xf32> to vector<8x1xf32>
    %237 = vector.broadcast %236 : vector<8x1xf32> to vector<8x8xf32>
    %238 = arith.subf %234, %237 : vector<8x8xf32>
    %239 = math.exp %238 : vector<8x8xf32>
    %cst_98 = arith.constant dense<0.000000e+00> : vector<8xf32>
    %240 = vector.multi_reduction <add>, %239, %cst_98 [1] : vector<8x8xf32> to vector<8xf32>
    %241 = vector.shape_cast %240 : vector<8xf32> to vector<8x1xf32>
    %242 = tpu.reciprocal %241 {approx = true} : vector<8x1xf32> -> vector<8x1xf32>
    %243 = vector.broadcast %242 : vector<8x1xf32> to vector<8x8xf32>
    %244 = arith.mulf %239, %243 : vector<8x8xf32>
    %cst_99 = arith.constant dense<0.000000e+00> : vector<8x8xf32>
    %245 = tpu.matmul %244, %233, %cst_99 {dimension_numbers = #tpu.dot_dimension_numbers<[1], [0], [0], [1], [0, 0, 1, 1], [], []>} : vector<8x8xf32>, vector<8x8xf32>, vector<8x8xf32> -> vector<8x8xf32>
    %246 = tpu.concatenate %194, %211, %228, %245 in 1 : vector<8x8xf32>, vector<8x8xf32>, vector<8x8xf32>, vector<8x8xf32> -> vector<8x32xf32>
    %c1_100 = arith.constant 1 : index
    %c0_101 = arith.constant 0 : index
    %c0_102 = arith.constant 0 : index
    %247 = vector.load %arg4[%c1_100, %c0_101, %c0_102] : memref<2x32x32xf32, #tpu.memory_space<vmem>>, vector<1x32x32xf32>
    %248 = vector.shape_cast %247 : vector<1x32x32xf32> to vector<32x32xf32>
    %cst_103 = arith.constant dense<0.000000e+00> : vector<8x32xf32>
    %249 = tpu.matmul %246, %248, %cst_103 {dimension_numbers = #tpu.dot_dimension_numbers<[1], [0], [0], [1], [0, 0, 1, 1], [], []>} : vector<8x32xf32>, vector<32x32xf32>, vector<8x32xf32> -> vector<8x32xf32>
    %c1_104 = arith.constant 1 : index
    %c0_105 = arith.constant 0 : index
    %c0_106 = arith.constant 0 : index
    %250 = vector.load %arg5[%c1_104, %c0_105, %c0_106] : memref<2x1x32xf32, #tpu.memory_space<vmem>>, vector<1x1x32xf32>
    %251 = vector.shape_cast %250 : vector<1x1x32xf32> to vector<1x32xf32>
    %252 = vector.broadcast %251 : vector<1x32xf32> to vector<8x32xf32>
    %253 = arith.addf %249, %252 : vector<8x32xf32>
    %254 = arith.addf %167, %253 : vector<8x32xf32>
    %c1_107 = arith.constant 1 : index
    %c0_108 = arith.constant 0 : index
    %c0_109 = arith.constant 0 : index
    %255 = vector.load %arg10[%c1_107, %c0_108, %c0_109] : memref<2x1x32xf32, #tpu.memory_space<vmem>>, vector<1x1x32xf32>
    %256 = vector.shape_cast %255 : vector<1x1x32xf32> to vector<1x32xf32>
    %c1_110 = arith.constant 1 : index
    %c0_111 = arith.constant 0 : index
    %c0_112 = arith.constant 0 : index
    %257 = vector.load %arg11[%c1_110, %c0_111, %c0_112] : memref<2x1x32xf32, #tpu.memory_space<vmem>>, vector<1x1x32xf32>
    %258 = vector.shape_cast %257 : vector<1x1x32xf32> to vector<1x32xf32>
    %cst_113 = arith.constant dense<0.000000e+00> : vector<8xf32>
    %259 = vector.multi_reduction <add>, %254, %cst_113 [1] : vector<8x32xf32> to vector<8xf32>
    %260 = vector.shape_cast %259 : vector<8xf32> to vector<8x1xf32>
    %cst_114 = arith.constant 3.200000e+01 : f32
    %261 = vector.broadcast %cst_114 : f32 to vector<8x1xf32>
    %262 = arith.divf %260, %261 : vector<8x1xf32>
    %263 = vector.broadcast %262 : vector<8x1xf32> to vector<8x32xf32>
    %264 = arith.subf %254, %263 : vector<8x32xf32>
    %265 = arith.mulf %264, %264 : vector<8x32xf32>
    %cst_115 = arith.constant dense<0.000000e+00> : vector<8xf32>
    %266 = vector.multi_reduction <add>, %265, %cst_115 [1] : vector<8x32xf32> to vector<8xf32>
    %267 = vector.shape_cast %266 : vector<8xf32> to vector<8x1xf32>
    %cst_116 = arith.constant 3.200000e+01 : f32
    %268 = vector.broadcast %cst_116 : f32 to vector<8x1xf32>
    %269 = arith.divf %267, %268 : vector<8x1xf32>
    %270 = vector.broadcast %262 : vector<8x1xf32> to vector<8x32xf32>
    %271 = arith.subf %254, %270 : vector<8x32xf32>
    %cst_117 = arith.constant 9.99999974E-6 : f32
    %272 = vector.broadcast %cst_117 : f32 to vector<8x1xf32>
    %273 = arith.addf %269, %272 : vector<8x1xf32>
    %274 = math.rsqrt %273 : vector<8x1xf32>
    %275 = vector.broadcast %274 : vector<8x1xf32> to vector<8x32xf32>
    %276 = arith.mulf %271, %275 : vector<8x32xf32>
    %277 = vector.broadcast %256 : vector<1x32xf32> to vector<8x32xf32>
    %278 = arith.mulf %276, %277 : vector<8x32xf32>
    %279 = vector.broadcast %258 : vector<1x32xf32> to vector<8x32xf32>
    %280 = arith.addf %278, %279 : vector<8x32xf32>
    %c1_118 = arith.constant 1 : index
    %c0_119 = arith.constant 0 : index
    %c0_120 = arith.constant 0 : index
    %281 = vector.load %arg6[%c1_118, %c0_119, %c0_120] : memref<2x32x64xf32, #tpu.memory_space<vmem>>, vector<1x32x64xf32>
    %282 = vector.shape_cast %281 : vector<1x32x64xf32> to vector<32x64xf32>
    %cst_121 = arith.constant dense<0.000000e+00> : vector<8x64xf32>
    %283 = tpu.matmul %280, %282, %cst_121 {dimension_numbers = #tpu.dot_dimension_numbers<[1], [0], [0], [1], [0, 0, 1, 1], [], []>} : vector<8x32xf32>, vector<32x64xf32>, vector<8x64xf32> -> vector<8x64xf32>
    %c1_122 = arith.constant 1 : index
    %c0_123 = arith.constant 0 : index
    %c0_124 = arith.constant 0 : index
    %284 = vector.load %arg7[%c1_122, %c0_123, %c0_124] : memref<2x1x64xf32, #tpu.memory_space<vmem>>, vector<1x1x64xf32>
    %285 = vector.shape_cast %284 : vector<1x1x64xf32> to vector<1x64xf32>
    %286 = vector.broadcast %285 : vector<1x64xf32> to vector<8x64xf32>
    %287 = arith.addf %283, %286 : vector<8x64xf32>
    %288 = arith.mulf %287, %287 : vector<8x64xf32>
    %289 = arith.mulf %287, %288 : vector<8x64xf32>
    %cst_125 = arith.constant 4.471500e-02 : f32
    %290 = vector.broadcast %cst_125 : f32 to vector<8x64xf32>
    %291 = arith.mulf %290, %289 : vector<8x64xf32>
    %292 = arith.addf %287, %291 : vector<8x64xf32>
    %cst_126 = arith.constant 0.797884583 : f32
    %293 = vector.broadcast %cst_126 : f32 to vector<8x64xf32>
    %294 = arith.mulf %293, %292 : vector<8x64xf32>
    %295 = math.tanh %294 : vector<8x64xf32>
    %cst_127 = arith.constant 1.000000e+00 : f32
    %296 = vector.broadcast %cst_127 : f32 to vector<8x64xf32>
    %297 = arith.addf %296, %295 : vector<8x64xf32>
    %cst_128 = arith.constant 5.000000e-01 : f32
    %298 = vector.broadcast %cst_128 : f32 to vector<8x64xf32>
    %299 = arith.mulf %298, %297 : vector<8x64xf32>
    %300 = arith.mulf %287, %299 : vector<8x64xf32>
    %c1_129 = arith.constant 1 : index
    %c0_130 = arith.constant 0 : index
    %c0_131 = arith.constant 0 : index
    %301 = vector.load %arg8[%c1_129, %c0_130, %c0_131] : memref<2x64x32xf32, #tpu.memory_space<vmem>>, vector<1x64x32xf32>
    %302 = vector.shape_cast %301 : vector<1x64x32xf32> to vector<64x32xf32>
    %cst_132 = arith.constant dense<0.000000e+00> : vector<8x32xf32>
    %303 = tpu.matmul %300, %302, %cst_132 {dimension_numbers = #tpu.dot_dimension_numbers<[1], [0], [0], [1], [0, 0, 1, 1], [], []>} : vector<8x64xf32>, vector<64x32xf32>, vector<8x32xf32> -> vector<8x32xf32>
    %c1_133 = arith.constant 1 : index
    %c0_134 = arith.constant 0 : index
    %c0_135 = arith.constant 0 : index
    %304 = vector.load %arg9[%c1_133, %c0_134, %c0_135] : memref<2x1x32xf32, #tpu.memory_space<vmem>>, vector<1x1x32xf32>
    %305 = vector.shape_cast %304 : vector<1x1x32xf32> to vector<1x32xf32>
    %306 = vector.broadcast %305 : vector<1x32xf32> to vector<8x32xf32>
    %307 = arith.addf %303, %306 : vector<8x32xf32>
    %308 = arith.addf %280, %307 : vector<8x32xf32>
    %c1_136 = arith.constant 1 : index
    %c0_137 = arith.constant 0 : index
    %c0_138 = arith.constant 0 : index
    %309 = vector.load %arg12[%c1_136, %c0_137, %c0_138] : memref<2x1x32xf32, #tpu.memory_space<vmem>>, vector<1x1x32xf32>
    %310 = vector.shape_cast %309 : vector<1x1x32xf32> to vector<1x32xf32>
    %c1_139 = arith.constant 1 : index
    %c0_140 = arith.constant 0 : index
    %c0_141 = arith.constant 0 : index
    %311 = vector.load %arg13[%c1_139, %c0_140, %c0_141] : memref<2x1x32xf32, #tpu.memory_space<vmem>>, vector<1x1x32xf32>
    %312 = vector.shape_cast %311 : vector<1x1x32xf32> to vector<1x32xf32>
    %cst_142 = arith.constant dense<0.000000e+00> : vector<8xf32>
    %313 = vector.multi_reduction <add>, %308, %cst_142 [1] : vector<8x32xf32> to vector<8xf32>
    %314 = vector.shape_cast %313 : vector<8xf32> to vector<8x1xf32>
    %cst_143 = arith.constant 3.200000e+01 : f32
    %315 = vector.broadcast %cst_143 : f32 to vector<8x1xf32>
    %316 = arith.divf %314, %315 : vector<8x1xf32>
    %317 = vector.broadcast %316 : vector<8x1xf32> to vector<8x32xf32>
    %318 = arith.subf %308, %317 : vector<8x32xf32>
    %319 = arith.mulf %318, %318 : vector<8x32xf32>
    %cst_144 = arith.constant dense<0.000000e+00> : vector<8xf32>
    %320 = vector.multi_reduction <add>, %319, %cst_144 [1] : vector<8x32xf32> to vector<8xf32>
    %321 = vector.shape_cast %320 : vector<8xf32> to vector<8x1xf32>
    %cst_145 = arith.constant 3.200000e+01 : f32
    %322 = vector.broadcast %cst_145 : f32 to vector<8x1xf32>
    %323 = arith.divf %321, %322 : vector<8x1xf32>
    %324 = vector.broadcast %316 : vector<8x1xf32> to vector<8x32xf32>
    %325 = arith.subf %308, %324 : vector<8x32xf32>
    %cst_146 = arith.constant 9.99999996E-13 : f32
    %326 = vector.broadcast %cst_146 : f32 to vector<8x1xf32>
    %327 = arith.addf %323, %326 : vector<8x1xf32>
    %328 = math.rsqrt %327 : vector<8x1xf32>
    %329 = vector.broadcast %328 : vector<8x1xf32> to vector<8x32xf32>
    %330 = arith.mulf %325, %329 : vector<8x32xf32>
    %331 = vector.broadcast %310 : vector<1x32xf32> to vector<8x32xf32>
    %332 = arith.mulf %330, %331 : vector<8x32xf32>
    %333 = vector.broadcast %312 : vector<1x32xf32> to vector<8x32xf32>
    %334 = arith.addf %332, %333 : vector<8x32xf32>
    %c0_147 = arith.constant 0 : index
    %c0_148 = arith.constant 0 : index
    %335 = vector.load %arg14[%c0_147, %c0_148] : memref<32x32xf32, #tpu.memory_space<vmem>>, vector<32x32xf32>
    %cst_149 = arith.constant dense<0.000000e+00> : vector<8x32xf32>
    %336 = tpu.matmul %334, %335, %cst_149 {dimension_numbers = #tpu.dot_dimension_numbers<[1], [0], [0], [1], [0, 0, 1, 1], [], []>} : vector<8x32xf32>, vector<32x32xf32>, vector<8x32xf32> -> vector<8x32xf32>
    %c0_150 = arith.constant 0 : index
    %c0_151 = arith.constant 0 : index
    %337 = vector.load %arg15[%c0_150, %c0_151] : memref<1x32xf32, #tpu.memory_space<vmem>>, vector<1x32xf32>
    %338 = vector.broadcast %337 : vector<1x32xf32> to vector<8x32xf32>
    %339 = arith.addf %336, %338 : vector<8x32xf32>
    %340 = arith.mulf %339, %339 : vector<8x32xf32>
    %341 = arith.mulf %339, %340 : vector<8x32xf32>
    %cst_152 = arith.constant 4.471500e-02 : f32
    %342 = vector.broadcast %cst_152 : f32 to vector<8x32xf32>
    %343 = arith.mulf %342, %341 : vector<8x32xf32>
    %344 = arith.addf %339, %343 : vector<8x32xf32>
    %cst_153 = arith.constant 0.797884583 : f32
    %345 = vector.broadcast %cst_153 : f32 to vector<8x32xf32>
    %346 = arith.mulf %345, %344 : vector<8x32xf32>
    %347 = math.tanh %346 : vector<8x32xf32>
    %cst_154 = arith.constant 1.000000e+00 : f32
    %348 = vector.broadcast %cst_154 : f32 to vector<8x32xf32>
    %349 = arith.addf %348, %347 : vector<8x32xf32>
    %cst_155 = arith.constant 5.000000e-01 : f32
    %350 = vector.broadcast %cst_155 : f32 to vector<8x32xf32>
    %351 = arith.mulf %350, %349 : vector<8x32xf32>
    %352 = arith.mulf %339, %351 : vector<8x32xf32>
    %c0_156 = arith.constant 0 : index
    %c0_157 = arith.constant 0 : index
    %353 = vector.load %arg16[%c0_156, %c0_157] : memref<1x32xf32, #tpu.memory_space<vmem>>, vector<1x32xf32>
    %c0_158 = arith.constant 0 : index
    %c0_159 = arith.constant 0 : index
    %354 = vector.load %arg17[%c0_158, %c0_159] : memref<1x32xf32, #tpu.memory_space<vmem>>, vector<1x32xf32>
    %cst_160 = arith.constant dense<0.000000e+00> : vector<8xf32>
    %355 = vector.multi_reduction <add>, %352, %cst_160 [1] : vector<8x32xf32> to vector<8xf32>
    %356 = vector.shape_cast %355 : vector<8xf32> to vector<8x1xf32>
    %cst_161 = arith.constant 3.200000e+01 : f32
    %357 = vector.broadcast %cst_161 : f32 to vector<8x1xf32>
    %358 = arith.divf %356, %357 : vector<8x1xf32>
    %359 = vector.broadcast %358 : vector<8x1xf32> to vector<8x32xf32>
    %360 = arith.subf %352, %359 : vector<8x32xf32>
    %361 = arith.mulf %360, %360 : vector<8x32xf32>
    %cst_162 = arith.constant dense<0.000000e+00> : vector<8xf32>
    %362 = vector.multi_reduction <add>, %361, %cst_162 [1] : vector<8x32xf32> to vector<8xf32>
    %363 = vector.shape_cast %362 : vector<8xf32> to vector<8x1xf32>
    %cst_163 = arith.constant 3.200000e+01 : f32
    %364 = vector.broadcast %cst_163 : f32 to vector<8x1xf32>
    %365 = arith.divf %363, %364 : vector<8x1xf32>
    %366 = vector.broadcast %358 : vector<8x1xf32> to vector<8x32xf32>
    %367 = arith.subf %352, %366 : vector<8x32xf32>
    %cst_164 = arith.constant 9.99999996E-13 : f32
    %368 = vector.broadcast %cst_164 : f32 to vector<8x1xf32>
    %369 = arith.addf %365, %368 : vector<8x1xf32>
    %370 = math.rsqrt %369 : vector<8x1xf32>
    %371 = vector.broadcast %370 : vector<8x1xf32> to vector<8x32xf32>
    %372 = arith.mulf %367, %371 : vector<8x32xf32>
    %373 = vector.broadcast %353 : vector<1x32xf32> to vector<8x32xf32>
    %374 = arith.mulf %372, %373 : vector<8x32xf32>
    %375 = vector.broadcast %354 : vector<1x32xf32> to vector<8x32xf32>
    %376 = arith.addf %374, %375 : vector<8x32xf32>
    %c0_165 = arith.constant 0 : index
    %c0_166 = arith.constant 0 : index
    %377 = vector.load %arg18[%c0_165, %c0_166] : memref<32x64xf32, #tpu.memory_space<vmem>>, vector<32x64xf32>
    %cst_167 = arith.constant dense<0.000000e+00> : vector<8x64xf32>
    %378 = tpu.matmul %376, %377, %cst_167 {dimension_numbers = #tpu.dot_dimension_numbers<[1], [0], [0], [1], [0, 0, 1, 1], [], []>} : vector<8x32xf32>, vector<32x64xf32>, vector<8x64xf32> -> vector<8x64xf32>
    %c0_168 = arith.constant 0 : index
    %c0_169 = arith.constant 0 : index
    %379 = vector.load %arg19[%c0_168, %c0_169] : memref<1x64xf32, #tpu.memory_space<vmem>>, vector<1x64xf32>
    %380 = vector.broadcast %379 : vector<1x64xf32> to vector<8x64xf32>
    %381 = arith.addf %378, %380 : vector<8x64xf32>
    %c0_170 = arith.constant 0 : index
    %c0_171 = arith.constant 0 : index
    %382 = vector.load %arg20[%c0_170, %c0_171] : memref<8x64xf32, #tpu.memory_space<vmem>>, vector<8x64xf32>
    tpu.vector_store %arg20[%c0_170, %c0_171], %381 {strides = array<i32>} : memref<8x64xf32, #tpu.memory_space<vmem>>, vector<8x64xf32>,
    return
  }
  func.func @transform_0(%arg0: i32) -> (i32, i32) {
    %c0_i32 = arith.constant 0 : i32
    %c0_i32_0 = arith.constant 0 : i32
    return %arg0, %c0_i32 : i32, i32
  }
  func.func @transform_1(%arg0: i32) -> (i32, i32, i32) {
    %c0_i32 = arith.constant 0 : i32
    %c0_i32_0 = arith.constant 0 : i32
    %c0_i32_1 = arith.constant 0 : i32
    %c0_i32_2 = arith.constant 0 : i32
    return %c0_i32, %c0_i32_0, %c0_i32_1 : i32, i32, i32
  }
  func.func @transform_2(%arg0: i32) -> (i32, i32, i32) {
    %c0_i32 = arith.constant 0 : i32
    %c0_i32_0 = arith.constant 0 : i32
    %c0_i32_1 = arith.constant 0 : i32
    %c0_i32_2 = arith.constant 0 : i32
    return %c0_i32, %c0_i32_0, %c0_i32_1 : i32, i32, i32
  }
  func.func @transform_3(%arg0: i32) -> (i32, i32, i32) {
    %c0_i32 = arith.constant 0 : i32
    %c0_i32_0 = arith.constant 0 : i32
    %c0_i32_1 = arith.constant 0 : i32
    %c0_i32_2 = arith.constant 0 : i32
    return %c0_i32, %c0_i32_0, %c0_i32_1 : i32, i32, i32
  }
  func.func @transform_4(%arg0: i32) -> (i32, i32, i32) {
    %c0_i32 = arith.constant 0 : i32
    %c0_i32_0 = arith.constant 0 : i32
    %c0_i32_1 = arith.constant 0 : i32
    %c0_i32_2 = arith.constant 0 : i32
    return %c0_i32, %c0_i32_0, %c0_i32_1 : i32, i32, i32
  }
  func.func @transform_5(%arg0: i32) -> (i32, i32, i32) {
    %c0_i32 = arith.constant 0 : i32
    %c0_i32_0 = arith.constant 0 : i32
    %c0_i32_1 = arith.constant 0 : i32
    %c0_i32_2 = arith.constant 0 : i32
    return %c0_i32, %c0_i32_0, %c0_i32_1 : i32, i32, i32
  }
  func.func @transform_6(%arg0: i32) -> (i32, i32, i32) {
    %c0_i32 = arith.constant 0 : i32
    %c0_i32_0 = arith.constant 0 : i32
    %c0_i32_1 = arith.constant 0 : i32
    %c0_i32_2 = arith.constant 0 : i32
    return %c0_i32, %c0_i32_0, %c0_i32_1 : i32, i32, i32
  }
  func.func @transform_7(%arg0: i32) -> (i32, i32, i32) {
    %c0_i32 = arith.constant 0 : i32
    %c0_i32_0 = arith.constant 0 : i32
    %c0_i32_1 = arith.constant 0 : i32
    %c0_i32_2 = arith.constant 0 : i32
    return %c0_i32, %c0_i32_0, %c0_i32_1 : i32, i32, i32
  }
  func.func @transform_8(%arg0: i32) -> (i32, i32, i32) {
    %c0_i32 = arith.constant 0 : i32
    %c0_i32_0 = arith.constant 0 : i32
    %c0_i32_1 = arith.constant 0 : i32
    %c0_i32_2 = arith.constant 0 : i32
    return %c0_i32, %c0_i32_0, %c0_i32_1 : i32, i32, i32
  }
  func.func @transform_9(%arg0: i32) -> (i32, i32, i32) {
    %c0_i32 = arith.constant 0 : i32
    %c0_i32_0 = arith.constant 0 : i32
    %c0_i32_1 = arith.constant 0 : i32
    %c0_i32_2 = arith.constant 0 : i32
    return %c0_i32, %c0_i32_0, %c0_i32_1 : i32, i32, i32
  }
  func.func @transform_10(%arg0: i32) -> (i32, i32, i32) {
    %c0_i32 = arith.constant 0 : i32
    %c0_i32_0 = arith.constant 0 : i32
    %c0_i32_1 = arith.constant 0 : i32
    %c0_i32_2 = arith.constant 0 : i32
    return %c0_i32, %c0_i32_0, %c0_i32_1 : i32, i32, i32
  }
  func.func @transform_11(%arg0: i32) -> (i32, i32, i32) {
    %c0_i32 = arith.constant 0 : i32
    %c0_i32_0 = arith.constant 0 : i32
    %c0_i32_1 = arith.constant 0 : i32
    %c0_i32_2 = arith.constant 0 : i32
    return %c0_i32, %c0_i32_0, %c0_i32_1 : i32, i32, i32
  }
  func.func @transform_12(%arg0: i32) -> (i32, i32, i32) {
    %c0_i32 = arith.constant 0 : i32
    %c0_i32_0 = arith.constant 0 : i32
    %c0_i32_1 = arith.constant 0 : i32
    %c0_i32_2 = arith.constant 0 : i32
    return %c0_i32, %c0_i32_0, %c0_i32_1 : i32, i32, i32
  }
  func.func @transform_13(%arg0: i32) -> (i32, i32) {
    %c0_i32 = arith.constant 0 : i32
    %c0_i32_0 = arith.constant 0 : i32
    %c0_i32_1 = arith.constant 0 : i32
    return %c0_i32, %c0_i32_0 : i32, i32
  }
  func.func @transform_14(%arg0: i32) -> (i32, i32) {
    %c0_i32 = arith.constant 0 : i32
    %c0_i32_0 = arith.constant 0 : i32
    %c0_i32_1 = arith.constant 0 : i32
    return %c0_i32, %c0_i32_0 : i32, i32
  }
  func.func @transform_15(%arg0: i32) -> (i32, i32) {
    %c0_i32 = arith.constant 0 : i32
    %c0_i32_0 = arith.constant 0 : i32
    %c0_i32_1 = arith.constant 0 : i32
    return %c0_i32, %c0_i32_0 : i32, i32
  }
  func.func @transform_16(%arg0: i32) -> (i32, i32) {
    %c0_i32 = arith.constant 0 : i32
    %c0_i32_0 = arith.constant 0 : i32
    %c0_i32_1 = arith.constant 0 : i32
    return %c0_i32, %c0_i32_0 : i32, i32
  }
  func.func @transform_17(%arg0: i32) -> (i32, i32) {
    %c0_i32 = arith.constant 0 : i32
    %c0_i32_0 = arith.constant 0 : i32
    %c0_i32_1 = arith.constant 0 : i32
    return %c0_i32, %c0_i32_0 : i32, i32
  }
  func.func @transform_18(%arg0: i32) -> (i32, i32) {
    %c0_i32 = arith.constant 0 : i32
    %c0_i32_0 = arith.constant 0 : i32
    %c0_i32_1 = arith.constant 0 : i32
    return %c0_i32, %c0_i32_0 : i32, i32
  }
  func.func @transform_19(%arg0: i32) -> (i32, i32) {
    %c0_i32 = arith.constant 0 : i32
    %c0_i32_0 = arith.constant 0 : i32
    return %arg0, %c0_i32 : i32, i32
  }
}

</mosaic_0001>

<llo_original>
// kernel: longformer_mlm_forward.1
$region0: #{longformer_mlm_forward.1}
  #allocation0 [shape = 'u32[]', space=smem, size = 0x4, offset = 0x4, fixed_abs, tag = 'smem constant byte address 0x4 - core index']
  #allocation1 [shape = 'u32[144,128]{1,0:T(1,128)}', space=vmem, size = 0x12000, scoped, tag = 'internal scratch']
  %s0 = inlined_call_operand.vmem [shape: f32[16,32], index: 0, kind: input, shape index: {}]
  %s1 = inlined_call_operand.vmem [shape: f32[2,32,96], index: 1, kind: input, shape index: {}]
  %s2 = inlined_call_operand.vmem [shape: f32[2,1,96], index: 2, kind: input, shape index: {}]
  %s3 = inlined_call_operand.vmem [shape: f32[2,32,32], index: 3, kind: input, shape index: {}]
  %s4 = inlined_call_operand.vmem [shape: f32[2,1,32], index: 4, kind: input, shape index: {}]
  %s5 = inlined_call_operand.vmem [shape: f32[2,32,64], index: 5, kind: input, shape index: {}]
  %s6 = inlined_call_operand.vmem [shape: f32[2,1,64], index: 6, kind: input, shape index: {}]
  %s7 = inlined_call_operand.vmem [shape: f32[2,64,32], index: 7, kind: input, shape index: {}]
  %s8 = inlined_call_operand.vmem [shape: f32[2,1,32], index: 8, kind: input, shape index: {}]
  %s9 = inlined_call_operand.vmem [shape: f32[2,1,32], index: 9, kind: input, shape index: {}]
  %s10 = inlined_call_operand.vmem [shape: f32[2,1,32], index: 10, kind: input, shape index: {}]
  %s11 = inlined_call_operand.vmem [shape: f32[2,1,32], index: 11, kind: input, shape index: {}]
  %s12 = inlined_call_operand.vmem [shape: f32[2,1,32], index: 12, kind: input, shape index: {}]
  %s13 = inlined_call_operand.vmem [shape: f32[32,32], index: 13, kind: input, shape index: {}]
  %s14 = inlined_call_operand.vmem [shape: f32[1,32], index: 14, kind: input, shape index: {}]
  %s15 = inlined_call_operand.vmem [shape: f32[1,32], index: 15, kind: input, shape index: {}]
  %s16 = inlined_call_operand.vmem [shape: f32[1,32], index: 16, kind: input, shape index: {}]
  %s17 = inlined_call_operand.vmem [shape: f32[32,64], index: 17, kind: input, shape index: {}]
  %s18 = inlined_call_operand.vmem [shape: f32[1,64], index: 18, kind: input, shape index: {}]
  %s19 = inlined_call_operand.hbm [shape: f32[16,64], index: 19, kind: output, shape index: {}]
  %s20 = sld [smem:[#allocation0]]
  $region109: #{longformer_mlm_forward.1} parent=0
    _
  %s22 = ssub.s32 1, %s20
  %s23 = scalar_select 0, %s22, %s20
  $region1: #{longformer_mlm_forward.1} parent=0
    #allocation2 [shape = 'u8[8192]{0}', space=vmem, size = 0x2000, scoped, tag = 'output window, operand 0']
    #allocation3 [shape = 's32[2]{0}', space=sflag, size = 0x8, scoped, tag = 'scoped memory for longformer_mlm_forward.1']
    %24 = vsyncpa [#allocation3], 0
    %s25 = scalar_lea.sflag [#allocation3], 1
    %26 = vsyncpa %s25, 0
    loop: start=0, step=1, limit=4
    $region2: #{longformer_mlm_forward.1} parent=1 // loop_pre_header
      _
    $region3: #{longformer_mlm_forward.1} parent=1 // loop_header
      %s28 = sphi 0, %s32
      %p29 = scmp.ge.s32.totalorder %s28, 4
      %s38 = sphi 0, %s40
      %s41 = sphi 0, %s38
      %s42 = sphi 0, %s41
      %s58 = sphi 0, %s42
      %s62 = sphi 0, %s62
      %s64 = sphi 0, %s62
      %s65 = sphi 0, %s64
      %s79 = sphi 0, %s65
      %s83 = sphi 0, %s83
      %s85 = sphi 0, %s83
      %s86 = sphi 0, %s85
      %s100 = sphi 0, %s86
      %s104 = sphi 0, %s104
      %s106 = sphi 0, %s104
      %s107 = sphi 0, %s106
      %s121 = sphi 0, %s107
      %s125 = sphi 0, %s125
      %s127 = sphi 0, %s125
      %s128 = sphi 0, %s127
      %s142 = sphi 0, %s128
      %s146 = sphi 0, %s146
      %s148 = sphi 0, %s146
      %s149 = sphi 0, %s148
      %s163 = sphi 0, %s149
      %s167 = sphi 0, %s167
      %s169 = sphi 0, %s167
      %s170 = sphi 0, %s169
      %s184 = sphi 0, %s170
      %s188 = sphi 0, %s188
      %s190 = sphi 0, %s188
      %s191 = sphi 0, %s190
      %s205 = sphi 0, %s191
      %s209 = sphi 0, %s209
      %s211 = sphi 0, %s209
      %s212 = sphi 0, %s211
      %s226 = sphi 0, %s212
      %s230 = sphi 0, %s230
      %s232 = sphi 0, %s230
      %s233 = sphi 0, %s232
      %s247 = sphi 0, %s233
      %s251 = sphi 0, %s251
      %s253 = sphi 0, %s251
      %s254 = sphi 0, %s253
      %s268 = sphi 0, %s254
      %s272 = sphi 0, %s272
      %s274 = sphi 0, %s272
      %s275 = sphi 0, %s274
      %s289 = sphi 0, %s275
      %s293 = sphi 0, %s293
      %s295 = sphi 0, %s293
      %s296 = sphi 0, %s295
      %s310 = sphi 0, %s296
      %s314 = sphi 0, %s314
      %s316 = sphi 0, %s314
      %s317 = sphi 0, %s316
      %s331 = sphi 0, %s317
      %s335 = sphi 0, %s335
      %s337 = sphi 0, %s335
      %s338 = sphi 0, %s337
      %s352 = sphi 0, %s338
      %s356 = sphi 0, %s356
      %s358 = sphi 0, %s356
      %s359 = sphi 0, %s358
      %s373 = sphi 0, %s359
      %s377 = sphi 0, %s377
      %s379 = sphi 0, %s377
      %s380 = sphi 0, %s379
      %s394 = sphi 0, %s380
      %s398 = sphi 0, %s398
      %s400 = sphi 0, %s398
      %s401 = sphi 0, %s400
      %s415 = sphi 0, %s401
      %s419 = sphi 0, %s419
      %s421 = sphi 0, %s419
      %s422 = sphi 0, %s421
      %s436 = sphi 0, %s422
      %s442 = sphi 0, %s444
      %s445 = sphi 0, %s442
      %s446 = sphi 0, %s445
      %s462 = sphi 0, %s446
    $region4: #{longformer_mlm_forward.1} parent=1 // loop_header_branch
      %31 = sbr.rel (%p29) target = $region8
    $region5: #{longformer_mlm_forward.1} parent=1 // loop_body
      %s33 = ssub.s32 %s28, 1
      %s34 = ssub.s32 %s28, 2
      %s35 = sadd.s32 %s28, 1
      %s36 = ssub.s32 %s28, %s35
      %p37 = scmp.eq.s32.totalorder %s36, 0
      %s39 = sadd.s32 %s38, 1
      %s40 = scalar_select %p37, %s38, %s39
      %p43 = pneg %p37
      %p44 = scmp.eq.s32.totalorder %s28, 1
      %p45 = por %p43, %p44
      %p46 = scmp.ne.s32.totalorder %s38, %s41
      %p47 = scmp.eq.s32.totalorder %s28, 0
      %p48 = por %p46, %p47
      %p49 = scmp.ne.s32.totalorder %s38, %s41
      %p50 = scmp.eq.s32.totalorder %s33, 1
      %p51 = por %p49, %p50
      %p52 = scmp.ne.s32.totalorder %s41, %s42
      %p53 = scmp.eq.s32.totalorder %s33, 0
      %p54 = por %p52, %p53
      %p55 = scmp.ne.s32.totalorder %s41, %s42
      %p56 = scmp.eq.s32.totalorder %s34, 1
      %p57 = por %p55, %p56
      %p59 = scmp.ne.s32.totalorder %s42, %s58
      %p60 = scmp.eq.s32.totalorder %s34, 0
      %p61 = por %p59, %p60
      %s63 = sadd.s32 %s62, 1
      %p66 = scmp.eq.s32.totalorder %s28, 1
      %p67 = scmp.ne.s32.totalorder %s62, %s64
      %p68 = scmp.eq.s32.totalorder %s28, 0
      %p69 = por %p67, %p68
      %p70 = scmp.ne.s32.totalorder %s62, %s64
      %p71 = scmp.eq.s32.totalorder %s33, 1
      %p72 = por %p70, %p71
      %p73 = scmp.ne.s32.totalorder %s64, %s65
      %p74 = scmp.eq.s32.totalorder %s33, 0
      %p75 = por %p73, %p74
      %p76 = scmp.ne.s32.totalorder %s64, %s65
      %p77 = scmp.eq.s32.totalorder %s34, 1
      %p78 = por %p76, %p77
      %p80 = scmp.ne.s32.totalorder %s65, %s79
      %p81 = scmp.eq.s32.totalorder %s34, 0
      %p82 = por %p80, %p81
      %s84 = sadd.s32 %s83, 1
      %p87 = scmp.eq.s32.totalorder %s28, 1
      %p88 = scmp.ne.s32.totalorder %s83, %s85
      %p89 = scmp.eq.s32.totalorder %s28, 0
      %p90 = por %p88, %p89
      %p91 = scmp.ne.s32.totalorder %s83, %s85
      %p92 = scmp.eq.s32.totalorder %s33, 1
      %p93 = por %p91, %p92
      %p94 = scmp.ne.s32.totalorder %s85, %s86
      %p95 = scmp.eq.s32.totalorder %s33, 0
      %p96 = por %p94, %p95
      %p97 = scmp.ne.s32.totalorder %s85, %s86
      %p98 = scmp.eq.s32.totalorder %s34, 1
      %p99 = por %p97, %p98
      %p101 = scmp.ne.s32.totalorder %s86, %s100
      %p102 = scmp.eq.s32.totalorder %s34, 0
      %p103 = por %p101, %p102
      %s105 = sadd.s32 %s104, 1
      %p108 = scmp.eq.s32.totalorder %s28, 1
      %p109 = scmp.ne.s32.totalorder %s104, %s106
      %p110 = scmp.eq.s32.totalorder %s28, 0
      %p111 = por %p109, %p110
      %p112 = scmp.ne.s32.totalorder %s104, %s106
      %p113 = scmp.eq.s32.totalorder %s33, 1
      %p114 = por %p112, %p113
      %p115 = scmp.ne.s32.totalorder %s106, %s107
      %p116 = scmp.eq.s32.totalorder %s33, 0
      %p117 = por %p115, %p116
      %p118 = scmp.ne.s32.totalorder %s106, %s107
      %p119 = scmp.eq.s32.totalorder %s34, 1
      %p120 = por %p118, %p119
      %p122 = scmp.ne.s32.totalorder %s107, %s121
      %p123 = scmp.eq.s32.totalorder %s34, 0
      %p124 = por %p122, %p123
      %s126 = sadd.s32 %s125, 1
      %p129 = scmp.eq.s32.totalorder %s28, 1
      %p130 = scmp.ne.s32.totalorder %s125, %s127
      %p131 = scmp.eq.s32.totalorder %s28, 0
      %p132 = por %p130, %p131
      %p133 = scmp.ne.s32.totalorder %s125, %s127
      %p134 = scmp.eq.s32.totalorder %s33, 1
      %p135 = por %p133, %p134
      %p136 = scmp.ne.s32.totalorder %s127, %s128
      %p137 = scmp.eq.s32.totalorder %s33, 0
      %p138 = por %p136, %p137
      %p139 = scmp.ne.s32.totalorder %s127, %s128
      %p140 = scmp.eq.s32.totalorder %s34, 1
      %p141 = por %p139, %p140
      %p143 = scmp.ne.s32.totalorder %s128, %s142
      %p144 = scmp.eq.s32.totalorder %s34, 0
      %p145 = por %p143, %p144
      %s147 = sadd.s32 %s146, 1
      %p150 = scmp.eq.s32.totalorder %s28, 1
      %p151 = scmp.ne.s32.totalorder %s146, %s148
      %p152 = scmp.eq.s32.totalorder %s28, 0
      %p153 = por %p151, %p152
      %p154 = scmp.ne.s32.totalorder %s146, %s148
      %p155 = scmp.eq.s32.totalorder %s33, 1
      %p156 = por %p154, %p155
      %p157 = scmp.ne.s32.totalorder %s148, %s149
      %p158 = scmp.eq.s32.totalorder %s33, 0
      %p159 = por %p157, %p158
      %p160 = scmp.ne.s32.totalorder %s148, %s149
      %p161 = scmp.eq.s32.totalorder %s34, 1
      %p162 = por %p160, %p161
      %p164 = scmp.ne.s32.totalorder %s149, %s163
      %p165 = scmp.eq.s32.totalorder %s34, 0
      %p166 = por %p164, %p165
      %s168 = sadd.s32 %s167, 1
      %p171 = scmp.eq.s32.totalorder %s28, 1
      %p172 = scmp.ne.s32.totalorder %s167, %s169
      %p173 = scmp.eq.s32.totalorder %s28, 0
      %p174 = por %p172, %p173
      %p175 = scmp.ne.s32.totalorder %s167, %s169
      %p176 = scmp.eq.s32.totalorder %s33, 1
      %p177 = por %p175, %p176
      %p178 = scmp.ne.s32.totalorder %s169, %s170
      %p179 = scmp.eq.s32.totalorder %s33, 0
      %p180 = por %p178, %p179
      %p181 = scmp.ne.s32.totalorder %s169, %s170
      %p182 = scmp.eq.s32.totalorder %s34, 1
      %p183 = por %p181, %p182
      %p185 = scmp.ne.s32.totalorder %s170, %s184
      %p186 = scmp.eq.s32.totalorder %s34, 0
      %p187 = por %p185, %p186
      %s189 = sadd.s32 %s188, 1
      %p192 = scmp.eq.s32.totalorder %s28, 1
      %p193 = scmp.ne.s32.totalorder %s188, %s190
      %p194 = scmp.eq.s32.totalorder %s28, 0
      %p195 = por %p193, %p194
      %p196 = scmp.ne.s32.totalorder %s188, %s190
      %p197 = scmp.eq.s32.totalorder %s33, 1
      %p198 = por %p196, %p197
      %p199 = scmp.ne.s32.totalorder %s190, %s191
      %p200 = scmp.eq.s32.totalorder %s33, 0
      %p201 = por %p199, %p200
      %p202 = scmp.ne.s32.totalorder %s190, %s191
      %p203 = scmp.eq.s32.totalorder %s34, 1
      %p204 = por %p202, %p203
      %p206 = scmp.ne.s32.totalorder %s191, %s205
      %p207 = scmp.eq.s32.totalorder %s34, 0
      %p208 = por %p206, %p207
      %s210 = sadd.s32 %s209, 1
      %p213 = scmp.eq.s32.totalorder %s28, 1
      %p214 = scmp.ne.s32.totalorder %s209, %s211
      %p215 = scmp.eq.s32.totalorder %s28, 0
      %p216 = por %p214, %p215
      %p217 = scmp.ne.s32.totalorder %s209, %s211
      %p218 = scmp.eq.s32.totalorder %s33, 1
      %p219 = por %p217, %p218
      %p220 = scmp.ne.s32.totalorder %s211, %s212
      %p221 = scmp.eq.s32.totalorder %s33, 0
      %p222 = por %p220, %p221
      %p223 = scmp.ne.s32.totalorder %s211, %s212
      %p224 = scmp.eq.s32.totalorder %s34, 1
      %p225 = por %p223, %p224
      %p227 = scmp.ne.s32.totalorder %s212, %s226
      %p228 = scmp.eq.s32.totalorder %s34, 0
      %p229 = por %p227, %p228
      %s231 = sadd.s32 %s230, 1
      %p234 = scmp.eq.s32.totalorder %s28, 1
      %p235 = scmp.ne.s32.totalorder %s230, %s232
      %p236 = scmp.eq.s32.totalorder %s28, 0
      %p237 = por %p235, %p236
      %p238 = scmp.ne.s32.totalorder %s230, %s232
      %p239 = scmp.eq.s32.totalorder %s33, 1
      %p240 = por %p238, %p239
      %p241 = scmp.ne.s32.totalorder %s232, %s233
      %p242 = scmp.eq.s32.totalorder %s33, 0
      %p243 = por %p241, %p242
      %p244 = scmp.ne.s32.totalorder %s232, %s233
      %p245 = scmp.eq.s32.totalorder %s34, 1
      %p246 = por %p244, %p245
      %p248 = scmp.ne.s32.totalorder %s233, %s247
      %p249 = scmp.eq.s32.totalorder %s34, 0
      %p250 = por %p248, %p249
      %s252 = sadd.s32 %s251, 1
      %p255 = scmp.eq.s32.totalorder %s28, 1
      %p256 = scmp.ne.s32.totalorder %s251, %s253
      %p257 = scmp.eq.s32.totalorder %s28, 0
      %p258 = por %p256, %p257
      %p259 = scmp.ne.s32.totalorder %s251, %s253
      %p260 = scmp.eq.s32.totalorder %s33, 1
      %p261 = por %p259, %p260
      %p262 = scmp.ne.s32.totalorder %s253, %s254
      %p263 = scmp.eq.s32.totalorder %s33, 0
      %p264 = por %p262, %p263
      %p265 = scmp.ne.s32.totalorder %s253, %s254
      %p266 = scmp.eq.s32.totalorder %s34, 1
      %p267 = por %p265, %p266
      %p269 = scmp.ne.s32.totalorder %s254, %s268
      %p270 = scmp.eq.s32.totalorder %s34, 0
      %p271 = por %p269, %p270
      %s273 = sadd.s32 %s272, 1
      %p276 = scmp.eq.s32.totalorder %s28, 1
      %p277 = scmp.ne.s32.totalorder %s272, %s274
      %p278 = scmp.eq.s32.totalorder %s28, 0
      %p279 = por %p277, %p278
      %p280 = scmp.ne.s32.totalorder %s272, %s274
      %p281 = scmp.eq.s32.totalorder %s33, 1
      %p282 = por %p280, %p281
      %p283 = scmp.ne.s32.totalorder %s274, %s275
      %p284 = scmp.eq.s32.totalorder %s33, 0
      %p285 = por %p283, %p284
      %p286 = scmp.ne.s32.totalorder %s274, %s275
      %p287 = scmp.eq.s32.totalorder %s34, 1
      %p288 = por %p286, %p287
      %p290 = scmp.ne.s32.totalorder %s275, %s289
      %p291 = scmp.eq.s32.totalorder %s34, 0
      %p292 = por %p290, %p291
      %s294 = sadd.s32 %s293, 1
      %p297 = scmp.eq.s32.totalorder %s28, 1
      %p298 = scmp.ne.s32.totalorder %s293, %s295
      %p299 = scmp.eq.s32.totalorder %s28, 0
      %p300 = por %p298, %p299
      %p301 = scmp.ne.s32.totalorder %s293, %s295
      %p302 = scmp.eq.s32.totalorder %s33, 1
      %p303 = por %p301, %p302
      %p304 = scmp.ne.s32.totalorder %s295, %s296
      %p305 = scmp.eq.s32.totalorder %s33, 0
      %p306 = por %p304, %p305
      %p307 = scmp.ne.s32.totalorder %s295, %s296
      %p308 = scmp.eq.s32.totalorder %s34, 1
      %p309 = por %p307, %p308
      %p311 = scmp.ne.s32.totalorder %s296, %s310
      %p312 = scmp.eq.s32.totalorder %s34, 0
      %p313 = por %p311, %p312
      %s315 = sadd.s32 %s314, 1
      %p318 = scmp.eq.s32.totalorder %s28, 1
      %p319 = scmp.ne.s32.totalorder %s314, %s316
      %p320 = scmp.eq.s32.totalorder %s28, 0
      %p321 = por %p319, %p320
      %p322 = scmp.ne.s32.totalorder %s314, %s316
      %p323 = scmp.eq.s32.totalorder %s33, 1
      %p324 = por %p322, %p323
      %p325 = scmp.ne.s32.totalorder %s316, %s317
      %p326 = scmp.eq.s32.totalorder %s33, 0
      %p327 = por %p325, %p326
      %p328 = scmp.ne.s32.totalorder %s316, %s317
      %p329 = scmp.eq.s32.totalorder %s34, 1
      %p330 = por %p328, %p329
      %p332 = scmp.ne.s32.totalorder %s317, %s331
      %p333 = scmp.eq.s32.totalorder %s34, 0
      %p334 = por %p332, %p333
      %s336 = sadd.s32 %s335, 1
      %p339 = scmp.eq.s32.totalorder %s28, 1
      %p340 = scmp.ne.s32.totalorder %s335, %s337
      %p341 = scmp.eq.s32.totalorder %s28, 0
      %p342 = por %p340, %p341
      %p343 = scmp.ne.s32.totalorder %s335, %s337
      %p344 = scmp.eq.s32.totalorder %s33, 1
      %p345 = por %p343, %p344
      %p346 = scmp.ne.s32.totalorder %s337, %s338
      %p347 = scmp.eq.s32.totalorder %s33, 0
      %p348 = por %p346, %p347
      %p349 = scmp.ne.s32.totalorder %s337, %s338
      %p350 = scmp.eq.s32.totalorder %s34, 1
      %p351 = por %p349, %p350
      %p353 = scmp.ne.s32.totalorder %s338, %s352
      %p354 = scmp.eq.s32.totalorder %s34, 0
      %p355 = por %p353, %p354
      %s357 = sadd.s32 %s356, 1
      %p360 = scmp.eq.s32.totalorder %s28, 1
      %p361 = scmp.ne.s32.totalorder %s356, %s358
      %p362 = scmp.eq.s32.totalorder %s28, 0
      %p363 = por %p361, %p362
      %p364 = scmp.ne.s32.totalorder %s356, %s358
      %p365 = scmp.eq.s32.totalorder %s33, 1
      %p366 = por %p364, %p365
      %p367 = scmp.ne.s32.totalorder %s358, %s359
      %p368 = scmp.eq.s32.totalorder %s33, 0
      %p369 = por %p367, %p368
      %p370 = scmp.ne.s32.totalorder %s358, %s359
      %p371 = scmp.eq.s32.totalorder %s34, 1
      %p372 = por %p370, %p371
      %p374 = scmp.ne.s32.totalorder %s359, %s373
      %p375 = scmp.eq.s32.totalorder %s34, 0
      %p376 = por %p374, %p375
      %s378 = sadd.s32 %s377, 1
      %p381 = scmp.eq.s32.totalorder %s28, 1
      %p382 = scmp.ne.s32.totalorder %s377, %s379
      %p383 = scmp.eq.s32.totalorder %s28, 0
      %p384 = por %p382, %p383
      %p385 = scmp.ne.s32.totalorder %s377, %s379
      %p386 = scmp.eq.s32.totalorder %s33, 1
      %p387 = por %p385, %p386
      %p388 = scmp.ne.s32.totalorder %s379, %s380
      %p389 = scmp.eq.s32.totalorder %s33, 0
      %p390 = por %p388, %p389
      %p391 = scmp.ne.s32.totalorder %s379, %s380
      %p392 = scmp.eq.s32.totalorder %s34, 1
      %p393 = por %p391, %p392
      %p395 = scmp.ne.s32.totalorder %s380, %s394
      %p396 = scmp.eq.s32.totalorder %s34, 0
      %p397 = por %p395, %p396
      %s399 = sadd.s32 %s398, 1
      %p402 = scmp.eq.s32.totalorder %s28, 1
      %p403 = scmp.ne.s32.totalorder %s398, %s400
      %p404 = scmp.eq.s32.totalorder %s28, 0
      %p405 = por %p403, %p404
      %p406 = scmp.ne.s32.totalorder %s398, %s400
      %p407 = scmp.eq.s32.totalorder %s33, 1
      %p408 = por %p406, %p407
      %p409 = scmp.ne.s32.totalorder %s400, %s401
      %p410 = scmp.eq.s32.totalorder %s33, 0
      %p411 = por %p409, %p410
      %p412 = scmp.ne.s32.totalorder %s400, %s401
      %p413 = scmp.eq.s32.totalorder %s34, 1
      %p414 = por %p412, %p413
      %p416 = scmp.ne.s32.totalorder %s401, %s415
      %p417 = scmp.eq.s32.totalorder %s34, 0
      %p418 = por %p416, %p417
      %s420 = sadd.s32 %s419, 1
      %p423 = scmp.eq.s32.totalorder %s28, 1
      %p424 = scmp.ne.s32.totalorder %s419, %s421
      %p425 = scmp.eq.s32.totalorder %s28, 0
      %p426 = por %p424, %p425
      %p427 = scmp.ne.s32.totalorder %s419, %s421
      %p428 = scmp.eq.s32.totalorder %s33, 1
      %p429 = por %p427, %p428
      %p430 = scmp.ne.s32.totalorder %s421, %s422
      %p431 = scmp.eq.s32.totalorder %s33, 0
      %p432 = por %p430, %p431
      %p433 = scmp.ne.s32.totalorder %s421, %s422
      %p434 = scmp.eq.s32.totalorder %s34, 1
      %p435 = por %p433, %p434
      %p437 = scmp.ne.s32.totalorder %s422, %s436
      %p438 = scmp.eq.s32.totalorder %s34, 0
      %p439 = por %p437, %p438
      %s440 = ssub.s32 %s28, %s35
      %p441 = scmp.eq.s32.totalorder %s440, 0
      %s443 = sadd.s32 %s442, 1
      %s444 = scalar_select %p441, %s442, %s443
      %p447 = pneg %p441
      %p448 = scmp.eq.s32.totalorder %s28, 1
      %p449 = por %p447, %p448
      %p450 = scmp.ne.s32.totalorder %s442, %s445
      %p451 = scmp.eq.s32.totalorder %s28, 0
      %p452 = por %p450, %p451
      %p453 = scmp.ne.s32.totalorder %s442, %s445
      %p454 = scmp.eq.s32.totalorder %s33, 1
      %p455 = por %p453, %p454
      %p456 = scmp.ne.s32.totalorder %s445, %s446
      %p457 = scmp.eq.s32.totalorder %s33, 0
      %p458 = por %p456, %p457
      %p459 = scmp.ne.s32.totalorder %s445, %s446
      %p460 = scmp.eq.s32.totalorder %s34, 1
      %p461 = por %p459, %p460
      %p463 = scmp.ne.s32.totalorder %s446, %s462
      %p464 = scmp.eq.s32.totalorder %s34, 0
      %p465 = por %p463, %p464
      %p466 = scmp.le.s32.totalorder 1, %s28
      %p467 = scmp.lt.s32.totalorder %s28, 3
      %p468 = pnand %p466, %p467
      %p469 = pneg %p468
      // Predicated region
      $region9: #{longformer_mlm_forward.1} parent=5 // pred_check
        _
      $region10: #{longformer_mlm_forward.1} parent=5 // pred_check_branch
        %471 = sbr.rel (%p468) target = $region12
      $region11: #{longformer_mlm_forward.1} parent=5 // pred_region
        %s472 = ssub.s32 %s28, 1
        // Predicated region
        $region13: #{longformer_mlm_forward.1} parent=11 // pred_check
          %p473 = pneg %p75
        $region14: #{longformer_mlm_forward.1} parent=11 // pred_check_branch
          %475 = sbr.rel (%p473) target = $region16
        $region15: #{longformer_mlm_forward.1} parent=11 // pred_region
          _
        $region16: #{longformer_mlm_forward.1} parent=11 // pred_fallthru
          _
        // Predicated region
        $region17: #{longformer_mlm_forward.1} parent=11 // pred_check
          %p476 = pneg %p96
        $region18: #{longformer_mlm_forward.1} parent=11 // pred_check_branch
          %478 = sbr.rel (%p476) target = $region20
        $region19: #{longformer_mlm_forward.1} parent=11 // pred_region
          _
        $region20: #{longformer_mlm_forward.1} parent=11 // pred_fallthru
          _
        // Predicated region
        $region21: #{longformer_mlm_forward.1} parent=11 // pred_check
          %p479 = pneg %p117
        $region22: #{longformer_mlm_forward.1} parent=11 // pred_check_branch
          %481 = sbr.rel (%p479) target = $region24
        $region23: #{longformer_mlm_forward.1} parent=11 // pred_region
          _
        $region24: #{longformer_mlm_forward.1} parent=11 // pred_fallthru
          _
        // Predicated region
        $region25: #{longformer_mlm_forward.1} parent=11 // pred_check
          %p482 = pneg %p138
        $region26: #{longformer_mlm_forward.1} parent=11 // pred_check_branch
          %484 = sbr.rel (%p482) target = $region28
        $region27: #{longformer_mlm_forward.1} parent=11 // pred_region
          _
        $region28: #{longformer_mlm_forward.1} parent=11 // pred_fallthru
          _
        // Predicated region
        $region29: #{longformer_mlm_forward.1} parent=11 // pred_check
          %p485 = pneg %p159
        $region30: #{longformer_mlm_forward.1} parent=11 // pred_check_branch
          %487 = sbr.rel (%p485) target = $region32
        $region31: #{longformer_mlm_forward.1} parent=11 // pred_region
          _
        $region32: #{longformer_mlm_forward.1} parent=11 // pred_fallthru
          _
        // Predicated region
        $region33: #{longformer_mlm_forward.1} parent=11 // pred_check
          %p488 = pneg %p180
        $region34: #{longformer_mlm_forward.1} parent=11 // pred_check_branch
          %490 = sbr.rel (%p488) target = $region36
        $region35: #{longformer_mlm_forward.1} parent=11 // pred_region
          _
        $region36: #{longformer_mlm_forward.1} parent=11 // pred_fallthru
          _
        // Predicated region
        $region37: #{longformer_mlm_forward.1} parent=11 // pred_check
          %p491 = pneg %p201
        $region38: #{longformer_mlm_forward.1} parent=11 // pred_check_branch
          %493 = sbr.rel (%p491) target = $region40
        $region39: #{longformer_mlm_forward.1} parent=11 // pred_region
          _
        $region40: #{longformer_mlm_forward.1} parent=11 // pred_fallthru
          _
        // Predicated region
        $region41: #{longformer_mlm_forward.1} parent=11 // pred_check
          %p494 = pneg %p222
        $region42: #{longformer_mlm_forward.1} parent=11 // pred_check_branch
          %496 = sbr.rel (%p494) target = $region44
        $region43: #{longformer_mlm_forward.1} parent=11 // pred_region
          _
        $region44: #{longformer_mlm_forward.1} parent=11 // pred_fallthru
          _
        // Predicated region
        $region45: #{longformer_mlm_forward.1} parent=11 // pred_check
          %p497 = pneg %p243
        $region46: #{longformer_mlm_forward.1} parent=11 // pred_check_branch
          %499 = sbr.rel (%p497) target = $region48
        $region47: #{longformer_mlm_forward.1} parent=11 // pred_region
          _
        $region48: #{longformer_mlm_forward.1} parent=11 // pred_fallthru
          _
        // Predicated region
        $region49: #{longformer_mlm_forward.1} parent=11 // pred_check
          %p500 = pneg %p264
        $region50: #{longformer_mlm_forward.1} parent=11 // pred_check_branch
          %502 = sbr.rel (%p500) target = $region52
        $region51: #{longformer_mlm_forward.1} parent=11 // pred_region
          _
        $region52: #{longformer_mlm_forward.1} parent=11 // pred_fallthru
          _
        // Predicated region
        $region53: #{longformer_mlm_forward.1} parent=11 // pred_check
          %p503 = pneg %p285
        $region54: #{longformer_mlm_forward.1} parent=11 // pred_check_branch
          %505 = sbr.rel (%p503) target = $region56
        $region55: #{longformer_mlm_forward.1} parent=11 // pred_region
          _
        $region56: #{longformer_mlm_forward.1} parent=11 // pred_fallthru
          _
        // Predicated region
        $region57: #{longformer_mlm_forward.1} parent=11 // pred_check
          %p506 = pneg %p306
        $region58: #{longformer_mlm_forward.1} parent=11 // pred_check_branch
          %508 = sbr.rel (%p506) target = $region60
        $region59: #{longformer_mlm_forward.1} parent=11 // pred_region
          _
        $region60: #{longformer_mlm_forward.1} parent=11 // pred_fallthru
          _
        // Predicated region
        $region61: #{longformer_mlm_forward.1} parent=11 // pred_check
          %p509 = pneg %p327
        $region62: #{longformer_mlm_forward.1} parent=11 // pred_check_branch
          %511 = sbr.rel (%p509) target = $region64
        $region63: #{longformer_mlm_forward.1} parent=11 // pred_region
          _
        $region64: #{longformer_mlm_forward.1} parent=11 // pred_fallthru
          _
        // Predicated region
        $region65: #{longformer_mlm_forward.1} parent=11 // pred_check
          %p512 = pneg %p348
        $region66: #{longformer_mlm_forward.1} parent=11 // pred_check_branch
          %514 = sbr.rel (%p512) target = $region68
        $region67: #{longformer_mlm_forward.1} parent=11 // pred_region
          _
        $region68: #{longformer_mlm_forward.1} parent=11 // pred_fallthru
          _
        // Predicated region
        $region69: #{longformer_mlm_forward.1} parent=11 // pred_check
          %p515 = pneg %p369
        $region70: #{longformer_mlm_forward.1} parent=11 // pred_check_branch
          %517 = sbr.rel (%p515) target = $region72
        $region71: #{longformer_mlm_forward.1} parent=11 // pred_region
          _
        $region72: #{longformer_mlm_forward.1} parent=11 // pred_fallthru
          _
        // Predicated region
        $region73: #{longformer_mlm_forward.1} parent=11 // pred_check
          %p518 = pneg %p390
        $region74: #{longformer_mlm_forward.1} parent=11 // pred_check_branch
          %520 = sbr.rel (%p518) target = $region76
        $region75: #{longformer_mlm_forward.1} parent=11 // pred_region
          _
        $region76: #{longformer_mlm_forward.1} parent=11 // pred_fallthru
          _
        // Predicated region
        $region77: #{longformer_mlm_forward.1} parent=11 // pred_check
          %p521 = pneg %p411
        $region78: #{longformer_mlm_forward.1} parent=11 // pred_check_branch
          %523 = sbr.rel (%p521) target = $region80
        $region79: #{longformer_mlm_forward.1} parent=11 // pred_region
          _
        $region80: #{longformer_mlm_forward.1} parent=11 // pred_fallthru
          _
        // Predicated region
        $region81: #{longformer_mlm_forward.1} parent=11 // pred_check
          %p524 = pneg %p432
        $region82: #{longformer_mlm_forward.1} parent=11 // pred_check_branch
          %526 = sbr.rel (%p524) target = $region84
        $region83: #{longformer_mlm_forward.1} parent=11 // pred_region
          _
        $region84: #{longformer_mlm_forward.1} parent=11 // pred_fallthru
          _
      $region12: #{longformer_mlm_forward.1} parent=5 // pred_fallthru
        _
      %p527 = scmp.lt.s32.totalorder %s28, 2
      // Predicated region
      $region85: #{longformer_mlm_forward.1} parent=5 // pred_check
        %p528 = pneg %p527
      $region86: #{longformer_mlm_forward.1} parent=5 // pred_check_branch
        %530 = sbr.rel (%p528) target = $region88
      $region87: #{longformer_mlm_forward.1} parent=5 // pred_region
        // Predicated region
        $region89: #{longformer_mlm_forward.1} parent=87 // pred_check
          %p531 = pneg %p48
        $region90: #{longformer_mlm_forward.1} parent=87 // pred_check_branch
          %533 = sbr.rel (%p531) target = $region92
        $region91: #{longformer_mlm_forward.1} parent=87 // pred_region
          %p534 = scmp.lt.s32.totalorder %s28, 1
          %s535 = scalar_select %p534, %s28, 1
          %s536 = smul.addr %s535, 8
          %s537 = scalar_lea.vmem %s0, %s536
        $region92: #{longformer_mlm_forward.1} parent=87 // pred_fallthru
          _
      $region88: #{longformer_mlm_forward.1} parent=5 // pred_fallthru
        _
      %p538 = scmp.le.s32.totalorder 1, %s28
      %p539 = scmp.lt.s32.totalorder %s28, 3
      %p540 = pnand %p538, %p539
      %p541 = pneg %p540
      // Predicated region
      $region93: #{longformer_mlm_forward.1} parent=5 // pred_check
        _
      $region94: #{longformer_mlm_forward.1} parent=5 // pred_check_branch
        %543 = sbr.rel (%p540) target = $region96
      $region95: #{longformer_mlm_forward.1} parent=5 // pred_region
        %s544 = ssub.s32 %s28, 1
        %p545 = scmp.lt.s32.totalorder %s33, 1
        %s546 = scalar_select %p545, %s33, 1
        %s547 = smul.addr %s546, 8
        %s548 = scalar_lea.vmem %s0, %s547
        %p549 = pneg %p54
        %p550 = pneg %p51
        %p551 = pneg %p75
        %p552 = pneg %p72
        %p553 = pneg %p96
        %p554 = pneg %p93
        %p555 = pneg %p117
        %p556 = pneg %p114
        %p557 = pneg %p138
        %p558 = pneg %p135
        %p559 = pneg %p159
        %p560 = pneg %p156
        %p561 = pneg %p180
        %p562 = pneg %p177
        %p563 = pneg %p201
        %p564 = pneg %p198
        %p565 = pneg %p222
        %p566 = pneg %p219
        %p567 = pneg %p243
        %p568 = pneg %p240
        %p569 = pneg %p264
        %p570 = pneg %p261
        %p571 = pneg %p285
        %p572 = pneg %p282
        %p573 = pneg %p306
        %p574 = pneg %p303
        %p575 = pneg %p327
        %p576 = pneg %p324
        %p577 = pneg %p348
        %p578 = pneg %p345
        %p579 = pneg %p369
        %p580 = pneg %p366
        %p581 = pneg %p390
        %p582 = pneg %p387
        %p583 = pneg %p411
        %p584 = pneg %p408
        %p585 = pneg %p432
        %p586 = pneg %p429
        %p587 = pneg %p458
        %p588 = pneg %p455
        %s589 = sand.u32 %s445, 1
        %s590 = scalar_lea.sflag [#allocation3], %s589
        %s591 = sand.u32 %s445, 1
        %s592 = smul.addr %s591, 8
        %s593 = scalar_lea.vmem [#allocation2], %s592
        %p594 = scmp.lt.s32.totalorder %s33, 1
        %s595 = scalar_select %p594, %s33, 1
        %s596 = smul.addr %s595, 8
        %s597 = scalar_lea.vmem %s0, %s596
        %v598 = vld [vmem:[%s597] sm:$0xff]
        %v599 = vld [vmem:[%s1] sm:$0xff]
        %v600 = vld [vmem:[%s1 + $0x8] sm:$0xff]
        %v601 = vld [vmem:[%s1 + $0x10] sm:$0xff]
        %v602 = vld [vmem:[%s1 + $0x18] sm:$0xff]
        %v603 = vld [vmem:[%s2] sm:$0x1]
        %v605 = vlaneseq
        %v606 = vshrl.u32 %v605, 7
        %v607 = vsub.s32 0, %v606
        %v608 = vrot.slane %v603, %v607
        %vm610 = vcmask 261120
        %v612 = vsel %vm610, %v598, 0
        %614 = vmatprep.subr.mxu0 0.0
        %615 = vmatpush1.msra.mxu0 0.0
        %616 = vmatprep.subr.mxu0 0.0
        %617 = vmatpush1.msra.mxu0 0.0
        %618 = vmatprep.subr.mxu0 0.0
        %619 = vmatpush1.msra.mxu0 0.0
        %620 = vmatprep.subr.mxu0 0.0
        %621 = vmatpush1.msra.mxu0 0.0
        %622 = vmatprep.subr.mxu0 0.0
        %623 = vmatpush1.msra.mxu0 0.0
        %624 = vmatprep.subr.mxu0 0.0
        %625 = vmatpush1.msra.mxu0 0.0
        %626 = vmatprep.subr.mxu0 0.0
        %627 = vmatpush1.msra.mxu0 0.0
        %628 = vmatprep.subr.mxu0 0.0
        %629 = vmatpush1.msra.mxu0 0.0
        %630 = vmatprep.subr.mxu0 0.0
        %631 = vmatpush1.msra.mxu0 0.0
        %632 = vmatprep.subr.mxu0 0.0
        %633 = vmatpush1.msra.mxu0 0.0
        %634 = vmatprep.subr.mxu0 0.0
        %635 = vmatpush1.msra.mxu0 0.0
        %636 = vmatprep.subr.mxu0 0.0
        %637 = vmatpush1.msra.mxu0 0.0
        %638 = vmatprep.subr.mxu0 0.0
        %639 = vmatpush1.msra.mxu0 %v602
        %640 = vmatprep.subr.mxu0 0.0
        %641 = vmatpush1.msra.mxu0 %v601
        %642 = vmatprep.subr.mxu0 0.0
        %643 = vmatpush1.msra.mxu0 %v600
        %644 = vmatprep.subr.mxu0 0.0
        %645 = vmatpush1.msra.mxu0 %v599
        %646 = vmatprep.subr.mxu0 0.0
        %647 = vmatpush2.msra.mxu0 0.0
        %648 = vmatprep.subr.mxu0 0.0
        %649 = vmatpush2.msra.mxu0 0.0
        %650 = vmatprep.subr.mxu0 0.0
        %651 = vmatpush2.msra.mxu0 0.0
        %652 = vmatprep.subr.mxu0 0.0
        %653 = vmatpush2.msra.mxu0 0.0
        %654 = vmatprep.subr.mxu0 0.0
        %655 = vmatpush2.msra.mxu0 0.0
        %656 = vmatprep.subr.mxu0 0.0
        %657 = vmatpush2.msra.mxu0 0.0
        %658 = vmatprep.subr.mxu0 0.0
        %659 = vmatpush2.msra.mxu0 0.0
        %660 = vmatprep.subr.mxu0 0.0
        %661 = vmatpush2.msra.mxu0 0.0
        %662 = vmatprep.subr.mxu0 0.0
        %663 = vmatpush2.msra.mxu0 0.0
        %664 = vmatprep.subr.mxu0 0.0
        %665 = vmatpush2.msra.mxu0 0.0
        %666 = vmatprep.subr.mxu0 0.0
        %667 = vmatpush2.msra.mxu0 0.0
        %668 = vmatprep.subr.mxu0 0.0
        %669 = vmatpush2.msra.mxu0 0.0
        %670 = vmatprep.subr.mxu0 0.0
        %671 = vmatpush2.msra.mxu0 0.0
        %672 = vmatprep.subr.mxu0 0.0
        %673 = vmatpush2.msra.mxu0 0.0
        %674 = vmatprep.subr.mxu0 0.0
        %675 = vmatpush2.msra.mxu0 0.0
        %676 = vmatprep.subr.mxu0 0.0
        %677 = vmatpush2.msra.mxu0 0.0
        %678 = vmatprep.mubr.f32.mxu0 0.0
        %679 = vmatmul.mubr.f32.gmra.mxu0 %v612
        %v680 = vpop.f32.mrf.mxu0
        %v681 = vadd.f32 %v608, %v680
        %v682 = vpop.f32.mrf.mxu0
        %683 = vdwg.mxu0
        %v684 = vmul.f32 %v681, 0.35355338
        %686 = vrot.lane.b32.xlu0 %v681, 96
        %v687 = vpop.permute.xlu0 %686
        %vm688 = vcmask 64512
        %v690 = vsel %vm688, %v684, 0
        %v692 = vsel %vm688, %v687, 0
        %694 = vmatprep.subr.mxu0 0.0
        %695 = vmatpush1.xpose.msra.mxu0 0.0
        %696 = vmatprep.subr.mxu0 0.0
        %697 = vmatpush1.xpose.msra.mxu0 0.0
        %698 = vmatprep.subr.mxu0 0.0
        %699 = vmatpush1.xpose.msra.mxu0 0.0
        %700 = vmatprep.subr.mxu0 0.0
        %701 = vmatpush1.xpose.msra.mxu0 0.0
        %702 = vmatprep.subr.mxu0 0.0
        %703 = vmatpush1.xpose.msra.mxu0 0.0
        %704 = vmatprep.subr.mxu0 0.0
        %705 = vmatpush1.xpose.msra.mxu0 0.0
        %706 = vmatprep.subr.mxu0 0.0
        %707 = vmatpush1.xpose.msra.mxu0 0.0
        %708 = vmatprep.subr.mxu0 0.0
        %709 = vmatpush1.xpose.msra.mxu0 0.0
        %710 = vmatprep.subr.mxu0 0.0
        %711 = vmatpush1.xpose.msra.mxu0 0.0
        %712 = vmatprep.subr.mxu0 0.0
        %713 = vmatpush1.xpose.msra.mxu0 0.0
        %714 = vmatprep.subr.mxu0 0.0
        %715 = vmatpush1.xpose.msra.mxu0 0.0
        %716 = vmatprep.subr.mxu0 0.0
        %717 = vmatpush1.xpose.msra.mxu0 0.0
        %718 = vmatprep.subr.mxu0 0.0
        %719 = vmatpush1.xpose.msra.mxu0 0.0
        %720 = vmatprep.subr.mxu0 0.0
        %721 = vmatpush1.xpose.msra.mxu0 0.0
        %722 = vmatprep.subr.mxu0 0.0
        %723 = vmatpush1.xpose.msra.mxu0 0.0
        %724 = vmatprep.subr.mxu0 0.0
        %725 = vmatpush1.xpose.msra.mxu0 %v692
        %726 = vmatprep.subr.mxu0 0.0
        %727 = vmatpush2.xpose.msra.mxu0 0.0
        %728 = vmatprep.subr.mxu0 0.0
        %729 = vmatpush2.xpose.msra.mxu0 0.0
        %730 = vmatprep.subr.mxu0 0.0
        %731 = vmatpush2.xpose.msra.mxu0 0.0
        %732 = vmatprep.subr.mxu0 0.0
        %733 = vmatpush2.xpose.msra.mxu0 0.0
        %734 = vmatprep.subr.mxu0 0.0
        %735 = vmatpush2.xpose.msra.mxu0 0.0
        %736 = vmatprep.subr.mxu0 0.0
        %737 = vmatpush2.xpose.msra.mxu0 0.0
        %738 = vmatprep.subr.mxu0 0.0
        %739 = vmatpush2.xpose.msra.mxu0 0.0
        %740 = vmatprep.subr.mxu0 0.0
        %741 = vmatpush2.xpose.msra.mxu0 0.0
        %742 = vmatprep.subr.mxu0 0.0
        %743 = vmatpush2.xpose.msra.mxu0 0.0
        %744 = vmatprep.subr.mxu0 0.0
        %745 = vmatpush2.xpose.msra.mxu0 0.0
        %746 = vmatprep.subr.mxu0 0.0
        %747 = vmatpush2.xpose.msra.mxu0 0.0
        %748 = vmatprep.subr.mxu0 0.0
        %749 = vmatpush2.xpose.msra.mxu0 0.0
        %750 = vmatprep.subr.mxu0 0.0
        %751 = vmatpush2.xpose.msra.mxu0 0.0
        %752 = vmatprep.subr.mxu0 0.0
        %753 = vmatpush2.xpose.msra.mxu0 0.0
        %754 = vmatprep.subr.mxu0 0.0
        %755 = vmatpush2.xpose.msra.mxu0 0.0
        %756 = vmatprep.subr.mxu0 0.0
        %757 = vmatpush2.xpose.msra.mxu0 0.0
        %758 = vmatprep.mubr.f32.mxu0 0.0
        %759 = vmatmul.mubr.f32.gmra.mxu0 %v690
        %v760 = vpop.f32.mrf.mxu0
        %v761 = vadd.f32 0.0, %v760
        %v762 = vpop.f32.mrf.mxu0
        %763 = vdwg.mxu0
        %v764 = vsel %vm688, %v761, -inf
        %765 = vmax.xlane.f32.xlu0 %v764
        %v766 = vpop.xlane.xlu0 %765
        %v767 = vsub.f32 %v761, %v766
        %v768 = vmul.f32 %v767, 1.442695
        %v769 = vpow.pop %v768
        %v770 = vsel %vm688, %v769, 0.0
        %771 = vadd.xlane.f32.xlu0 %v770
        %v772 = vpop.xlane.xlu0 %771
        %v773 = vrcp.pop %v772
        %v774 = vmul.f32 %v769, %v773
        %775 = vrot.lane.b32.xlu0 %v681, 64
        %v776 = vpop.permute.xlu0 %775
        %v779 = vsel %vm688, %v774, 0
        %781 = vmatprep.subr.mxu0 0.0
        %782 = vmatpush1.msra.mxu0 0.0
        %783 = vmatprep.subr.mxu0 0.0
        %784 = vmatpush1.msra.mxu0 0.0
        %785 = vmatprep.subr.mxu0 0.0
        %786 = vmatpush1.msra.mxu0 0.0
        %787 = vmatprep.subr.mxu0 0.0
        %788 = vmatpush1.msra.mxu0 0.0
        %789 = vmatprep.subr.mxu0 0.0
        %790 = vmatpush1.msra.mxu0 0.0
        %791 = vmatprep.subr.mxu0 0.0
        %792 = vmatpush1.msra.mxu0 0.0
        %793 = vmatprep.subr.mxu0 0.0
        %794 = vmatpush1.msra.mxu0 0.0
        %795 = vmatprep.subr.mxu0 0.0
        %796 = vmatpush1.msra.mxu0 0.0
        %797 = vmatprep.subr.mxu0 0.0
        %798 = vmatpush1.msra.mxu0 0.0
        %799 = vmatprep.subr.mxu0 0.0
        %800 = vmatpush1.msra.mxu0 0.0
        %801 = vmatprep.subr.mxu0 0.0
        %802 = vmatpush1.msra.mxu0 0.0
        %803 = vmatprep.subr.mxu0 0.0
        %804 = vmatpush1.msra.mxu0 0.0
        %805 = vmatprep.subr.mxu0 0.0
        %806 = vmatpush1.msra.mxu0 0.0
        %807 = vmatprep.subr.mxu0 0.0
        %808 = vmatpush1.msra.mxu0 0.0
        %809 = vmatprep.subr.mxu0 0.0
        %810 = vmatpush1.msra.mxu0 0.0
        %811 = vmatprep.subr.mxu0 0.0
        %812 = vmatpush1.msra.mxu0 %v776
        %813 = vmatprep.subr.mxu0 0.0
        %814 = vmatpush2.msra.mxu0 0.0
        %815 = vmatprep.subr.mxu0 0.0
        %816 = vmatpush2.msra.mxu0 0.0
        %817 = vmatprep.subr.mxu0 0.0
        %818 = vmatpush2.msra.mxu0 0.0
        %819 = vmatprep.subr.mxu0 0.0
        %820 = vmatpush2.msra.mxu0 0.0
        %821 = vmatprep.subr.mxu0 0.0
        %822 = vmatpush2.msra.mxu0 0.0
        %823 = vmatprep.subr.mxu0 0.0
        %824 = vmatpush2.msra.mxu0 0.0
        %825 = vmatprep.subr.mxu0 0.0
        %826 = vmatpush2.msra.mxu0 0.0
        %827 = vmatprep.subr.mxu0 0.0
        %828 = vmatpush2.msra.mxu0 0.0
        %829 = vmatprep.subr.mxu0 0.0
        %830 = vmatpush2.msra.mxu0 0.0
        %831 = vmatprep.subr.mxu0 0.0
        %832 = vmatpush2.msra.mxu0 0.0
        %833 = vmatprep.subr.mxu0 0.0
        %834 = vmatpush2.msra.mxu0 0.0
        %835 = vmatprep.subr.mxu0 0.0
        %836 = vmatpush2.msra.mxu0 0.0
        %837 = vmatprep.subr.mxu0 0.0
        %838 = vmatpush2.msra.mxu0 0.0
        %839 = vmatprep.subr.mxu0 0.0
        %840 = vmatpush2.msra.mxu0 0.0
        %841 = vmatprep.subr.mxu0 0.0
        %842 = vmatpush2.msra.mxu0 0.0
        %843 = vmatprep.subr.mxu0 0.0
        %844 = vmatpush2.msra.mxu0 0.0
        %845 = vmatprep.mubr.f32.mxu0 0.0
        %846 = vmatmul.mubr.f32.gmra.mxu0 %v779
        %v847 = vpop.f32.mrf.mxu0
        %v848 = vadd.f32 0.0, %v847
        %v849 = vpop.f32.mrf.mxu0
        %850 = vdwg.mxu0
        %851 = vrot.lane.b32.xlu0 %v684, 120
        %v852 = vpop.permute.xlu0 %851
        %853 = vrot.lane.b32.xlu0 %v681, 88
        %v854 = vpop.permute.xlu0 %853
        %v855 = vsel %vm688, %v852, 0
        %v857 = vsel %vm688, %v854, 0
        %859 = vmatprep.subr.mxu0 0.0
        %860 = vmatpush1.xpose.msra.mxu0 0.0
        %861 = vmatprep.subr.mxu0 0.0
        %862 = vmatpush1.xpose.msra.mxu0 0.0
        %863 = vmatprep.subr.mxu0 0.0
        %864 = vmatpush1.xpose.msra.mxu0 0.0
        %865 = vmatprep.subr.mxu0 0.0
        %866 = vmatpush1.xpose.msra.mxu0 0.0
        %867 = vmatprep.subr.mxu0 0.0
        %868 = vmatpush1.xpose.msra.mxu0 0.0
        %869 = vmatprep.subr.mxu0 0.0
        %870 = vmatpush1.xpose.msra.mxu0 0.0
        %871 = vmatprep.subr.mxu0 0.0
        %872 = vmatpush1.xpose.msra.mxu0 0.0
        %873 = vmatprep.subr.mxu0 0.0
        %874 = vmatpush1.xpose.msra.mxu0 0.0
        %875 = vmatprep.subr.mxu0 0.0
        %876 = vmatpush1.xpose.msra.mxu0 0.0
        %877 = vmatprep.subr.mxu0 0.0
        %878 = vmatpush1.xpose.msra.mxu0 0.0
        %879 = vmatprep.subr.mxu0 0.0
        %880 = vmatpush1.xpose.msra.mxu0 0.0
        %881 = vmatprep.subr.mxu0 0.0
        %882 = vmatpush1.xpose.msra.mxu0 0.0
        %883 = vmatprep.subr.mxu0 0.0
        %884 = vmatpush1.xpose.msra.mxu0 0.0
        %885 = vmatprep.subr.mxu0 0.0
        %886 = vmatpush1.xpose.msra.mxu0 0.0
        %887 = vmatprep.subr.mxu0 0.0
        %888 = vmatpush1.xpose.msra.mxu0 0.0
        %889 = vmatprep.subr.mxu0 0.0
        %890 = vmatpush1.xpose.msra.mxu0 %v857
        %891 = vmatprep.subr.mxu0 0.0
        %892 = vmatpush2.xpose.msra.mxu0 0.0
        %893 = vmatprep.subr.mxu0 0.0
        %894 = vmatpush2.xpose.msra.mxu0 0.0
        %895 = vmatprep.subr.mxu0 0.0
        %896 = vmatpush2.xpose.msra.mxu0 0.0
        %897 = vmatprep.subr.mxu0 0.0
        %898 = vmatpush2.xpose.msra.mxu0 0.0
        %899 = vmatprep.subr.mxu0 0.0
        %900 = vmatpush2.xpose.msra.mxu0 0.0
        %901 = vmatprep.subr.mxu0 0.0
        %902 = vmatpush2.xpose.msra.mxu0 0.0
        %903 = vmatprep.subr.mxu0 0.0
        %904 = vmatpush2.xpose.msra.mxu0 0.0
        %905 = vmatprep.subr.mxu0 0.0
        %906 = vmatpush2.xpose.msra.mxu0 0.0
        %907 = vmatprep.subr.mxu0 0.0
        %908 = vmatpush2.xpose.msra.mxu0 0.0
        %909 = vmatprep.subr.mxu0 0.0
        %910 = vmatpush2.xpose.msra.mxu0 0.0
        %911 = vmatprep.subr.mxu0 0.0
        %912 = vmatpush2.xpose.msra.mxu0 0.0
        %913 = vmatprep.subr.mxu0 0.0
        %914 = vmatpush2.xpose.msra.mxu0 0.0
        %915 = vmatprep.subr.mxu0 0.0
        %916 = vmatpush2.xpose.msra.mxu0 0.0
        %917 = vmatprep.subr.mxu0 0.0
        %918 = vmatpush2.xpose.msra.mxu0 0.0
        %919 = vmatprep.subr.mxu0 0.0
        %920 = vmatpush2.xpose.msra.mxu0 0.0
        %921 = vmatprep.subr.mxu0 0.0
        %922 = vmatpush2.xpose.msra.mxu0 0.0
        %923 = vmatprep.mubr.f32.mxu0 0.0
        %924 = vmatmul.mubr.f32.gmra.mxu0 %v855
        %v925 = vpop.f32.mrf.mxu0
        %v926 = vadd.f32 0.0, %v925
        %v927 = vpop.f32.mrf.mxu0
        %928 = vdwg.mxu0
        %v929 = vsel %vm688, %v926, -inf
        %930 = vmax.xlane.f32.xlu0 %v929
        %v931 = vpop.xlane.xlu0 %930
        %v932 = vsub.f32 %v926, %v931
        %v933 = vmul.f32 %v932, 1.442695
        %v934 = vpow.pop %v933
        %v935 = vsel %vm688, %v934, 0.0
        %936 = vadd.xlane.f32.xlu0 %v935
        %v937 = vpop.xlane.xlu0 %936
        %v938 = vrcp.pop %v937
        %v939 = vmul.f32 %v934, %v938
        %940 = vrot.lane.b32.xlu0 %v681, 56
        %v941 = vpop.permute.xlu0 %940
        %v944 = vsel %vm688, %v939, 0
        %946 = vmatprep.subr.mxu0 0.0
        %947 = vmatpush1.msra.mxu0 0.0
        %948 = vmatprep.subr.mxu0 0.0
        %949 = vmatpush1.msra.mxu0 0.0
        %950 = vmatprep.subr.mxu0 0.0
        %951 = vmatpush1.msra.mxu0 0.0
        %952 = vmatprep.subr.mxu0 0.0
        %953 = vmatpush1.msra.mxu0 0.0
        %954 = vmatprep.subr.mxu0 0.0
        %955 = vmatpush1.msra.mxu0 0.0
        %956 = vmatprep.subr.mxu0 0.0
        %957 = vmatpush1.msra.mxu0 0.0
        %958 = vmatprep.subr.mxu0 0.0
        %959 = vmatpush1.msra.mxu0 0.0
        %960 = vmatprep.subr.mxu0 0.0
        %961 = vmatpush1.msra.mxu0 0.0
        %962 = vmatprep.subr.mxu0 0.0
        %963 = vmatpush1.msra.mxu0 0.0
        %964 = vmatprep.subr.mxu0 0.0
        %965 = vmatpush1.msra.mxu0 0.0
        %966 = vmatprep.subr.mxu0 0.0
        %967 = vmatpush1.msra.mxu0 0.0
        %968 = vmatprep.subr.mxu0 0.0
        %969 = vmatpush1.msra.mxu0 0.0
        %970 = vmatprep.subr.mxu0 0.0
        %971 = vmatpush1.msra.mxu0 0.0
        %972 = vmatprep.subr.mxu0 0.0
        %973 = vmatpush1.msra.mxu0 0.0
        %974 = vmatprep.subr.mxu0 0.0
        %975 = vmatpush1.msra.mxu0 0.0
        %976 = vmatprep.subr.mxu0 0.0
        %977 = vmatpush1.msra.mxu0 %v941
        %978 = vmatprep.subr.mxu0 0.0
        %979 = vmatpush2.msra.mxu0 0.0
        %980 = vmatprep.subr.mxu0 0.0
        %981 = vmatpush2.msra.mxu0 0.0
        %982 = vmatprep.subr.mxu0 0.0
        %983 = vmatpush2.msra.mxu0 0.0
        %984 = vmatprep.subr.mxu0 0.0
        %985 = vmatpush2.msra.mxu0 0.0
        %986 = vmatprep.subr.mxu0 0.0
        %987 = vmatpush2.msra.mxu0 0.0
        %988 = vmatprep.subr.mxu0 0.0
        %989 = vmatpush2.msra.mxu0 0.0
        %990 = vmatprep.subr.mxu0 0.0
        %991 = vmatpush2.msra.mxu0 0.0
        %992 = vmatprep.subr.mxu0 0.0
        %993 = vmatpush2.msra.mxu0 0.0
        %994 = vmatprep.subr.mxu0 0.0
        %995 = vmatpush2.msra.mxu0 0.0
        %996 = vmatprep.subr.mxu0 0.0
        %997 = vmatpush2.msra.mxu0 0.0
        %998 = vmatprep.subr.mxu0 0.0
        %999 = vmatpush2.msra.mxu0 0.0
        %1000 = vmatprep.subr.mxu0 0.0
        %1001 = vmatpush2.msra.mxu0 0.0
        %1002 = vmatprep.subr.mxu0 0.0
        %1003 = vmatpush2.msra.mxu0 0.0
        %1004 = vmatprep.subr.mxu0 0.0
        %1005 = vmatpush2.msra.mxu0 0.0
        %1006 = vmatprep.subr.mxu0 0.0
        %1007 = vmatpush2.msra.mxu0 0.0
        %1008 = vmatprep.subr.mxu0 0.0
        %1009 = vmatpush2.msra.mxu0 0.0
        %1010 = vmatprep.mubr.f32.mxu0 0.0
        %1011 = vmatmul.mubr.f32.gmra.mxu0 %v944
        %v1012 = vpop.f32.mrf.mxu0
        %v1013 = vadd.f32 0.0, %v1012
        %v1014 = vpop.f32.mrf.mxu0
        %1015 = vdwg.mxu0
        %1016 = vrot.lane.b32.xlu0 %v684, 112
        %v1017 = vpop.permute.xlu0 %1016
        %1018 = vrot.lane.b32.xlu0 %v681, 80
        %v1019 = vpop.permute.xlu0 %1018
        %v1020 = vsel %vm688, %v1017, 0
        %v1022 = vsel %vm688, %v1019, 0
        %1024 = vmatprep.subr.mxu0 0.0
        %1025 = vmatpush1.xpose.msra.mxu0 0.0
        %1026 = vmatprep.subr.mxu0 0.0
        %1027 = vmatpush1.xpose.msra.mxu0 0.0
        %1028 = vmatprep.subr.mxu0 0.0
        %1029 = vmatpush1.xpose.msra.mxu0 0.0
        %1030 = vmatprep.subr.mxu0 0.0
        %1031 = vmatpush1.xpose.msra.mxu0 0.0
        %1032 = vmatprep.subr.mxu0 0.0
        %1033 = vmatpush1.xpose.msra.mxu0 0.0
        %1034 = vmatprep.subr.mxu0 0.0
        %1035 = vmatpush1.xpose.msra.mxu0 0.0
        %1036 = vmatprep.subr.mxu0 0.0
        %1037 = vmatpush1.xpose.msra.mxu0 0.0
        %1038 = vmatprep.subr.mxu0 0.0
        %1039 = vmatpush1.xpose.msra.mxu0 0.0
        %1040 = vmatprep.subr.mxu0 0.0
        %1041 = vmatpush1.xpose.msra.mxu0 0.0
        %1042 = vmatprep.subr.mxu0 0.0
        %1043 = vmatpush1.xpose.msra.mxu0 0.0
        %1044 = vmatprep.subr.mxu0 0.0
        %1045 = vmatpush1.xpose.msra.mxu0 0.0
        %1046 = vmatprep.subr.mxu0 0.0
        %1047 = vmatpush1.xpose.msra.mxu0 0.0
        %1048 = vmatprep.subr.mxu0 0.0
        %1049 = vmatpush1.xpose.msra.mxu0 0.0
        %1050 = vmatprep.subr.mxu0 0.0
        %1051 = vmatpush1.xpose.msra.mxu0 0.0
        %1052 = vmatprep.subr.mxu0 0.0
        %1053 = vmatpush1.xpose.msra.mxu0 0.0
        %1054 = vmatprep.subr.mxu0 0.0
        %1055 = vmatpush1.xpose.msra.mxu0 %v1022
        %1056 = vmatprep.subr.mxu0 0.0
        %1057 = vmatpush2.xpose.msra.mxu0 0.0
        %1058 = vmatprep.subr.mxu0 0.0
        %1059 = vmatpush2.xpose.msra.mxu0 0.0
        %1060 = vmatprep.subr.mxu0 0.0
        %1061 = vmatpush2.xpose.msra.mxu0 0.0
        %1062 = vmatprep.subr.mxu0 0.0
        %1063 = vmatpush2.xpose.msra.mxu0 0.0
        %1064 = vmatprep.subr.mxu0 0.0
        %1065 = vmatpush2.xpose.msra.mxu0 0.0
        %1066 = vmatprep.subr.mxu0 0.0
        %1067 = vmatpush2.xpose.msra.mxu0 0.0
        %1068 = vmatprep.subr.mxu0 0.0
        %1069 = vmatpush2.xpose.msra.mxu0 0.0
        %1070 = vmatprep.subr.mxu0 0.0
        %1071 = vmatpush2.xpose.msra.mxu0 0.0
        %1072 = vmatprep.subr.mxu0 0.0
        %1073 = vmatpush2.xpose.msra.mxu0 0.0
        %1074 = vmatprep.subr.mxu0 0.0
        %1075 = vmatpush2.xpose.msra.mxu0 0.0
        %1076 = vmatprep.subr.mxu0 0.0
        %1077 = vmatpush2.xpose.msra.mxu0 0.0
        %1078 = vmatprep.subr.mxu0 0.0
        %1079 = vmatpush2.xpose.msra.mxu0 0.0
        %1080 = vmatprep.subr.mxu0 0.0
        %1081 = vmatpush2.xpose.msra.mxu0 0.0
        %1082 = vmatprep.subr.mxu0 0.0
        %1083 = vmatpush2.xpose.msra.mxu0 0.0
        %1084 = vmatprep.subr.mxu0 0.0
        %1085 = vmatpush2.xpose.msra.mxu0 0.0
        %1086 = vmatprep.subr.mxu0 0.0
        %1087 = vmatpush2.xpose.msra.mxu0 0.0
        %1088 = vmatprep.mubr.f32.mxu0 0.0
        %1089 = vmatmul.mubr.f32.gmra.mxu0 %v1020
        %v1090 = vpop.f32.mrf.mxu0
        %v1091 = vadd.f32 0.0, %v1090
        %v1092 = vpop.f32.mrf.mxu0
        %1093 = vdwg.mxu0
        %v1094 = vsel %vm688, %v1091, -inf
        %1095 = vmax.xlane.f32.xlu0 %v1094
        %v1096 = vpop.xlane.xlu0 %1095
        %v1097 = vsub.f32 %v1091, %v1096
        %v1098 = vmul.f32 %v1097, 1.442695
        %v1099 = vpow.pop %v1098
        %v1100 = vsel %vm688, %v1099, 0.0
        %1101 = vadd.xlane.f32.xlu0 %v1100
        %v1102 = vpop.xlane.xlu0 %1101
        %v1103 = vrcp.pop %v1102
        %v1104 = vmul.f32 %v1099, %v1103
        %1105 = vrot.lane.b32.xlu0 %v681, 48
        %v1106 = vpop.permute.xlu0 %1105
        %v1109 = vsel %vm688, %v1104, 0
        %1111 = vmatprep.subr.mxu0 0.0
        %1112 = vmatpush1.msra.mxu0 0.0
        %1113 = vmatprep.subr.mxu0 0.0
        %1114 = vmatpush1.msra.mxu0 0.0
        %1115 = vmatprep.subr.mxu0 0.0
        %1116 = vmatpush1.msra.mxu0 0.0
        %1117 = vmatprep.subr.mxu0 0.0
        %1118 = vmatpush1.msra.mxu0 0.0
        %1119 = vmatprep.subr.mxu0 0.0
        %1120 = vmatpush1.msra.mxu0 0.0
        %1121 = vmatprep.subr.mxu0 0.0
        %1122 = vmatpush1.msra.mxu0 0.0
        %1123 = vmatprep.subr.mxu0 0.0
        %1124 = vmatpush1.msra.mxu0 0.0
        %1125 = vmatprep.subr.mxu0 0.0
        %1126 = vmatpush1.msra.mxu0 0.0
        %1127 = vmatprep.subr.mxu0 0.0
        %1128 = vmatpush1.msra.mxu0 0.0
        %1129 = vmatprep.subr.mxu0 0.0
        %1130 = vmatpush1.msra.mxu0 0.0
        %1131 = vmatprep.subr.mxu0 0.0
        %1132 = vmatpush1.msra.mxu0 0.0
        %1133 = vmatprep.subr.mxu0 0.0
        %1134 = vmatpush1.msra.mxu0 0.0
        %1135 = vmatprep.subr.mxu0 0.0
        %1136 = vmatpush1.msra.mxu0 0.0
        %1137 = vmatprep.subr.mxu0 0.0
        %1138 = vmatpush1.msra.mxu0 0.0
        %1139 = vmatprep.subr.mxu0 0.0
        %1140 = vmatpush1.msra.mxu0 0.0
        %1141 = vmatprep.subr.mxu0 0.0
        %1142 = vmatpush1.msra.mxu0 %v1106
        %1143 = vmatprep.subr.mxu0 0.0
        %1144 = vmatpush2.msra.mxu0 0.0
        %1145 = vmatprep.subr.mxu0 0.0
        %1146 = vmatpush2.msra.mxu0 0.0
        %1147 = vmatprep.subr.mxu0 0.0
        %1148 = vmatpush2.msra.mxu0 0.0
        %1149 = vmatprep.subr.mxu0 0.0
        %1150 = vmatpush2.msra.mxu0 0.0
        %1151 = vmatprep.subr.mxu0 0.0
        %1152 = vmatpush2.msra.mxu0 0.0
        %1153 = vmatprep.subr.mxu0 0.0
        %1154 = vmatpush2.msra.mxu0 0.0
        %1155 = vmatprep.subr.mxu0 0.0
        %1156 = vmatpush2.msra.mxu0 0.0
        %1157 = vmatprep.subr.mxu0 0.0
        %1158 = vmatpush2.msra.mxu0 0.0
        %1159 = vmatprep.subr.mxu0 0.0
        %1160 = vmatpush2.msra.mxu0 0.0
        %1161 = vmatprep.subr.mxu0 0.0
        %1162 = vmatpush2.msra.mxu0 0.0
        %1163 = vmatprep.subr.mxu0 0.0
        %1164 = vmatpush2.msra.mxu0 0.0
        %1165 = vmatprep.subr.mxu0 0.0
        %1166 = vmatpush2.msra.mxu0 0.0
        %1167 = vmatprep.subr.mxu0 0.0
        %1168 = vmatpush2.msra.mxu0 0.0
        %1169 = vmatprep.subr.mxu0 0.0
        %1170 = vmatpush2.msra.mxu0 0.0
        %1171 = vmatprep.subr.mxu0 0.0
        %1172 = vmatpush2.msra.mxu0 0.0
        %1173 = vmatprep.subr.mxu0 0.0
        %1174 = vmatpush2.msra.mxu0 0.0
        %1175 = vmatprep.mubr.f32.mxu0 0.0
        %1176 = vmatmul.mubr.f32.gmra.mxu0 %v1109
        %v1177 = vpop.f32.mrf.mxu0
        %v1178 = vadd.f32 0.0, %v1177
        %v1179 = vpop.f32.mrf.mxu0
        %1180 = vdwg.mxu0
        %1181 = vrot.lane.b32.xlu0 %v684, 104
        %v1182 = vpop.permute.xlu0 %1181
        %1183 = vrot.lane.b32.xlu0 %v681, 72
        %v1184 = vpop.permute.xlu0 %1183
        %v1185 = vsel %vm688, %v1182, 0
        %v1187 = vsel %vm688, %v1184, 0
        %1189 = vmatprep.subr.mxu0 0.0
        %1190 = vmatpush1.xpose.msra.mxu0 0.0
        %1191 = vmatprep.subr.mxu0 0.0
        %1192 = vmatpush1.xpose.msra.mxu0 0.0
        %1193 = vmatprep.subr.mxu0 0.0
        %1194 = vmatpush1.xpose.msra.mxu0 0.0
        %1195 = vmatprep.subr.mxu0 0.0
        %1196 = vmatpush1.xpose.msra.mxu0 0.0
        %1197 = vmatprep.subr.mxu0 0.0
        %1198 = vmatpush1.xpose.msra.mxu0 0.0
        %1199 = vmatprep.subr.mxu0 0.0
        %1200 = vmatpush1.xpose.msra.mxu0 0.0
        %1201 = vmatprep.subr.mxu0 0.0
        %1202 = vmatpush1.xpose.msra.mxu0 0.0
        %1203 = vmatprep.subr.mxu0 0.0
        %1204 = vmatpush1.xpose.msra.mxu0 0.0
        %1205 = vmatprep.subr.mxu0 0.0
        %1206 = vmatpush1.xpose.msra.mxu0 0.0
        %1207 = vmatprep.subr.mxu0 0.0
        %1208 = vmatpush1.xpose.msra.mxu0 0.0
        %1209 = vmatprep.subr.mxu0 0.0
        %1210 = vmatpush1.xpose.msra.mxu0 0.0
        %1211 = vmatprep.subr.mxu0 0.0
        %1212 = vmatpush1.xpose.msra.mxu0 0.0
        %1213 = vmatprep.subr.mxu0 0.0
        %1214 = vmatpush1.xpose.msra.mxu0 0.0
        %1215 = vmatprep.subr.mxu0 0.0
        %1216 = vmatpush1.xpose.msra.mxu0 0.0
        %1217 = vmatprep.subr.mxu0 0.0
        %1218 = vmatpush1.xpose.msra.mxu0 0.0
        %1219 = vmatprep.subr.mxu0 0.0
        %1220 = vmatpush1.xpose.msra.mxu0 %v1187
        %1221 = vmatprep.subr.mxu0 0.0
        %1222 = vmatpush2.xpose.msra.mxu0 0.0
        %1223 = vmatprep.subr.mxu0 0.0
        %1224 = vmatpush2.xpose.msra.mxu0 0.0
        %1225 = vmatprep.subr.mxu0 0.0
        %1226 = vmatpush2.xpose.msra.mxu0 0.0
        %1227 = vmatprep.subr.mxu0 0.0
        %1228 = vmatpush2.xpose.msra.mxu0 0.0
        %1229 = vmatprep.subr.mxu0 0.0
        %1230 = vmatpush2.xpose.msra.mxu0 0.0
        %1231 = vmatprep.subr.mxu0 0.0
        %1232 = vmatpush2.xpose.msra.mxu0 0.0
        %1233 = vmatprep.subr.mxu0 0.0
        %1234 = vmatpush2.xpose.msra.mxu0 0.0
        %1235 = vmatprep.subr.mxu0 0.0
        %1236 = vmatpush2.xpose.msra.mxu0 0.0
        %1237 = vmatprep.subr.mxu0 0.0
        %1238 = vmatpush2.xpose.msra.mxu0 0.0
        %1239 = vmatprep.subr.mxu0 0.0
        %1240 = vmatpush2.xpose.msra.mxu0 0.0
        %1241 = vmatprep.subr.mxu0 0.0
        %1242 = vmatpush2.xpose.msra.mxu0 0.0
        %1243 = vmatprep.subr.mxu0 0.0
        %1244 = vmatpush2.xpose.msra.mxu0 0.0
        %1245 = vmatprep.subr.mxu0 0.0
        %1246 = vmatpush2.xpose.msra.mxu0 0.0
        %1247 = vmatprep.subr.mxu0 0.0
        %1248 = vmatpush2.xpose.msra.mxu0 0.0
        %1249 = vmatprep.subr.mxu0 0.0
        %1250 = vmatpush2.xpose.msra.mxu0 0.0
        %1251 = vmatprep.subr.mxu0 0.0
        %1252 = vmatpush2.xpose.msra.mxu0 0.0
        %1253 = vmatprep.mubr.f32.mxu0 0.0
        %1254 = vmatmul.mubr.f32.gmra.mxu0 %v1185
        %v1255 = vpop.f32.mrf.mxu0
        %v1256 = vadd.f32 0.0, %v1255
        %v1257 = vpop.f32.mrf.mxu0
        %1258 = vdwg.mxu0
        %v1259 = vsel %vm688, %v1256, -inf
        %1260 = vmax.xlane.f32.xlu0 %v1259
        %v1261 = vpop.xlane.xlu0 %1260
        %v1262 = vsub.f32 %v1256, %v1261
        %v1263 = vmul.f32 %v1262, 1.442695
        %v1264 = vpow.pop %v1263
        %v1265 = vsel %vm688, %v1264, 0.0
        %1266 = vadd.xlane.f32.xlu0 %v1265
        %v1267 = vpop.xlane.xlu0 %1266
        %v1268 = vrcp.pop %v1267
        %v1269 = vmul.f32 %v1264, %v1268
        %1270 = vrot.lane.b32.xlu0 %v681, 40
        %v1271 = vpop.permute.xlu0 %1270
        %v1274 = vsel %vm688, %v1269, 0
        %1276 = vmatprep.subr.mxu0 0.0
        %1277 = vmatpush1.msra.mxu0 0.0
        %1278 = vmatprep.subr.mxu0 0.0
        %1279 = vmatpush1.msra.mxu0 0.0
        %1280 = vmatprep.subr.mxu0 0.0
        %1281 = vmatpush1.msra.mxu0 0.0
        %1282 = vmatprep.subr.mxu0 0.0
        %1283 = vmatpush1.msra.mxu0 0.0
        %1284 = vmatprep.subr.mxu0 0.0
        %1285 = vmatpush1.msra.mxu0 0.0
        %1286 = vmatprep.subr.mxu0 0.0
        %1287 = vmatpush1.msra.mxu0 0.0
        %1288 = vmatprep.subr.mxu0 0.0
        %1289 = vmatpush1.msra.mxu0 0.0
        %1290 = vmatprep.subr.mxu0 0.0
        %1291 = vmatpush1.msra.mxu0 0.0
        %1292 = vmatprep.subr.mxu0 0.0
        %1293 = vmatpush1.msra.mxu0 0.0
        %1294 = vmatprep.subr.mxu0 0.0
        %1295 = vmatpush1.msra.mxu0 0.0
        %1296 = vmatprep.subr.mxu0 0.0
        %1297 = vmatpush1.msra.mxu0 0.0
        %1298 = vmatprep.subr.mxu0 0.0
        %1299 = vmatpush1.msra.mxu0 0.0
        %1300 = vmatprep.subr.mxu0 0.0
        %1301 = vmatpush1.msra.mxu0 0.0
        %1302 = vmatprep.subr.mxu0 0.0
        %1303 = vmatpush1.msra.mxu0 0.0
        %1304 = vmatprep.subr.mxu0 0.0
        %1305 = vmatpush1.msra.mxu0 0.0
        %1306 = vmatprep.subr.mxu0 0.0
        %1307 = vmatpush1.msra.mxu0 %v1271
        %1308 = vmatprep.subr.mxu0 0.0
        %1309 = vmatpush2.msra.mxu0 0.0
        %1310 = vmatprep.subr.mxu0 0.0
        %1311 = vmatpush2.msra.mxu0 0.0
        %1312 = vmatprep.subr.mxu0 0.0
        %1313 = vmatpush2.msra.mxu0 0.0
        %1314 = vmatprep.subr.mxu0 0.0
        %1315 = vmatpush2.msra.mxu0 0.0
        %1316 = vmatprep.subr.mxu0 0.0
        %1317 = vmatpush2.msra.mxu0 0.0
        %1318 = vmatprep.subr.mxu0 0.0
        %1319 = vmatpush2.msra.mxu0 0.0
        %1320 = vmatprep.subr.mxu0 0.0
        %1321 = vmatpush2.msra.mxu0 0.0
        %1322 = vmatprep.subr.mxu0 0.0
        %1323 = vmatpush2.msra.mxu0 0.0
        %1324 = vmatprep.subr.mxu0 0.0
        %1325 = vmatpush2.msra.mxu0 0.0
        %1326 = vmatprep.subr.mxu0 0.0
        %1327 = vmatpush2.msra.mxu0 0.0
        %1328 = vmatprep.subr.mxu0 0.0
        %1329 = vmatpush2.msra.mxu0 0.0
        %1330 = vmatprep.subr.mxu0 0.0
        %1331 = vmatpush2.msra.mxu0 0.0
        %1332 = vmatprep.subr.mxu0 0.0
        %1333 = vmatpush2.msra.mxu0 0.0
        %1334 = vmatprep.subr.mxu0 0.0
        %1335 = vmatpush2.msra.mxu0 0.0
        %1336 = vmatprep.subr.mxu0 0.0
        %1337 = vmatpush2.msra.mxu0 0.0
        %1338 = vmatprep.subr.mxu0 0.0
        %1339 = vmatpush2.msra.mxu0 0.0
        %1340 = vmatprep.mubr.f32.mxu0 0.0
        %1341 = vmatmul.mubr.f32.gmra.mxu0 %v1274
        %v1342 = vpop.f32.mrf.mxu0
        %v1343 = vadd.f32 0.0, %v1342
        %v1344 = vpop.f32.mrf.mxu0
        %1345 = vdwg.mxu0
        %1347 = vrot.lane.b32.xlu0 %v1013, 8
        %v1348 = vpop.permute.xlu0 %1347
        %1351 = vrot.lane.b32.xlu0 %v1178, 16
        %v1352 = vpop.permute.xlu0 %1351
        %1355 = vrot.lane.b32.xlu0 %v1343, 24
        %v1356 = vpop.permute.xlu0 %1355
        %v1358 = vsel %vm688, %v848, %v1348
        %vm1359 = vcmask 130048
        %v1360 = vsel %vm1359, %v1358, %v1352
        %vm1361 = vcmask 195584
        %v1362 = vsel %vm1361, %v1360, %v1356
        %v1363 = vld [vmem:[%s3] sm:$0xff]
        %v1364 = vld [vmem:[%s3 + $0x8] sm:$0xff]
        %v1365 = vld [vmem:[%s3 + $0x10] sm:$0xff]
        %v1366 = vld [vmem:[%s3 + $0x18] sm:$0xff]
        %v1367 = vld [vmem:[%s4] sm:$0x1]
        %v1369 = vlaneseq
        %v1370 = vshrl.u32 %v1369, 7
        %v1371 = vsub.s32 0, %v1370
        %v1372 = vrot.slane %v1367, %v1371
        %v1375 = vsel %vm610, %v1362, 0
        %1377 = vmatprep.subr.mxu0 0.0
        %1378 = vmatpush1.msra.mxu0 0.0
        %1379 = vmatprep.subr.mxu0 0.0
        %1380 = vmatpush1.msra.mxu0 0.0
        %1381 = vmatprep.subr.mxu0 0.0
        %1382 = vmatpush1.msra.mxu0 0.0
        %1383 = vmatprep.subr.mxu0 0.0
        %1384 = vmatpush1.msra.mxu0 0.0
        %1385 = vmatprep.subr.mxu0 0.0
        %1386 = vmatpush1.msra.mxu0 0.0
        %1387 = vmatprep.subr.mxu0 0.0
        %1388 = vmatpush1.msra.mxu0 0.0
        %1389 = vmatprep.subr.mxu0 0.0
        %1390 = vmatpush1.msra.mxu0 0.0
        %1391 = vmatprep.subr.mxu0 0.0
        %1392 = vmatpush1.msra.mxu0 0.0
        %1393 = vmatprep.subr.mxu0 0.0
        %1394 = vmatpush1.msra.mxu0 0.0
        %1395 = vmatprep.subr.mxu0 0.0
        %1396 = vmatpush1.msra.mxu0 0.0
        %1397 = vmatprep.subr.mxu0 0.0
        %1398 = vmatpush1.msra.mxu0 0.0
        %1399 = vmatprep.subr.mxu0 0.0
        %1400 = vmatpush1.msra.mxu0 0.0
        %1401 = vmatprep.subr.mxu0 0.0
        %1402 = vmatpush1.msra.mxu0 %v1366
        %1403 = vmatprep.subr.mxu0 0.0
        %1404 = vmatpush1.msra.mxu0 %v1365
        %1405 = vmatprep.subr.mxu0 0.0
        %1406 = vmatpush1.msra.mxu0 %v1364
        %1407 = vmatprep.subr.mxu0 0.0
        %1408 = vmatpush1.msra.mxu0 %v1363
        %1409 = vmatprep.subr.mxu0 0.0
        %1410 = vmatpush2.msra.mxu0 0.0
        %1411 = vmatprep.subr.mxu0 0.0
        %1412 = vmatpush2.msra.mxu0 0.0
        %1413 = vmatprep.subr.mxu0 0.0
        %1414 = vmatpush2.msra.mxu0 0.0
        %1415 = vmatprep.subr.mxu0 0.0
        %1416 = vmatpush2.msra.mxu0 0.0
        %1417 = vmatprep.subr.mxu0 0.0
        %1418 = vmatpush2.msra.mxu0 0.0
        %1419 = vmatprep.subr.mxu0 0.0
        %1420 = vmatpush2.msra.mxu0 0.0
        %1421 = vmatprep.subr.mxu0 0.0
        %1422 = vmatpush2.msra.mxu0 0.0
        %1423 = vmatprep.subr.mxu0 0.0
        %1424 = vmatpush2.msra.mxu0 0.0
        %1425 = vmatprep.subr.mxu0 0.0
        %1426 = vmatpush2.msra.mxu0 0.0
        %1427 = vmatprep.subr.mxu0 0.0
        %1428 = vmatpush2.msra.mxu0 0.0
        %1429 = vmatprep.subr.mxu0 0.0
        %1430 = vmatpush2.msra.mxu0 0.0
        %1431 = vmatprep.subr.mxu0 0.0
        %1432 = vmatpush2.msra.mxu0 0.0
        %1433 = vmatprep.subr.mxu0 0.0
        %1434 = vmatpush2.msra.mxu0 0.0
        %1435 = vmatprep.subr.mxu0 0.0
        %1436 = vmatpush2.msra.mxu0 0.0
        %1437 = vmatprep.subr.mxu0 0.0
        %1438 = vmatpush2.msra.mxu0 0.0
        %1439 = vmatprep.subr.mxu0 0.0
        %1440 = vmatpush2.msra.mxu0 0.0
        %1441 = vmatprep.mubr.f32.mxu0 0.0
        %1442 = vmatmul.mubr.f32.gmra.mxu0 %v1375
        %v1443 = vpop.f32.mrf.mxu0
        %v1444 = vadd.f32 %v1372, %v1443
        %v1445 = vpop.f32.mrf.mxu0
        %1446 = vdwg.mxu0
        %v1447 = vadd.f32 %v598, %v1444
        %v1448 = vld [vmem:[%s9] sm:$0x1]
        %v1449 = vld [vmem:[%s10] sm:$0x1]
        %v1450 = vsel %vm610, %v1447, 0.0
        %1451 = vadd.xlane.f32.xlu0 %v1450
        %v1452 = vpop.xlane.xlu0 %1451
        %v1453 = vrcp.pop 32.0
        %v1454 = vmul.f32 %v1452, %v1453
        %v1455 = vsub.f32 %v1447, %v1454
        %v1456 = vmul.f32 %v1455, %v1455
        %v1457 = vsel %vm610, %v1456, 0.0
        %1458 = vadd.xlane.f32.xlu0 %v1457
        %v1459 = vpop.xlane.xlu0 %1458
        %v1460 = vmul.f32 %v1459, %v1453
        %v1461 = vadd.f32 %v1460, 1e-05
        %v1462 = vrsqrt.pop %v1461
        %v1463 = vmul.f32 %v1455, %v1462
        %v1465 = vlaneseq
        %v1466 = vshrl.u32 %v1465, 7
        %v1467 = vsub.s32 0, %v1466
        %v1468 = vrot.slane %v1448, %v1467
        %v1470 = vmul.f32 %v1463, %v1468
        %v1472 = vlaneseq
        %v1473 = vshrl.u32 %v1472, 7
        %v1474 = vsub.s32 0, %v1473
        %v1475 = vrot.slane %v1449, %v1474
        %v1477 = vadd.f32 %v1470, %v1475
        %v1478 = vld [vmem:[%s5] sm:$0xff]
        %v1479 = vld [vmem:[%s5 + $0x8] sm:$0xff]
        %v1480 = vld [vmem:[%s5 + $0x10] sm:$0xff]
        %v1481 = vld [vmem:[%s5 + $0x18] sm:$0xff]
        %v1482 = vld [vmem:[%s6] sm:$0x1]
        %v1484 = vlaneseq
        %v1485 = vshrl.u32 %v1484, 7
        %v1486 = vsub.s32 0, %v1485
        %v1487 = vrot.slane %v1482, %v1486
        %v1490 = vsel %vm610, %v1477, 0
        %1492 = vmatprep.subr.mxu0 0.0
        %1493 = vmatpush1.msra.mxu0 0.0
        %1494 = vmatprep.subr.mxu0 0.0
        %1495 = vmatpush1.msra.mxu0 0.0
        %1496 = vmatprep.subr.mxu0 0.0
        %1497 = vmatpush1.msra.mxu0 0.0
        %1498 = vmatprep.subr.mxu0 0.0
        %1499 = vmatpush1.msra.mxu0 0.0
        %1500 = vmatprep.subr.mxu0 0.0
        %1501 = vmatpush1.msra.mxu0 0.0
        %1502 = vmatprep.subr.mxu0 0.0
        %1503 = vmatpush1.msra.mxu0 0.0
        %1504 = vmatprep.subr.mxu0 0.0
        %1505 = vmatpush1.msra.mxu0 0.0
        %1506 = vmatprep.subr.mxu0 0.0
        %1507 = vmatpush1.msra.mxu0 0.0
        %1508 = vmatprep.subr.mxu0 0.0
        %1509 = vmatpush1.msra.mxu0 0.0
        %1510 = vmatprep.subr.mxu0 0.0
        %1511 = vmatpush1.msra.mxu0 0.0
        %1512 = vmatprep.subr.mxu0 0.0
        %1513 = vmatpush1.msra.mxu0 0.0
        %1514 = vmatprep.subr.mxu0 0.0
        %1515 = vmatpush1.msra.mxu0 0.0
        %1516 = vmatprep.subr.mxu0 0.0
        %1517 = vmatpush1.msra.mxu0 %v1481
        %1518 = vmatprep.subr.mxu0 0.0
        %1519 = vmatpush1.msra.mxu0 %v1480
        %1520 = vmatprep.subr.mxu0 0.0
        %1521 = vmatpush1.msra.mxu0 %v1479
        %1522 = vmatprep.subr.mxu0 0.0
        %1523 = vmatpush1.msra.mxu0 %v1478
        %1524 = vmatprep.subr.mxu0 0.0
        %1525 = vmatpush2.msra.mxu0 0.0
        %1526 = vmatprep.subr.mxu0 0.0
        %1527 = vmatpush2.msra.mxu0 0.0
        %1528 = vmatprep.subr.mxu0 0.0
        %1529 = vmatpush2.msra.mxu0 0.0
        %1530 = vmatprep.subr.mxu0 0.0
        %1531 = vmatpush2.msra.mxu0 0.0
        %1532 = vmatprep.subr.mxu0 0.0
        %1533 = vmatpush2.msra.mxu0 0.0
        %1534 = vmatprep.subr.mxu0 0.0
        %1535 = vmatpush2.msra.mxu0 0.0
        %1536 = vmatprep.subr.mxu0 0.0
        %1537 = vmatpush2.msra.mxu0 0.0
        %1538 = vmatprep.subr.mxu0 0.0
        %1539 = vmatpush2.msra.mxu0 0.0
        %1540 = vmatprep.subr.mxu0 0.0
        %1541 = vmatpush2.msra.mxu0 0.0
        %1542 = vmatprep.subr.mxu0 0.0
        %1543 = vmatpush2.msra.mxu0 0.0
        %1544 = vmatprep.subr.mxu0 0.0
        %1545 = vmatpush2.msra.mxu0 0.0
        %1546 = vmatprep.subr.mxu0 0.0
        %1547 = vmatpush2.msra.mxu0 0.0
        %1548 = vmatprep.subr.mxu0 0.0
        %1549 = vmatpush2.msra.mxu0 0.0
        %1550 = vmatprep.subr.mxu0 0.0
        %1551 = vmatpush2.msra.mxu0 0.0
        %1552 = vmatprep.subr.mxu0 0.0
        %1553 = vmatpush2.msra.mxu0 0.0
        %1554 = vmatprep.subr.mxu0 0.0
        %1555 = vmatpush2.msra.mxu0 0.0
        %1556 = vmatprep.mubr.f32.mxu0 0.0
        %1557 = vmatmul.mubr.f32.gmra.mxu0 %v1490
        %v1558 = vpop.f32.mrf.mxu0
        %v1559 = vadd.f32 %v1487, %v1558
        %v1560 = vpop.f32.mrf.mxu0
        %1561 = vdwg.mxu0
        %v1562 = vmul.f32 %v1559, %v1559
        %v1563 = vmul.f32 %v1559, %v1562
        %v1564 = vmul.f32 %v1563, 0.044715
        %v1565 = vadd.f32 %v1559, %v1564
        %v1566 = vmul.f32 %v1565, 0.7978846
        %v1567 = vtanh.pop %v1566
        %v1568 = vadd.f32 %v1567, 1.0
        %v1569 = vmul.f32 %v1568, 0.5
        %v1570 = vmul.f32 %v1559, %v1569
        %v1571 = vld [vmem:[%s7] sm:$0xff]
        %v1572 = vld [vmem:[%s7 + $0x8] sm:$0xff]
        %v1573 = vld [vmem:[%s7 + $0x10] sm:$0xff]
        %v1574 = vld [vmem:[%s7 + $0x18] sm:$0xff]
        %v1575 = vld [vmem:[%s7 + $0x20] sm:$0xff]
        %v1576 = vld [vmem:[%s7 + $0x28] sm:$0xff]
        %v1577 = vld [vmem:[%s7 + $0x30] sm:$0xff]
        %v1578 = vld [vmem:[%s7 + $0x38] sm:$0xff]
        %v1579 = vld [vmem:[%s8] sm:$0x1]
        %v1581 = vlaneseq
        %v1582 = vshrl.u32 %v1581, 7
        %v1583 = vsub.s32 0, %v1582
        %v1584 = vrot.slane %v1579, %v1583
        %vm1586 = vcmask 523264
        %v1588 = vsel %vm1586, %v1570, 0
        %1590 = vmatprep.subr.mxu0 0.0
        %1591 = vmatpush1.msra.mxu0 0.0
        %1592 = vmatprep.subr.mxu0 0.0
        %1593 = vmatpush1.msra.mxu0 0.0
        %1594 = vmatprep.subr.mxu0 0.0
        %1595 = vmatpush1.msra.mxu0 0.0
        %1596 = vmatprep.subr.mxu0 0.0
        %1597 = vmatpush1.msra.mxu0 0.0
        %1598 = vmatprep.subr.mxu0 0.0
        %1599 = vmatpush1.msra.mxu0 0.0
        %1600 = vmatprep.subr.mxu0 0.0
        %1601 = vmatpush1.msra.mxu0 0.0
        %1602 = vmatprep.subr.mxu0 0.0
        %1603 = vmatpush1.msra.mxu0 0.0
        %1604 = vmatprep.subr.mxu0 0.0
        %1605 = vmatpush1.msra.mxu0 0.0
        %1606 = vmatprep.subr.mxu0 0.0
        %1607 = vmatpush1.msra.mxu0 %v1578
        %1608 = vmatprep.subr.mxu0 0.0
        %1609 = vmatpush1.msra.mxu0 %v1577
        %1610 = vmatprep.subr.mxu0 0.0
        %1611 = vmatpush1.msra.mxu0 %v1576
        %1612 = vmatprep.subr.mxu0 0.0
        %1613 = vmatpush1.msra.mxu0 %v1575
        %1614 = vmatprep.subr.mxu0 0.0
        %1615 = vmatpush1.msra.mxu0 %v1574
        %1616 = vmatprep.subr.mxu0 0.0
        %1617 = vmatpush1.msra.mxu0 %v1573
        %1618 = vmatprep.subr.mxu0 0.0
        %1619 = vmatpush1.msra.mxu0 %v1572
        %1620 = vmatprep.subr.mxu0 0.0
        %1621 = vmatpush1.msra.mxu0 %v1571
        %1622 = vmatprep.subr.mxu0 0.0
        %1623 = vmatpush2.msra.mxu0 0.0
        %1624 = vmatprep.subr.mxu0 0.0
        %1625 = vmatpush2.msra.mxu0 0.0
        %1626 = vmatprep.subr.mxu0 0.0
        %1627 = vmatpush2.msra.mxu0 0.0
        %1628 = vmatprep.subr.mxu0 0.0
        %1629 = vmatpush2.msra.mxu0 0.0
        %1630 = vmatprep.subr.mxu0 0.0
        %1631 = vmatpush2.msra.mxu0 0.0
        %1632 = vmatprep.subr.mxu0 0.0
        %1633 = vmatpush2.msra.mxu0 0.0
        %1634 = vmatprep.subr.mxu0 0.0
        %1635 = vmatpush2.msra.mxu0 0.0
        %1636 = vmatprep.subr.mxu0 0.0
        %1637 = vmatpush2.msra.mxu0 0.0
        %1638 = vmatprep.subr.mxu0 0.0
        %1639 = vmatpush2.msra.mxu0 0.0
        %1640 = vmatprep.subr.mxu0 0.0
        %1641 = vmatpush2.msra.mxu0 0.0
        %1642 = vmatprep.subr.mxu0 0.0
        %1643 = vmatpush2.msra.mxu0 0.0
        %1644 = vmatprep.subr.mxu0 0.0
        %1645 = vmatpush2.msra.mxu0 0.0
        %1646 = vmatprep.subr.mxu0 0.0
        %1647 = vmatpush2.msra.mxu0 0.0
        %1648 = vmatprep.subr.mxu0 0.0
        %1649 = vmatpush2.msra.mxu0 0.0
        %1650 = vmatprep.subr.mxu0 0.0
        %1651 = vmatpush2.msra.mxu0 0.0
        %1652 = vmatprep.subr.mxu0 0.0
        %1653 = vmatpush2.msra.mxu0 0.0
        %1654 = vmatprep.mubr.f32.mxu0 0.0
        %1655 = vmatmul.mubr.f32.gmra.mxu0 %v1588
        %v1656 = vpop.f32.mrf.mxu0
        %v1657 = vadd.f32 %v1584, %v1656
        %v1658 = vpop.f32.mrf.mxu0
        %1659 = vdwg.mxu0
        %v1660 = vadd.f32 %v1477, %v1657
        %v1661 = vld [vmem:[%s11] sm:$0x1]
        %v1662 = vld [vmem:[%s12] sm:$0x1]
        %v1663 = vsel %vm610, %v1660, 0.0
        %1664 = vadd.xlane.f32.xlu0 %v1663
        %v1665 = vpop.xlane.xlu0 %1664
        %v1666 = vmul.f32 %v1665, %v1453
        %v1667 = vsub.f32 %v1660, %v1666
        %v1668 = vmul.f32 %v1667, %v1667
        %v1669 = vsel %vm610, %v1668, 0.0
        %1670 = vadd.xlane.f32.xlu0 %v1669
        %v1671 = vpop.xlane.xlu0 %1670
        %v1672 = vmul.f32 %v1671, %v1453
        %v1673 = vadd.f32 %v1672, 1e-12
        %v1674 = vrsqrt.pop %v1673
        %v1675 = vmul.f32 %v1667, %v1674
        %v1677 = vlaneseq
        %v1678 = vshrl.u32 %v1677, 7
        %v1679 = vsub.s32 0, %v1678
        %v1680 = vrot.slane %v1661, %v1679
        %v1682 = vmul.f32 %v1675, %v1680
        %v1684 = vlaneseq
        %v1685 = vshrl.u32 %v1684, 7
        %v1686 = vsub.s32 0, %v1685
        %v1687 = vrot.slane %v1662, %v1686
        %v1689 = vadd.f32 %v1682, %v1687
        %s1690 = scalar_lea.vmem %s1, 32
        %v1691 = vld [vmem:[%s1690] sm:$0xff]
        %v1692 = vld [vmem:[%s1690 + $0x8] sm:$0xff]
        %v1693 = vld [vmem:[%s1690 + $0x10] sm:$0xff]
        %v1694 = vld [vmem:[%s1690 + $0x18] sm:$0xff]
        %s1695 = scalar_lea.vmem %s2, 1
        %v1696 = vld [vmem:[%s1695] sm:$0x1]
        %v1698 = vlaneseq
        %v1699 = vshrl.u32 %v1698, 7
        %v1700 = vsub.s32 0, %v1699
        %v1701 = vrot.slane %v1696, %v1700
        %v1704 = vsel %vm610, %v1689, 0
        %1706 = vmatprep.subr.mxu0 0.0
        %1707 = vmatpush1.msra.mxu0 0.0
        %1708 = vmatprep.subr.mxu0 0.0
        %1709 = vmatpush1.msra.mxu0 0.0
        %1710 = vmatprep.subr.mxu0 0.0
        %1711 = vmatpush1.msra.mxu0 0.0
        %1712 = vmatprep.subr.mxu0 0.0
        %1713 = vmatpush1.msra.mxu0 0.0
        %1714 = vmatprep.subr.mxu0 0.0
        %1715 = vmatpush1.msra.mxu0 0.0
        %1716 = vmatprep.subr.mxu0 0.0
        %1717 = vmatpush1.msra.mxu0 0.0
        %1718 = vmatprep.subr.mxu0 0.0
        %1719 = vmatpush1.msra.mxu0 0.0
        %1720 = vmatprep.subr.mxu0 0.0
        %1721 = vmatpush1.msra.mxu0 0.0
        %1722 = vmatprep.subr.mxu0 0.0
        %1723 = vmatpush1.msra.mxu0 0.0
        %1724 = vmatprep.subr.mxu0 0.0
        %1725 = vmatpush1.msra.mxu0 0.0
        %1726 = vmatprep.subr.mxu0 0.0
        %1727 = vmatpush1.msra.mxu0 0.0
        %1728 = vmatprep.subr.mxu0 0.0
        %1729 = vmatpush1.msra.mxu0 0.0
        %1730 = vmatprep.subr.mxu0 0.0
        %1731 = vmatpush1.msra.mxu0 %v1694
        %1732 = vmatprep.subr.mxu0 0.0
        %1733 = vmatpush1.msra.mxu0 %v1693
        %1734 = vmatprep.subr.mxu0 0.0
        %1735 = vmatpush1.msra.mxu0 %v1692
        %1736 = vmatprep.subr.mxu0 0.0
        %1737 = vmatpush1.msra.mxu0 %v1691
        %1738 = vmatprep.subr.mxu0 0.0
        %1739 = vmatpush2.msra.mxu0 0.0
        %1740 = vmatprep.subr.mxu0 0.0
        %1741 = vmatpush2.msra.mxu0 0.0
        %1742 = vmatprep.subr.mxu0 0.0
        %1743 = vmatpush2.msra.mxu0 0.0
        %1744 = vmatprep.subr.mxu0 0.0
        %1745 = vmatpush2.msra.mxu0 0.0
        %1746 = vmatprep.subr.mxu0 0.0
        %1747 = vmatpush2.msra.mxu0 0.0
        %1748 = vmatprep.subr.mxu0 0.0
        %1749 = vmatpush2.msra.mxu0 0.0
        %1750 = vmatprep.subr.mxu0 0.0
        %1751 = vmatpush2.msra.mxu0 0.0
        %1752 = vmatprep.subr.mxu0 0.0
        %1753 = vmatpush2.msra.mxu0 0.0
        %1754 = vmatprep.subr.mxu0 0.0
        %1755 = vmatpush2.msra.mxu0 0.0
        %1756 = vmatprep.subr.mxu0 0.0
        %1757 = vmatpush2.msra.mxu0 0.0
        %1758 = vmatprep.subr.mxu0 0.0
        %1759 = vmatpush2.msra.mxu0 0.0
        %1760 = vmatprep.subr.mxu0 0.0
        %1761 = vmatpush2.msra.mxu0 0.0
        %1762 = vmatprep.subr.mxu0 0.0
        %1763 = vmatpush2.msra.mxu0 0.0
        %1764 = vmatprep.subr.mxu0 0.0
        %1765 = vmatpush2.msra.mxu0 0.0
        %1766 = vmatprep.subr.mxu0 0.0
        %1767 = vmatpush2.msra.mxu0 0.0
        %1768 = vmatprep.subr.mxu0 0.0
        %1769 = vmatpush2.msra.mxu0 0.0
        %1770 = vmatprep.mubr.f32.mxu0 0.0
        %1771 = vmatmul.mubr.f32.gmra.mxu0 %v1704
        %v1772 = vpop.f32.mrf.mxu0
        %v1773 = vadd.f32 %v1701, %v1772
        %v1774 = vpop.f32.mrf.mxu0
        %1775 = vdwg.mxu0
        %v1776 = vmul.f32 %v1773, 0.35355338
        %1778 = vrot.lane.b32.xlu0 %v1773, 96
        %v1779 = vpop.permute.xlu0 %1778
        %v1781 = vsel %vm688, %v1776, 0
        %v1783 = vsel %vm688, %v1779, 0
        %1785 = vmatprep.subr.mxu0 0.0
        %1786 = vmatpush1.xpose.msra.mxu0 0.0
        %1787 = vmatprep.subr.mxu0 0.0
        %1788 = vmatpush1.xpose.msra.mxu0 0.0
        %1789 = vmatprep.subr.mxu0 0.0
        %1790 = vmatpush1.xpose.msra.mxu0 0.0
        %1791 = vmatprep.subr.mxu0 0.0
        %1792 = vmatpush1.xpose.msra.mxu0 0.0
        %1793 = vmatprep.subr.mxu0 0.0
        %1794 = vmatpush1.xpose.msra.mxu0 0.0
        %1795 = vmatprep.subr.mxu0 0.0
        %1796 = vmatpush1.xpose.msra.mxu0 0.0
        %1797 = vmatprep.subr.mxu0 0.0
        %1798 = vmatpush1.xpose.msra.mxu0 0.0
        %1799 = vmatprep.subr.mxu0 0.0
        %1800 = vmatpush1.xpose.msra.mxu0 0.0
        %1801 = vmatprep.subr.mxu0 0.0
        %1802 = vmatpush1.xpose.msra.mxu0 0.0
        %1803 = vmatprep.subr.mxu0 0.0
        %1804 = vmatpush1.xpose.msra.mxu0 0.0
        %1805 = vmatprep.subr.mxu0 0.0
        %1806 = vmatpush1.xpose.msra.mxu0 0.0
        %1807 = vmatprep.subr.mxu0 0.0
        %1808 = vmatpush1.xpose.msra.mxu0 0.0
        %1809 = vmatprep.subr.mxu0 0.0
        %1810 = vmatpush1.xpose.msra.mxu0 0.0
        %1811 = vmatprep.subr.mxu0 0.0
        %1812 = vmatpush1.xpose.msra.mxu0 0.0
        %1813 = vmatprep.subr.mxu0 0.0
        %1814 = vmatpush1.xpose.msra.mxu0 0.0
        %1815 = vmatprep.subr.mxu0 0.0
        %1816 = vmatpush1.xpose.msra.mxu0 %v1783
        %1817 = vmatprep.subr.mxu0 0.0
        %1818 = vmatpush2.xpose.msra.mxu0 0.0
        %1819 = vmatprep.subr.mxu0 0.0
        %1820 = vmatpush2.xpose.msra.mxu0 0.0
        %1821 = vmatprep.subr.mxu0 0.0
        %1822 = vmatpush2.xpose.msra.mxu0 0.0
        %1823 = vmatprep.subr.mxu0 0.0
        %1824 = vmatpush2.xpose.msra.mxu0 0.0
        %1825 = vmatprep.subr.mxu0 0.0
        %1826 = vmatpush2.xpose.msra.mxu0 0.0
        %1827 = vmatprep.subr.mxu0 0.0
        %1828 = vmatpush2.xpose.msra.mxu0 0.0
        %1829 = vmatprep.subr.mxu0 0.0
        %1830 = vmatpush2.xpose.msra.mxu0 0.0
        %1831 = vmatprep.subr.mxu0 0.0
        %1832 = vmatpush2.xpose.msra.mxu0 0.0
        %1833 = vmatprep.subr.mxu0 0.0
        %1834 = vmatpush2.xpose.msra.mxu0 0.0
        %1835 = vmatprep.subr.mxu0 0.0
        %1836 = vmatpush2.xpose.msra.mxu0 0.0
        %1837 = vmatprep.subr.mxu0 0.0
        %1838 = vmatpush2.xpose.msra.mxu0 0.0
        %1839 = vmatprep.subr.mxu0 0.0
        %1840 = vmatpush2.xpose.msra.mxu0 0.0
        %1841 = vmatprep.subr.mxu0 0.0
        %1842 = vmatpush2.xpose.msra.mxu0 0.0
        %1843 = vmatprep.subr.mxu0 0.0
        %1844 = vmatpush2.xpose.msra.mxu0 0.0
        %1845 = vmatprep.subr.mxu0 0.0
        %1846 = vmatpush2.xpose.msra.mxu0 0.0
        %1847 = vmatprep.subr.mxu0 0.0
        %1848 = vmatpush2.xpose.msra.mxu0 0.0
        %1849 = vmatprep.mubr.f32.mxu0 0.0
        %1850 = vmatmul.mubr.f32.gmra.mxu0 %v1781
        %v1851 = vpop.f32.mrf.mxu0
        %v1852 = vadd.f32 0.0, %v1851
        %v1853 = vpop.f32.mrf.mxu0
        %1854 = vdwg.mxu0
        %v1855 = vsel %vm688, %v1852, -inf
        %1856 = vmax.xlane.f32.xlu0 %v1855
        %v1857 = vpop.xlane.xlu0 %1856
        %v1858 = vsub.f32 %v1852, %v1857
        %v1859 = vmul.f32 %v1858, 1.442695
        %v1860 = vpow.pop %v1859
        %v1861 = vsel %vm688, %v1860, 0.0
        %1862 = vadd.xlane.f32.xlu0 %v1861
        %v1863 = vpop.xlane.xlu0 %1862
        %v1864 = vrcp.pop %v1863
        %v1865 = vmul.f32 %v1860, %v1864
        %1866 = vrot.lane.b32.xlu0 %v1773, 64
        %v1867 = vpop.permute.xlu0 %1866
        %v1870 = vsel %vm688, %v1865, 0
        %1872 = vmatprep.subr.mxu0 0.0
        %1873 = vmatpush1.msra.mxu0 0.0
        %1874 = vmatprep.subr.mxu0 0.0
        %1875 = vmatpush1.msra.mxu0 0.0
        %1876 = vmatprep.subr.mxu0 0.0
        %1877 = vmatpush1.msra.mxu0 0.0
        %1878 = vmatprep.subr.mxu0 0.0
        %1879 = vmatpush1.msra.mxu0 0.0
        %1880 = vmatprep.subr.mxu0 0.0
        %1881 = vmatpush1.msra.mxu0 0.0
        %1882 = vmatprep.subr.mxu0 0.0
        %1883 = vmatpush1.msra.mxu0 0.0
        %1884 = vmatprep.subr.mxu0 0.0
        %1885 = vmatpush1.msra.mxu0 0.0
        %1886 = vmatprep.subr.mxu0 0.0
        %1887 = vmatpush1.msra.mxu0 0.0
        %1888 = vmatprep.subr.mxu0 0.0
        %1889 = vmatpush1.msra.mxu0 0.0
        %1890 = vmatprep.subr.mxu0 0.0
        %1891 = vmatpush1.msra.mxu0 0.0
        %1892 = vmatprep.subr.mxu0 0.0
        %1893 = vmatpush1.msra.mxu0 0.0
        %1894 = vmatprep.subr.mxu0 0.0
        %1895 = vmatpush1.msra.mxu0 0.0
        %1896 = vmatprep.subr.mxu0 0.0
        %1897 = vmatpush1.msra.mxu0 0.0
        %1898 = vmatprep.subr.mxu0 0.0
        %1899 = vmatpush1.msra.mxu0 0.0
        %1900 = vmatprep.subr.mxu0 0.0
        %1901 = vmatpush1.msra.mxu0 0.0
        %1902 = vmatprep.subr.mxu0 0.0
        %1903 = vmatpush1.msra.mxu0 %v1867
        %1904 = vmatprep.subr.mxu0 0.0
        %1905 = vmatpush2.msra.mxu0 0.0
        %1906 = vmatprep.subr.mxu0 0.0
        %1907 = vmatpush2.msra.mxu0 0.0
        %1908 = vmatprep.subr.mxu0 0.0
        %1909 = vmatpush2.msra.mxu0 0.0
        %1910 = vmatprep.subr.mxu0 0.0
        %1911 = vmatpush2.msra.mxu0 0.0
        %1912 = vmatprep.subr.mxu0 0.0
        %1913 = vmatpush2.msra.mxu0 0.0
        %1914 = vmatprep.subr.mxu0 0.0
        %1915 = vmatpush2.msra.mxu0 0.0
        %1916 = vmatprep.subr.mxu0 0.0
        %1917 = vmatpush2.msra.mxu0 0.0
        %1918 = vmatprep.subr.mxu0 0.0
        %1919 = vmatpush2.msra.mxu0 0.0
        %1920 = vmatprep.subr.mxu0 0.0
        %1921 = vmatpush2.msra.mxu0 0.0
        %1922 = vmatprep.subr.mxu0 0.0
        %1923 = vmatpush2.msra.mxu0 0.0
        %1924 = vmatprep.subr.mxu0 0.0
        %1925 = vmatpush2.msra.mxu0 0.0
        %1926 = vmatprep.subr.mxu0 0.0
        %1927 = vmatpush2.msra.mxu0 0.0
        %1928 = vmatprep.subr.mxu0 0.0
        %1929 = vmatpush2.msra.mxu0 0.0
        %1930 = vmatprep.subr.mxu0 0.0
        %1931 = vmatpush2.msra.mxu0 0.0
        %1932 = vmatprep.subr.mxu0 0.0
        %1933 = vmatpush2.msra.mxu0 0.0
        %1934 = vmatprep.subr.mxu0 0.0
        %1935 = vmatpush2.msra.mxu0 0.0
        %1936 = vmatprep.mubr.f32.mxu0 0.0
        %1937 = vmatmul.mubr.f32.gmra.mxu0 %v1870
        %v1938 = vpop.f32.mrf.mxu0
        %v1939 = vadd.f32 0.0, %v1938
        %v1940 = vpop.f32.mrf.mxu0
        %1941 = vdwg.mxu0
        %1942 = vrot.lane.b32.xlu0 %v1776, 120
        %v1943 = vpop.permute.xlu0 %1942
        %1944 = vrot.lane.b32.xlu0 %v1773, 88
        %v1945 = vpop.permute.xlu0 %1944
        %v1946 = vsel %vm688, %v1943, 0
        %v1948 = vsel %vm688, %v1945, 0
        %1950 = vmatprep.subr.mxu0 0.0
        %1951 = vmatpush1.xpose.msra.mxu0 0.0
        %1952 = vmatprep.subr.mxu0 0.0
        %1953 = vmatpush1.xpose.msra.mxu0 0.0
        %1954 = vmatprep.subr.mxu0 0.0
        %1955 = vmatpush1.xpose.msra.mxu0 0.0
        %1956 = vmatprep.subr.mxu0 0.0
        %1957 = vmatpush1.xpose.msra.mxu0 0.0
        %1958 = vmatprep.subr.mxu0 0.0
        %1959 = vmatpush1.xpose.msra.mxu0 0.0
        %1960 = vmatprep.subr.mxu0 0.0
        %1961 = vmatpush1.xpose.msra.mxu0 0.0
        %1962 = vmatprep.subr.mxu0 0.0
        %1963 = vmatpush1.xpose.msra.mxu0 0.0
        %1964 = vmatprep.subr.mxu0 0.0
        %1965 = vmatpush1.xpose.msra.mxu0 0.0
        %1966 = vmatprep.subr.mxu0 0.0
        %1967 = vmatpush1.xpose.msra.mxu0 0.0
        %1968 = vmatprep.subr.mxu0 0.0
        %1969 = vmatpush1.xpose.msra.mxu0 0.0
        %1970 = vmatprep.subr.mxu0 0.0
        %1971 = vmatpush1.xpose.msra.mxu0 0.0
        %1972 = vmatprep.subr.mxu0 0.0
        %1973 = vmatpush1.xpose.msra.mxu0 0.0
        %1974 = vmatprep.subr.mxu0 0.0
        %1975 = vmatpush1.xpose.msra.mxu0 0.0
        %1976 = vmatprep.subr.mxu0 0.0
        %1977 = vmatpush1.xpose.msra.mxu0 0.0
        %1978 = vmatprep.subr.mxu0 0.0
        %1979 = vmatpush1.xpose.msra.mxu0 0.0
        %1980 = vmatprep.subr.mxu0 0.0
        %1981 = vmatpush1.xpose.msra.mxu0 %v1948
        %1982 = vmatprep.subr.mxu0 0.0
        %1983 = vmatpush2.xpose.msra.mxu0 0.0
        %1984 = vmatprep.subr.mxu0 0.0
        %1985 = vmatpush2.xpose.msra.mxu0 0.0
        %1986 = vmatprep.subr.mxu0 0.0
        %1987 = vmatpush2.xpose.msra.mxu0 0.0
        %1988 = vmatprep.subr.mxu0 0.0
        %1989 = vmatpush2.xpose.msra.mxu0 0.0
        %1990 = vmatprep.subr.mxu0 0.0
        %1991 = vmatpush2.xpose.msra.mxu0 0.0
        %1992 = vmatprep.subr.mxu0 0.0
        %1993 = vmatpush2.xpose.msra.mxu0 0.0
        %1994 = vmatprep.subr.mxu0 0.0
        %1995 = vmatpush2.xpose.msra.mxu0 0.0
        %1996 = vmatprep.subr.mxu0 0.0
        %1997 = vmatpush2.xpose.msra.mxu0 0.0
        %1998 = vmatprep.subr.mxu0 0.0
        %1999 = vmatpush2.xpose.msra.mxu0 0.0
        %2000 = vmatprep.subr.mxu0 0.0
        %2001 = vmatpush2.xpose.msra.mxu0 0.0
        %2002 = vmatprep.subr.mxu0 0.0
        %2003 = vmatpush2.xpose.msra.mxu0 0.0
        %2004 = vmatprep.subr.mxu0 0.0
        %2005 = vmatpush2.xpose.msra.mxu0 0.0
        %2006 = vmatprep.subr.mxu0 0.0
        %2007 = vmatpush2.xpose.msra.mxu0 0.0
        %2008 = vmatprep.subr.mxu0 0.0
        %2009 = vmatpush2.xpose.msra.mxu0 0.0
        %2010 = vmatprep.subr.mxu0 0.0
        %2011 = vmatpush2.xpose.msra.mxu0 0.0
        %2012 = vmatprep.subr.mxu0 0.0
        %2013 = vmatpush2.xpose.msra.mxu0 0.0
        %2014 = vmatprep.mubr.f32.mxu0 0.0
        %2015 = vmatmul.mubr.f32.gmra.mxu0 %v1946
        %v2016 = vpop.f32.mrf.mxu0
        %v2017 = vadd.f32 0.0, %v2016
        %v2018 = vpop.f32.mrf.mxu0
        %2019 = vdwg.mxu0
        %v2020 = vsel %vm688, %v2017, -inf
        %2021 = vmax.xlane.f32.xlu0 %v2020
        %v2022 = vpop.xlane.xlu0 %2021
        %v2023 = vsub.f32 %v2017, %v2022
        %v2024 = vmul.f32 %v2023, 1.442695
        %v2025 = vpow.pop %v2024
        %v2026 = vsel %vm688, %v2025, 0.0
        %2027 = vadd.xlane.f32.xlu0 %v2026
        %v2028 = vpop.xlane.xlu0 %2027
        %v2029 = vrcp.pop %v2028
        %v2030 = vmul.f32 %v2025, %v2029
        %2031 = vrot.lane.b32.xlu0 %v1773, 56
        %v2032 = vpop.permute.xlu0 %2031
        %v2035 = vsel %vm688, %v2030, 0
        %2037 = vmatprep.subr.mxu0 0.0
        %2038 = vmatpush1.msra.mxu0 0.0
        %2039 = vmatprep.subr.mxu0 0.0
        %2040 = vmatpush1.msra.mxu0 0.0
        %2041 = vmatprep.subr.mxu0 0.0
        %2042 = vmatpush1.msra.mxu0 0.0
        %2043 = vmatprep.subr.mxu0 0.0
        %2044 = vmatpush1.msra.mxu0 0.0
        %2045 = vmatprep.subr.mxu0 0.0
        %2046 = vmatpush1.msra.mxu0 0.0
        %2047 = vmatprep.subr.mxu0 0.0
        %2048 = vmatpush1.msra.mxu0 0.0
        %2049 = vmatprep.subr.mxu0 0.0
        %2050 = vmatpush1.msra.mxu0 0.0
        %2051 = vmatprep.subr.mxu0 0.0
        %2052 = vmatpush1.msra.mxu0 0.0
        %2053 = vmatprep.subr.mxu0 0.0
        %2054 = vmatpush1.msra.mxu0 0.0
        %2055 = vmatprep.subr.mxu0 0.0
        %2056 = vmatpush1.msra.mxu0 0.0
        %2057 = vmatprep.subr.mxu0 0.0
        %2058 = vmatpush1.msra.mxu0 0.0
        %2059 = vmatprep.subr.mxu0 0.0
        %2060 = vmatpush1.msra.mxu0 0.0
        %2061 = vmatprep.subr.mxu0 0.0
        %2062 = vmatpush1.msra.mxu0 0.0
        %2063 = vmatprep.subr.mxu0 0.0
        %2064 = vmatpush1.msra.mxu0 0.0
        %2065 = vmatprep.subr.mxu0 0.0
        %2066 = vmatpush1.msra.mxu0 0.0
        %2067 = vmatprep.subr.mxu0 0.0
        %2068 = vmatpush1.msra.mxu0 %v2032
        %2069 = vmatprep.subr.mxu0 0.0
        %2070 = vmatpush2.msra.mxu0 0.0
        %2071 = vmatprep.subr.mxu0 0.0
        %2072 = vmatpush2.msra.mxu0 0.0
        %2073 = vmatprep.subr.mxu0 0.0
        %2074 = vmatpush2.msra.mxu0 0.0
        %2075 = vmatprep.subr.mxu0 0.0
        %2076 = vmatpush2.msra.mxu0 0.0
        %2077 = vmatprep.subr.mxu0 0.0
        %2078 = vmatpush2.msra.mxu0 0.0
        %2079 = vmatprep.subr.mxu0 0.0
        %2080 = vmatpush2.msra.mxu0 0.0
        %2081 = vmatprep.subr.mxu0 0.0
        %2082 = vmatpush2.msra.mxu0 0.0
        %2083 = vmatprep.subr.mxu0 0.0
        %2084 = vmatpush2.msra.mxu0 0.0
        %2085 = vmatprep.subr.mxu0 0.0
        %2086 = vmatpush2.msra.mxu0 0.0
        %2087 = vmatprep.subr.mxu0 0.0
        %2088 = vmatpush2.msra.mxu0 0.0
        %2089 = vmatprep.subr.mxu0 0.0
        %2090 = vmatpush2.msra.mxu0 0.0
        %2091 = vmatprep.subr.mxu0 0.0
        %2092 = vmatpush2.msra.mxu0 0.0
        %2093 = vmatprep.subr.mxu0 0.0
        %2094 = vmatpush2.msra.mxu0 0.0
        %2095 = vmatprep.subr.mxu0 0.0
        %2096 = vmatpush2.msra.mxu0 0.0
        %2097 = vmatprep.subr.mxu0 0.0
        %2098 = vmatpush2.msra.mxu0 0.0
        %2099 = vmatprep.subr.mxu0 0.0
        %2100 = vmatpush2.msra.mxu0 0.0
        %2101 = vmatprep.mubr.f32.mxu0 0.0
        %2102 = vmatmul.mubr.f32.gmra.mxu0 %v2035
        %v2103 = vpop.f32.mrf.mxu0
        %v2104 = vadd.f32 0.0, %v2103
        %v2105 = vpop.f32.mrf.mxu0
        %2106 = vdwg.mxu0
        %2107 = vrot.lane.b32.xlu0 %v1776, 112
        %v2108 = vpop.permute.xlu0 %2107
        %2109 = vrot.lane.b32.xlu0 %v1773, 80
        %v2110 = vpop.permute.xlu0 %2109
        %v2111 = vsel %vm688, %v2108, 0
        %v2113 = vsel %vm688, %v2110, 0
        %2115 = vmatprep.subr.mxu0 0.0
        %2116 = vmatpush1.xpose.msra.mxu0 0.0
        %2117 = vmatprep.subr.mxu0 0.0
        %2118 = vmatpush1.xpose.msra.mxu0 0.0
        %2119 = vmatprep.subr.mxu0 0.0
        %2120 = vmatpush1.xpose.msra.mxu0 0.0
        %2121 = vmatprep.subr.mxu0 0.0
        %2122 = vmatpush1.xpose.msra.mxu0 0.0
        %2123 = vmatprep.subr.mxu0 0.0
        %2124 = vmatpush1.xpose.msra.mxu0 0.0
        %2125 = vmatprep.subr.mxu0 0.0
        %2126 = vmatpush1.xpose.msra.mxu0 0.0
        %2127 = vmatprep.subr.mxu0 0.0
        %2128 = vmatpush1.xpose.msra.mxu0 0.0
        %2129 = vmatprep.subr.mxu0 0.0
        %2130 = vmatpush1.xpose.msra.mxu0 0.0
        %2131 = vmatprep.subr.mxu0 0.0
        %2132 = vmatpush1.xpose.msra.mxu0 0.0
        %2133 = vmatprep.subr.mxu0 0.0
        %2134 = vmatpush1.xpose.msra.mxu0 0.0
        %2135 = vmatprep.subr.mxu0 0.0
        %2136 = vmatpush1.xpose.msra.mxu0 0.0
        %2137 = vmatprep.subr.mxu0 0.0
        %2138 = vmatpush1.xpose.msra.mxu0 0.0
        %2139 = vmatprep.subr.mxu0 0.0
        %2140 = vmatpush1.xpose.msra.mxu0 0.0
        %2141 = vmatprep.subr.mxu0 0.0
        %2142 = vmatpush1.xpose.msra.mxu0 0.0
        %2143 = vmatprep.subr.mxu0 0.0
        %2144 = vmatpush1.xpose.msra.mxu0 0.0
        %2145 = vmatprep.subr.mxu0 0.0
        %2146 = vmatpush1.xpose.msra.mxu0 %v2113
        %2147 = vmatprep.subr.mxu0 0.0
        %2148 = vmatpush2.xpose.msra.mxu0 0.0
        %2149 = vmatprep.subr.mxu0 0.0
        %2150 = vmatpush2.xpose.msra.mxu0 0.0
        %2151 = vmatprep.subr.mxu0 0.0
        %2152 = vmatpush2.xpose.msra.mxu0 0.0
        %2153 = vmatprep.subr.mxu0 0.0
        %2154 = vmatpush2.xpose.msra.mxu0 0.0
        %2155 = vmatprep.subr.mxu0 0.0
        %2156 = vmatpush2.xpose.msra.mxu0 0.0
        %2157 = vmatprep.subr.mxu0 0.0
        %2158 = vmatpush2.xpose.msra.mxu0 0.0
        %2159 = vmatprep.subr.mxu0 0.0
        %2160 = vmatpush2.xpose.msra.mxu0 0.0
        %2161 = vmatprep.subr.mxu0 0.0
        %2162 = vmatpush2.xpose.msra.mxu0 0.0
        %2163 = vmatprep.subr.mxu0 0.0
        %2164 = vmatpush2.xpose.msra.mxu0 0.0
        %2165 = vmatprep.subr.mxu0 0.0
        %2166 = vmatpush2.xpose.msra.mxu0 0.0
        %2167 = vmatprep.subr.mxu0 0.0
        %2168 = vmatpush2.xpose.msra.mxu0 0.0
        %2169 = vmatprep.subr.mxu0 0.0
        %2170 = vmatpush2.xpose.msra.mxu0 0.0
        %2171 = vmatprep.subr.mxu0 0.0
        %2172 = vmatpush2.xpose.msra.mxu0 0.0
        %2173 = vmatprep.subr.mxu0 0.0
        %2174 = vmatpush2.xpose.msra.mxu0 0.0
        %2175 = vmatprep.subr.mxu0 0.0
        %2176 = vmatpush2.xpose.msra.mxu0 0.0
        %2177 = vmatprep.subr.mxu0 0.0
        %2178 = vmatpush2.xpose.msra.mxu0 0.0
        %2179 = vmatprep.mubr.f32.mxu0 0.0
        %2180 = vmatmul.mubr.f32.gmra.mxu0 %v2111
        %v2181 = vpop.f32.mrf.mxu0
        %v2182 = vadd.f32 0.0, %v2181
        %v2183 = vpop.f32.mrf.mxu0
        %2184 = vdwg.mxu0
        %v2185 = vsel %vm688, %v2182, -inf
        %2186 = vmax.xlane.f32.xlu0 %v2185
        %v2187 = vpop.xlane.xlu0 %2186
        %v2188 = vsub.f32 %v2182, %v2187
        %v2189 = vmul.f32 %v2188, 1.442695
        %v2190 = vpow.pop %v2189
        %v2191 = vsel %vm688, %v2190, 0.0
        %2192 = vadd.xlane.f32.xlu0 %v2191
        %v2193 = vpop.xlane.xlu0 %2192
        %v2194 = vrcp.pop %v2193
        %v2195 = vmul.f32 %v2190, %v2194
        %2196 = vrot.lane.b32.xlu0 %v1773, 48
        %v2197 = vpop.permute.xlu0 %2196
        %v2200 = vsel %vm688, %v2195, 0
        %2202 = vmatprep.subr.mxu0 0.0
        %2203 = vmatpush1.msra.mxu0 0.0
        %2204 = vmatprep.subr.mxu0 0.0
        %2205 = vmatpush1.msra.mxu0 0.0
        %2206 = vmatprep.subr.mxu0 0.0
        %2207 = vmatpush1.msra.mxu0 0.0
        %2208 = vmatprep.subr.mxu0 0.0
        %2209 = vmatpush1.msra.mxu0 0.0
        %2210 = vmatprep.subr.mxu0 0.0
        %2211 = vmatpush1.msra.mxu0 0.0
        %2212 = vmatprep.subr.mxu0 0.0
        %2213 = vmatpush1.msra.mxu0 0.0
        %2214 = vmatprep.subr.mxu0 0.0
        %2215 = vmatpush1.msra.mxu0 0.0
        %2216 = vmatprep.subr.mxu0 0.0
        %2217 = vmatpush1.msra.mxu0 0.0
        %2218 = vmatprep.subr.mxu0 0.0
        %2219 = vmatpush1.msra.mxu0 0.0
        %2220 = vmatprep.subr.mxu0 0.0
        %2221 = vmatpush1.msra.mxu0 0.0
        %2222 = vmatprep.subr.mxu0 0.0
        %2223 = vmatpush1.msra.mxu0 0.0
        %2224 = vmatprep.subr.mxu0 0.0
        %2225 = vmatpush1.msra.mxu0 0.0
        %2226 = vmatprep.subr.mxu0 0.0
        %2227 = vmatpush1.msra.mxu0 0.0
        %2228 = vmatprep.subr.mxu0 0.0
        %2229 = vmatpush1.msra.mxu0 0.0
        %2230 = vmatprep.subr.mxu0 0.0
        %2231 = vmatpush1.msra.mxu0 0.0
        %2232 = vmatprep.subr.mxu0 0.0
        %2233 = vmatpush1.msra.mxu0 %v2197
        %2234 = vmatprep.subr.mxu0 0.0
        %2235 = vmatpush2.msra.mxu0 0.0
        %2236 = vmatprep.subr.mxu0 0.0
        %2237 = vmatpush2.msra.mxu0 0.0
        %2238 = vmatprep.subr.mxu0 0.0
        %2239 = vmatpush2.msra.mxu0 0.0
        %2240 = vmatprep.subr.mxu0 0.0
        %2241 = vmatpush2.msra.mxu0 0.0
        %2242 = vmatprep.subr.mxu0 0.0
        %2243 = vmatpush2.msra.mxu0 0.0
        %2244 = vmatprep.subr.mxu0 0.0
        %2245 = vmatpush2.msra.mxu0 0.0
        %2246 = vmatprep.subr.mxu0 0.0
        %2247 = vmatpush2.msra.mxu0 0.0
        %2248 = vmatprep.subr.mxu0 0.0
        %2249 = vmatpush2.msra.mxu0 0.0
        %2250 = vmatprep.subr.mxu0 0.0
        %2251 = vmatpush2.msra.mxu0 0.0
        %2252 = vmatprep.subr.mxu0 0.0
        %2253 = vmatpush2.msra.mxu0 0.0
        %2254 = vmatprep.subr.mxu0 0.0
        %2255 = vmatpush2.msra.mxu0 0.0
        %2256 = vmatprep.subr.mxu0 0.0
        %2257 = vmatpush2.msra.mxu0 0.0
        %2258 = vmatprep.subr.mxu0 0.0
        %2259 = vmatpush2.msra.mxu0 0.0
        %2260 = vmatprep.subr.mxu0 0.0
        %2261 = vmatpush2.msra.mxu0 0.0
        %2262 = vmatprep.subr.mxu0 0.0
        %2263 = vmatpush2.msra.mxu0 0.0
        %2264 = vmatprep.subr.mxu0 0.0
        %2265 = vmatpush2.msra.mxu0 0.0
        %2266 = vmatprep.mubr.f32.mxu0 0.0
        %2267 = vmatmul.mubr.f32.gmra.mxu0 %v2200
        %v2268 = vpop.f32.mrf.mxu0
        %v2269 = vadd.f32 0.0, %v2268
        %v2270 = vpop.f32.mrf.mxu0
        %2271 = vdwg.mxu0
        %2272 = vrot.lane.b32.xlu0 %v1776, 104
        %v2273 = vpop.permute.xlu0 %2272
        %2274 = vrot.lane.b32.xlu0 %v1773, 72
        %v2275 = vpop.permute.xlu0 %2274
        %v2276 = vsel %vm688, %v2273, 0
        %v2278 = vsel %vm688, %v2275, 0
        %2280 = vmatprep.subr.mxu0 0.0
        %2281 = vmatpush1.xpose.msra.mxu0 0.0
        %2282 = vmatprep.subr.mxu0 0.0
        %2283 = vmatpush1.xpose.msra.mxu0 0.0
        %2284 = vmatprep.subr.mxu0 0.0
        %2285 = vmatpush1.xpose.msra.mxu0 0.0
        %2286 = vmatprep.subr.mxu0 0.0
        %2287 = vmatpush1.xpose.msra.mxu0 0.0
        %2288 = vmatprep.subr.mxu0 0.0
        %2289 = vmatpush1.xpose.msra.mxu0 0.0
        %2290 = vmatprep.subr.mxu0 0.0
        %2291 = vmatpush1.xpose.msra.mxu0 0.0
        %2292 = vmatprep.subr.mxu0 0.0
        %2293 = vmatpush1.xpose.msra.mxu0 0.0
        %2294 = vmatprep.subr.mxu0 0.0
        %2295 = vmatpush1.xpose.msra.mxu0 0.0
        %2296 = vmatprep.subr.mxu0 0.0
        %2297 = vmatpush1.xpose.msra.mxu0 0.0
        %2298 = vmatprep.subr.mxu0 0.0
        %2299 = vmatpush1.xpose.msra.mxu0 0.0
        %2300 = vmatprep.subr.mxu0 0.0
        %2301 = vmatpush1.xpose.msra.mxu0 0.0
        %2302 = vmatprep.subr.mxu0 0.0
        %2303 = vmatpush1.xpose.msra.mxu0 0.0
        %2304 = vmatprep.subr.mxu0 0.0
        %2305 = vmatpush1.xpose.msra.mxu0 0.0
        %2306 = vmatprep.subr.mxu0 0.0
        %2307 = vmatpush1.xpose.msra.mxu0 0.0
        %2308 = vmatprep.subr.mxu0 0.0
        %2309 = vmatpush1.xpose.msra.mxu0 0.0
        %2310 = vmatprep.subr.mxu0 0.0
        %2311 = vmatpush1.xpose.msra.mxu0 %v2278
        %2312 = vmatprep.subr.mxu0 0.0
        %2313 = vmatpush2.xpose.msra.mxu0 0.0
        %2314 = vmatprep.subr.mxu0 0.0
        %2315 = vmatpush2.xpose.msra.mxu0 0.0
        %2316 = vmatprep.subr.mxu0 0.0
        %2317 = vmatpush2.xpose.msra.mxu0 0.0
        %2318 = vmatprep.subr.mxu0 0.0
        %2319 = vmatpush2.xpose.msra.mxu0 0.0
        %2320 = vmatprep.subr.mxu0 0.0
        %2321 = vmatpush2.xpose.msra.mxu0 0.0
        %2322 = vmatprep.subr.mxu0 0.0
        %2323 = vmatpush2.xpose.msra.mxu0 0.0
        %2324 = vmatprep.subr.mxu0 0.0
        %2325 = vmatpush2.xpose.msra.mxu0 0.0
        %2326 = vmatprep.subr.mxu0 0.0
        %2327 = vmatpush2.xpose.msra.mxu0 0.0
        %2328 = vmatprep.subr.mxu0 0.0
        %2329 = vmatpush2.xpose.msra.mxu0 0.0
        %2330 = vmatprep.subr.mxu0 0.0
        %2331 = vmatpush2.xpose.msra.mxu0 0.0
        %2332 = vmatprep.subr.mxu0 0.0
        %2333 = vmatpush2.xpose.msra.mxu0 0.0
        %2334 = vmatprep.subr.mxu0 0.0
        %2335 = vmatpush2.xpose.msra.mxu0 0.0
        %2336 = vmatprep.subr.mxu0 0.0
        %2337 = vmatpush2.xpose.msra.mxu0 0.0
        %2338 = vmatprep.subr.mxu0 0.0
        %2339 = vmatpush2.xpose.msra.mxu0 0.0
        %2340 = vmatprep.subr.mxu0 0.0
        %2341 = vmatpush2.xpose.msra.mxu0 0.0
        %2342 = vmatprep.subr.mxu0 0.0
        %2343 = vmatpush2.xpose.msra.mxu0 0.0
        %2344 = vmatprep.mubr.f32.mxu0 0.0
        %2345 = vmatmul.mubr.f32.gmra.mxu0 %v2276
        %v2346 = vpop.f32.mrf.mxu0
        %v2347 = vadd.f32 0.0, %v2346
        %v2348 = vpop.f32.mrf.mxu0
        %2349 = vdwg.mxu0
        %v2350 = vsel %vm688, %v2347, -inf
        %2351 = vmax.xlane.f32.xlu0 %v2350
        %v2352 = vpop.xlane.xlu0 %2351
        %v2353 = vsub.f32 %v2347, %v2352
        %v2354 = vmul.f32 %v2353, 1.442695
        %v2355 = vpow.pop %v2354
        %v2356 = vsel %vm688, %v2355, 0.0
        %2357 = vadd.xlane.f32.xlu0 %v2356
        %v2358 = vpop.xlane.xlu0 %2357
        %v2359 = vrcp.pop %v2358
        %v2360 = vmul.f32 %v2355, %v2359
        %2361 = vrot.lane.b32.xlu0 %v1773, 40
        %v2362 = vpop.permute.xlu0 %2361
        %v2365 = vsel %vm688, %v2360, 0
        %2367 = vmatprep.subr.mxu0 0.0
        %2368 = vmatpush1.msra.mxu0 0.0
        %2369 = vmatprep.subr.mxu0 0.0
        %2370 = vmatpush1.msra.mxu0 0.0
        %2371 = vmatprep.subr.mxu0 0.0
        %2372 = vmatpush1.msra.mxu0 0.0
        %2373 = vmatprep.subr.mxu0 0.0
        %2374 = vmatpush1.msra.mxu0 0.0
        %2375 = vmatprep.subr.mxu0 0.0
        %2376 = vmatpush1.msra.mxu0 0.0
        %2377 = vmatprep.subr.mxu0 0.0
        %2378 = vmatpush1.msra.mxu0 0.0
        %2379 = vmatprep.subr.mxu0 0.0
        %2380 = vmatpush1.msra.mxu0 0.0
        %2381 = vmatprep.subr.mxu0 0.0
        %2382 = vmatpush1.msra.mxu0 0.0
        %2383 = vmatprep.subr.mxu0 0.0
        %2384 = vmatpush1.msra.mxu0 0.0
        %2385 = vmatprep.subr.mxu0 0.0
        %2386 = vmatpush1.msra.mxu0 0.0
        %2387 = vmatprep.subr.mxu0 0.0
        %2388 = vmatpush1.msra.mxu0 0.0
        %2389 = vmatprep.subr.mxu0 0.0
        %2390 = vmatpush1.msra.mxu0 0.0
        %2391 = vmatprep.subr.mxu0 0.0
        %2392 = vmatpush1.msra.mxu0 0.0
        %2393 = vmatprep.subr.mxu0 0.0
        %2394 = vmatpush1.msra.mxu0 0.0
        %2395 = vmatprep.subr.mxu0 0.0
        %2396 = vmatpush1.msra.mxu0 0.0
        %2397 = vmatprep.subr.mxu0 0.0
        %2398 = vmatpush1.msra.mxu0 %v2362
        %2399 = vmatprep.subr.mxu0 0.0
        %2400 = vmatpush2.msra.mxu0 0.0
        %2401 = vmatprep.subr.mxu0 0.0
        %2402 = vmatpush2.msra.mxu0 0.0
        %2403 = vmatprep.subr.mxu0 0.0
        %2404 = vmatpush2.msra.mxu0 0.0
        %2405 = vmatprep.subr.mxu0 0.0
        %2406 = vmatpush2.msra.mxu0 0.0
        %2407 = vmatprep.subr.mxu0 0.0
        %2408 = vmatpush2.msra.mxu0 0.0
        %2409 = vmatprep.subr.mxu0 0.0
        %2410 = vmatpush2.msra.mxu0 0.0
        %2411 = vmatprep.subr.mxu0 0.0
        %2412 = vmatpush2.msra.mxu0 0.0
        %2413 = vmatprep.subr.mxu0 0.0
        %2414 = vmatpush2.msra.mxu0 0.0
        %2415 = vmatprep.subr.mxu0 0.0
        %2416 = vmatpush2.msra.mxu0 0.0
        %2417 = vmatprep.subr.mxu0 0.0
        %2418 = vmatpush2.msra.mxu0 0.0
        %2419 = vmatprep.subr.mxu0 0.0
        %2420 = vmatpush2.msra.mxu0 0.0
        %2421 = vmatprep.subr.mxu0 0.0
        %2422 = vmatpush2.msra.mxu0 0.0
        %2423 = vmatprep.subr.mxu0 0.0
        %2424 = vmatpush2.msra.mxu0 0.0
        %2425 = vmatprep.subr.mxu0 0.0
        %2426 = vmatpush2.msra.mxu0 0.0
        %2427 = vmatprep.subr.mxu0 0.0
        %2428 = vmatpush2.msra.mxu0 0.0
        %2429 = vmatprep.subr.mxu0 0.0
        %2430 = vmatpush2.msra.mxu0 0.0
        %2431 = vmatprep.mubr.f32.mxu0 0.0
        %2432 = vmatmul.mubr.f32.gmra.mxu0 %v2365
        %v2433 = vpop.f32.mrf.mxu0
        %v2434 = vadd.f32 0.0, %v2433
        %v2435 = vpop.f32.mrf.mxu0
        %2436 = vdwg.mxu0
        %2438 = vrot.lane.b32.xlu0 %v2104, 8
        %v2439 = vpop.permute.xlu0 %2438
        %2442 = vrot.lane.b32.xlu0 %v2269, 16
        %v2443 = vpop.permute.xlu0 %2442
        %2446 = vrot.lane.b32.xlu0 %v2434, 24
        %v2447 = vpop.permute.xlu0 %2446
        %v2449 = vsel %vm688, %v1939, %v2439
        %v2450 = vsel %vm1359, %v2449, %v2443
        %v2451 = vsel %vm1361, %v2450, %v2447
        %s2452 = scalar_lea.vmem %s3, 32
        %v2453 = vld [vmem:[%s2452] sm:$0xff]
        %v2454 = vld [vmem:[%s2452 + $0x8] sm:$0xff]
        %v2455 = vld [vmem:[%s2452 + $0x10] sm:$0xff]
        %v2456 = vld [vmem:[%s2452 + $0x18] sm:$0xff]
        %s2457 = scalar_lea.vmem %s4, 1
        %v2458 = vld [vmem:[%s2457] sm:$0x1]
        %v2460 = vlaneseq
        %v2461 = vshrl.u32 %v2460, 7
        %v2462 = vsub.s32 0, %v2461
        %v2463 = vrot.slane %v2458, %v2462
        %v2466 = vsel %vm610, %v2451, 0
        %2468 = vmatprep.subr.mxu0 0.0
        %2469 = vmatpush1.msra.mxu0 0.0
        %2470 = vmatprep.subr.mxu0 0.0
        %2471 = vmatpush1.msra.mxu0 0.0
        %2472 = vmatprep.subr.mxu0 0.0
        %2473 = vmatpush1.msra.mxu0 0.0
        %2474 = vmatprep.subr.mxu0 0.0
        %2475 = vmatpush1.msra.mxu0 0.0
        %2476 = vmatprep.subr.mxu0 0.0
        %2477 = vmatpush1.msra.mxu0 0.0
        %2478 = vmatprep.subr.mxu0 0.0
        %2479 = vmatpush1.msra.mxu0 0.0
        %2480 = vmatprep.subr.mxu0 0.0
        %2481 = vmatpush1.msra.mxu0 0.0
        %2482 = vmatprep.subr.mxu0 0.0
        %2483 = vmatpush1.msra.mxu0 0.0
        %2484 = vmatprep.subr.mxu0 0.0
        %2485 = vmatpush1.msra.mxu0 0.0
        %2486 = vmatprep.subr.mxu0 0.0
        %2487 = vmatpush1.msra.mxu0 0.0
        %2488 = vmatprep.subr.mxu0 0.0
        %2489 = vmatpush1.msra.mxu0 0.0
        %2490 = vmatprep.subr.mxu0 0.0
        %2491 = vmatpush1.msra.mxu0 0.0
        %2492 = vmatprep.subr.mxu0 0.0
        %2493 = vmatpush1.msra.mxu0 %v2456
        %2494 = vmatprep.subr.mxu0 0.0
        %2495 = vmatpush1.msra.mxu0 %v2455
        %2496 = vmatprep.subr.mxu0 0.0
        %2497 = vmatpush1.msra.mxu0 %v2454
        %2498 = vmatprep.subr.mxu0 0.0
        %2499 = vmatpush1.msra.mxu0 %v2453
        %2500 = vmatprep.subr.mxu0 0.0
        %2501 = vmatpush2.msra.mxu0 0.0
        %2502 = vmatprep.subr.mxu0 0.0
        %2503 = vmatpush2.msra.mxu0 0.0
        %2504 = vmatprep.subr.mxu0 0.0
        %2505 = vmatpush2.msra.mxu0 0.0
        %2506 = vmatprep.subr.mxu0 0.0
        %2507 = vmatpush2.msra.mxu0 0.0
        %2508 = vmatprep.subr.mxu0 0.0
        %2509 = vmatpush2.msra.mxu0 0.0
        %2510 = vmatprep.subr.mxu0 0.0
        %2511 = vmatpush2.msra.mxu0 0.0
        %2512 = vmatprep.subr.mxu0 0.0
        %2513 = vmatpush2.msra.mxu0 0.0
        %2514 = vmatprep.subr.mxu0 0.0
        %2515 = vmatpush2.msra.mxu0 0.0
        %2516 = vmatprep.subr.mxu0 0.0
        %2517 = vmatpush2.msra.mxu0 0.0
        %2518 = vmatprep.subr.mxu0 0.0
        %2519 = vmatpush2.msra.mxu0 0.0
        %2520 = vmatprep.subr.mxu0 0.0
        %2521 = vmatpush2.msra.mxu0 0.0
        %2522 = vmatprep.subr.mxu0 0.0
        %2523 = vmatpush2.msra.mxu0 0.0
        %2524 = vmatprep.subr.mxu0 0.0
        %2525 = vmatpush2.msra.mxu0 0.0
        %2526 = vmatprep.subr.mxu0 0.0
        %2527 = vmatpush2.msra.mxu0 0.0
        %2528 = vmatprep.subr.mxu0 0.0
        %2529 = vmatpush2.msra.mxu0 0.0
        %2530 = vmatprep.subr.mxu0 0.0
        %2531 = vmatpush2.msra.mxu0 0.0
        %2532 = vmatprep.mubr.f32.mxu0 0.0
        %2533 = vmatmul.mubr.f32.gmra.mxu0 %v2466
        %v2534 = vpop.f32.mrf.mxu0
        %v2535 = vadd.f32 %v2463, %v2534
        %v2536 = vpop.f32.mrf.mxu0
        %2537 = vdwg.mxu0
        %v2538 = vadd.f32 %v1689, %v2535
        %s2539 = scalar_lea.vmem %s9, 1
        %v2540 = vld [vmem:[%s2539] sm:$0x1]
        %s2541 = scalar_lea.vmem %s10, 1
        %v2542 = vld [vmem:[%s2541] sm:$0x1]
        %v2543 = vsel %vm610, %v2538, 0.0
        %2544 = vadd.xlane.f32.xlu0 %v2543
        %v2545 = vpop.xlane.xlu0 %2544
        %v2546 = vmul.f32 %v2545, %v1453
        %v2547 = vsub.f32 %v2538, %v2546
        %v2548 = vmul.f32 %v2547, %v2547
        %v2549 = vsel %vm610, %v2548, 0.0
        %2550 = vadd.xlane.f32.xlu0 %v2549
        %v2551 = vpop.xlane.xlu0 %2550
        %v2552 = vmul.f32 %v2551, %v1453
        %v2553 = vadd.f32 %v2552, 1e-05
        %v2554 = vrsqrt.pop %v2553
        %v2555 = vmul.f32 %v2547, %v2554
        %v2557 = vlaneseq
        %v2558 = vshrl.u32 %v2557, 7
        %v2559 = vsub.s32 0, %v2558
        %v2560 = vrot.slane %v2540, %v2559
        %v2562 = vmul.f32 %v2555, %v2560
        %v2564 = vlaneseq
        %v2565 = vshrl.u32 %v2564, 7
        %v2566 = vsub.s32 0, %v2565
        %v2567 = vrot.slane %v2542, %v2566
        %v2569 = vadd.f32 %v2562, %v2567
        %s2570 = scalar_lea.vmem %s5, 32
        %v2571 = vld [vmem:[%s2570] sm:$0xff]
        %v2572 = vld [vmem:[%s2570 + $0x8] sm:$0xff]
        %v2573 = vld [vmem:[%s2570 + $0x10] sm:$0xff]
        %v2574 = vld [vmem:[%s2570 + $0x18] sm:$0xff]
        %s2575 = scalar_lea.vmem %s6, 1
        %v2576 = vld [vmem:[%s2575] sm:$0x1]
        %v2578 = vlaneseq
        %v2579 = vshrl.u32 %v2578, 7
        %v2580 = vsub.s32 0, %v2579
        %v2581 = vrot.slane %v2576, %v2580
        %v2584 = vsel %vm610, %v2569, 0
        %2586 = vmatprep.subr.mxu0 0.0
        %2587 = vmatpush1.msra.mxu0 0.0
        %2588 = vmatprep.subr.mxu0 0.0
        %2589 = vmatpush1.msra.mxu0 0.0
        %2590 = vmatprep.subr.mxu0 0.0
        %2591 = vmatpush1.msra.mxu0 0.0
        %2592 = vmatprep.subr.mxu0 0.0
        %2593 = vmatpush1.msra.mxu0 0.0
        %2594 = vmatprep.subr.mxu0 0.0
        %2595 = vmatpush1.msra.mxu0 0.0
        %2596 = vmatprep.subr.mxu0 0.0
        %2597 = vmatpush1.msra.mxu0 0.0
        %2598 = vmatprep.subr.mxu0 0.0
        %2599 = vmatpush1.msra.mxu0 0.0
        %2600 = vmatprep.subr.mxu0 0.0
        %2601 = vmatpush1.msra.mxu0 0.0
        %2602 = vmatprep.subr.mxu0 0.0
        %2603 = vmatpush1.msra.mxu0 0.0
        %2604 = vmatprep.subr.mxu0 0.0
        %2605 = vmatpush1.msra.mxu0 0.0
        %2606 = vmatprep.subr.mxu0 0.0
        %2607 = vmatpush1.msra.mxu0 0.0
        %2608 = vmatprep.subr.mxu0 0.0
        %2609 = vmatpush1.msra.mxu0 0.0
        %2610 = vmatprep.subr.mxu0 0.0
        %2611 = vmatpush1.msra.mxu0 %v2574
        %2612 = vmatprep.subr.mxu0 0.0
        %2613 = vmatpush1.msra.mxu0 %v2573
        %2614 = vmatprep.subr.mxu0 0.0
        %2615 = vmatpush1.msra.mxu0 %v2572
        %2616 = vmatprep.subr.mxu0 0.0
        %2617 = vmatpush1.msra.mxu0 %v2571
        %2618 = vmatprep.subr.mxu0 0.0
        %2619 = vmatpush2.msra.mxu0 0.0
        %2620 = vmatprep.subr.mxu0 0.0
        %2621 = vmatpush2.msra.mxu0 0.0
        %2622 = vmatprep.subr.mxu0 0.0
        %2623 = vmatpush2.msra.mxu0 0.0
        %2624 = vmatprep.subr.mxu0 0.0
        %2625 = vmatpush2.msra.mxu0 0.0
        %2626 = vmatprep.subr.mxu0 0.0
        %2627 = vmatpush2.msra.mxu0 0.0
        %2628 = vmatprep.subr.mxu0 0.0
        %2629 = vmatpush2.msra.mxu0 0.0
        %2630 = vmatprep.subr.mxu0 0.0
        %2631 = vmatpush2.msra.mxu0 0.0
        %2632 = vmatprep.subr.mxu0 0.0
        %2633 = vmatpush2.msra.mxu0 0.0
        %2634 = vmatprep.subr.mxu0 0.0
        %2635 = vmatpush2.msra.mxu0 0.0
        %2636 = vmatprep.subr.mxu0 0.0
        %2637 = vmatpush2.msra.mxu0 0.0
        %2638 = vmatprep.subr.mxu0 0.0
        %2639 = vmatpush2.msra.mxu0 0.0
        %2640 = vmatprep.subr.mxu0 0.0
        %2641 = vmatpush2.msra.mxu0 0.0
        %2642 = vmatprep.subr.mxu0 0.0
        %2643 = vmatpush2.msra.mxu0 0.0
        %2644 = vmatprep.subr.mxu0 0.0
        %2645 = vmatpush2.msra.mxu0 0.0
        %2646 = vmatprep.subr.mxu0 0.0
        %2647 = vmatpush2.msra.mxu0 0.0
        %2648 = vmatprep.subr.mxu0 0.0
        %2649 = vmatpush2.msra.mxu0 0.0
        %2650 = vmatprep.mubr.f32.mxu0 0.0
        %2651 = vmatmul.mubr.f32.gmra.mxu0 %v2584
        %v2652 = vpop.f32.mrf.mxu0
        %v2653 = vadd.f32 %v2581, %v2652
        %v2654 = vpop.f32.mrf.mxu0
        %2655 = vdwg.mxu0
        %v2656 = vmul.f32 %v2653, %v2653
        %v2657 = vmul.f32 %v2653, %v2656
        %v2658 = vmul.f32 %v2657, 0.044715
        %v2659 = vadd.f32 %v2653, %v2658
        %v2660 = vmul.f32 %v2659, 0.7978846
        %v2661 = vtanh.pop %v2660
        %v2662 = vadd.f32 %v2661, 1.0
        %v2663 = vmul.f32 %v2662, 0.5
        %v2664 = vmul.f32 %v2653, %v2663
        %s2665 = scalar_lea.vmem %s7, 64
        %v2666 = vld [vmem:[%s2665] sm:$0xff]
        %v2667 = vld [vmem:[%s2665 + $0x8] sm:$0xff]
        %v2668 = vld [vmem:[%s2665 + $0x10] sm:$0xff]
        %v2669 = vld [vmem:[%s2665 + $0x18] sm:$0xff]
        %v2670 = vld [vmem:[%s2665 + $0x20] sm:$0xff]
        %v2671 = vld [vmem:[%s2665 + $0x28] sm:$0xff]
        %v2672 = vld [vmem:[%s2665 + $0x30] sm:$0xff]
        %v2673 = vld [vmem:[%s2665 + $0x38] sm:$0xff]
        %s2674 = scalar_lea.vmem %s8, 1
        %v2675 = vld [vmem:[%s2674] sm:$0x1]
        %v2677 = vlaneseq
        %v2678 = vshrl.u32 %v2677, 7
        %v2679 = vsub.s32 0, %v2678
        %v2680 = vrot.slane %v2675, %v2679
        %v2683 = vsel %vm1586, %v2664, 0
        %2685 = vmatprep.subr.mxu0 0.0
        %2686 = vmatpush1.msra.mxu0 0.0
        %2687 = vmatprep.subr.mxu0 0.0
        %2688 = vmatpush1.msra.mxu0 0.0
        %2689 = vmatprep.subr.mxu0 0.0
        %2690 = vmatpush1.msra.mxu0 0.0
        %2691 = vmatprep.subr.mxu0 0.0
        %2692 = vmatpush1.msra.mxu0 0.0
        %2693 = vmatprep.subr.mxu0 0.0
        %2694 = vmatpush1.msra.mxu0 0.0
        %2695 = vmatprep.subr.mxu0 0.0
        %2696 = vmatpush1.msra.mxu0 0.0
        %2697 = vmatprep.subr.mxu0 0.0
        %2698 = vmatpush1.msra.mxu0 0.0
        %2699 = vmatprep.subr.mxu0 0.0
        %2700 = vmatpush1.msra.mxu0 0.0
        %2701 = vmatprep.subr.mxu0 0.0
        %2702 = vmatpush1.msra.mxu0 %v2673
        %2703 = vmatprep.subr.mxu0 0.0
        %2704 = vmatpush1.msra.mxu0 %v2672
        %2705 = vmatprep.subr.mxu0 0.0
        %2706 = vmatpush1.msra.mxu0 %v2671
        %2707 = vmatprep.subr.mxu0 0.0
        %2708 = vmatpush1.msra.mxu0 %v2670
        %2709 = vmatprep.subr.mxu0 0.0
        %2710 = vmatpush1.msra.mxu0 %v2669
        %2711 = vmatprep.subr.mxu0 0.0
        %2712 = vmatpush1.msra.mxu0 %v2668
        %2713 = vmatprep.subr.mxu0 0.0
        %2714 = vmatpush1.msra.mxu0 %v2667
        %2715 = vmatprep.subr.mxu0 0.0
        %2716 = vmatpush1.msra.mxu0 %v2666
        %2717 = vmatprep.subr.mxu0 0.0
        %2718 = vmatpush2.msra.mxu0 0.0
        %2719 = vmatprep.subr.mxu0 0.0
        %2720 = vmatpush2.msra.mxu0 0.0
        %2721 = vmatprep.subr.mxu0 0.0
        %2722 = vmatpush2.msra.mxu0 0.0
        %2723 = vmatprep.subr.mxu0 0.0
        %2724 = vmatpush2.msra.mxu0 0.0
        %2725 = vmatprep.subr.mxu0 0.0
        %2726 = vmatpush2.msra.mxu0 0.0
        %2727 = vmatprep.subr.mxu0 0.0
        %2728 = vmatpush2.msra.mxu0 0.0
        %2729 = vmatprep.subr.mxu0 0.0
        %2730 = vmatpush2.msra.mxu0 0.0
        %2731 = vmatprep.subr.mxu0 0.0
        %2732 = vmatpush2.msra.mxu0 0.0
        %2733 = vmatprep.subr.mxu0 0.0
        %2734 = vmatpush2.msra.mxu0 0.0
        %2735 = vmatprep.subr.mxu0 0.0
        %2736 = vmatpush2.msra.mxu0 0.0
        %2737 = vmatprep.subr.mxu0 0.0
        %2738 = vmatpush2.msra.mxu0 0.0
        %2739 = vmatprep.subr.mxu0 0.0
        %2740 = vmatpush2.msra.mxu0 0.0
        %2741 = vmatprep.subr.mxu0 0.0
        %2742 = vmatpush2.msra.mxu0 0.0
        %2743 = vmatprep.subr.mxu0 0.0
        %2744 = vmatpush2.msra.mxu0 0.0
        %2745 = vmatprep.subr.mxu0 0.0
        %2746 = vmatpush2.msra.mxu0 0.0
        %2747 = vmatprep.subr.mxu0 0.0
        %2748 = vmatpush2.msra.mxu0 0.0
        %2749 = vmatprep.mubr.f32.mxu0 0.0
        %2750 = vmatmul.mubr.f32.gmra.mxu0 %v2683
        %v2751 = vpop.f32.mrf.mxu0
        %v2752 = vadd.f32 %v2680, %v2751
        %v2753 = vpop.f32.mrf.mxu0
        %2754 = vdwg.mxu0
        %v2755 = vadd.f32 %v2569, %v2752
        %s2756 = scalar_lea.vmem %s11, 1
        %v2757 = vld [vmem:[%s2756] sm:$0x1]
        %s2758 = scalar_lea.vmem %s12, 1
        %v2759 = vld [vmem:[%s2758] sm:$0x1]
        %v2760 = vsel %vm610, %v2755, 0.0
        %2761 = vadd.xlane.f32.xlu0 %v2760
        %v2762 = vpop.xlane.xlu0 %2761
        %v2763 = vmul.f32 %v2762, %v1453
        %v2764 = vsub.f32 %v2755, %v2763
        %v2765 = vmul.f32 %v2764, %v2764
        %v2766 = vsel %vm610, %v2765, 0.0
        %2767 = vadd.xlane.f32.xlu0 %v2766
        %v2768 = vpop.xlane.xlu0 %2767
        %v2769 = vmul.f32 %v2768, %v1453
        %v2770 = vadd.f32 %v2769, 1e-12
        %v2771 = vrsqrt.pop %v2770
        %v2772 = vmul.f32 %v2764, %v2771
        %v2774 = vlaneseq
        %v2775 = vshrl.u32 %v2774, 7
        %v2776 = vsub.s32 0, %v2775
        %v2777 = vrot.slane %v2757, %v2776
        %v2779 = vmul.f32 %v2772, %v2777
        %v2781 = vlaneseq
        %v2782 = vshrl.u32 %v2781, 7
        %v2783 = vsub.s32 0, %v2782
        %v2784 = vrot.slane %v2759, %v2783
        %v2786 = vadd.f32 %v2779, %v2784
        %v2787 = vld [vmem:[%s13] sm:$0xff]
        %v2788 = vld [vmem:[%s13 + $0x8] sm:$0xff]
        %v2789 = vld [vmem:[%s13 + $0x10] sm:$0xff]
        %v2790 = vld [vmem:[%s13 + $0x18] sm:$0xff]
        %v2791 = vld [vmem:[%s14] sm:$0x1]
        %v2793 = vlaneseq
        %v2794 = vshrl.u32 %v2793, 7
        %v2795 = vsub.s32 0, %v2794
        %v2796 = vrot.slane %v2791, %v2795
        %v2799 = vsel %vm610, %v2786, 0
        %2801 = vmatprep.subr.mxu0 0.0
        %2802 = vmatpush1.msra.mxu0 0.0
        %2803 = vmatprep.subr.mxu0 0.0
        %2804 = vmatpush1.msra.mxu0 0.0
        %2805 = vmatprep.subr.mxu0 0.0
        %2806 = vmatpush1.msra.mxu0 0.0
        %2807 = vmatprep.subr.mxu0 0.0
        %2808 = vmatpush1.msra.mxu0 0.0
        %2809 = vmatprep.subr.mxu0 0.0
        %2810 = vmatpush1.msra.mxu0 0.0
        %2811 = vmatprep.subr.mxu0 0.0
        %2812 = vmatpush1.msra.mxu0 0.0
        %2813 = vmatprep.subr.mxu0 0.0
        %2814 = vmatpush1.msra.mxu0 0.0
        %2815 = vmatprep.subr.mxu0 0.0
        %2816 = vmatpush1.msra.mxu0 0.0
        %2817 = vmatprep.subr.mxu0 0.0
        %2818 = vmatpush1.msra.mxu0 0.0
        %2819 = vmatprep.subr.mxu0 0.0
        %2820 = vmatpush1.msra.mxu0 0.0
        %2821 = vmatprep.subr.mxu0 0.0
        %2822 = vmatpush1.msra.mxu0 0.0
        %2823 = vmatprep.subr.mxu0 0.0
        %2824 = vmatpush1.msra.mxu0 0.0
        %2825 = vmatprep.subr.mxu0 0.0
        %2826 = vmatpush1.msra.mxu0 %v2790
        %2827 = vmatprep.subr.mxu0 0.0
        %2828 = vmatpush1.msra.mxu0 %v2789
        %2829 = vmatprep.subr.mxu0 0.0
        %2830 = vmatpush1.msra.mxu0 %v2788
        %2831 = vmatprep.subr.mxu0 0.0
        %2832 = vmatpush1.msra.mxu0 %v2787
        %2833 = vmatprep.subr.mxu0 0.0
        %2834 = vmatpush2.msra.mxu0 0.0
        %2835 = vmatprep.subr.mxu0 0.0
        %2836 = vmatpush2.msra.mxu0 0.0
        %2837 = vmatprep.subr.mxu0 0.0
        %2838 = vmatpush2.msra.mxu0 0.0
        %2839 = vmatprep.subr.mxu0 0.0
        %2840 = vmatpush2.msra.mxu0 0.0
        %2841 = vmatprep.subr.mxu0 0.0
        %2842 = vmatpush2.msra.mxu0 0.0
        %2843 = vmatprep.subr.mxu0 0.0
        %2844 = vmatpush2.msra.mxu0 0.0
        %2845 = vmatprep.subr.mxu0 0.0
        %2846 = vmatpush2.msra.mxu0 0.0
        %2847 = vmatprep.subr.mxu0 0.0
        %2848 = vmatpush2.msra.mxu0 0.0
        %2849 = vmatprep.subr.mxu0 0.0
        %2850 = vmatpush2.msra.mxu0 0.0
        %2851 = vmatprep.subr.mxu0 0.0
        %2852 = vmatpush2.msra.mxu0 0.0
        %2853 = vmatprep.subr.mxu0 0.0
        %2854 = vmatpush2.msra.mxu0 0.0
        %2855 = vmatprep.subr.mxu0 0.0
        %2856 = vmatpush2.msra.mxu0 0.0
        %2857 = vmatprep.subr.mxu0 0.0
        %2858 = vmatpush2.msra.mxu0 0.0
        %2859 = vmatprep.subr.mxu0 0.0
        %2860 = vmatpush2.msra.mxu0 0.0
        %2861 = vmatprep.subr.mxu0 0.0
        %2862 = vmatpush2.msra.mxu0 0.0
        %2863 = vmatprep.subr.mxu0 0.0
        %2864 = vmatpush2.msra.mxu0 0.0
        %2865 = vmatprep.mubr.f32.mxu0 0.0
        %2866 = vmatmul.mubr.f32.gmra.mxu0 %v2799
        %v2867 = vpop.f32.mrf.mxu0
        %v2868 = vadd.f32 %v2796, %v2867
        %v2869 = vpop.f32.mrf.mxu0
        %2870 = vdwg.mxu0
        %v2871 = vmul.f32 %v2868, %v2868
        %v2872 = vmul.f32 %v2868, %v2871
        %v2873 = vmul.f32 %v2872, 0.044715
        %v2874 = vadd.f32 %v2868, %v2873
        %v2875 = vmul.f32 %v2874, 0.7978846
        %v2876 = vtanh.pop %v2875
        %v2877 = vadd.f32 %v2876, 1.0
        %v2878 = vmul.f32 %v2877, 0.5
        %v2879 = vmul.f32 %v2868, %v2878
        %v2880 = vld [vmem:[%s15] sm:$0x1]
        %v2881 = vld [vmem:[%s16] sm:$0x1]
        %v2882 = vsel %vm610, %v2879, 0.0
        %2883 = vadd.xlane.f32.xlu0 %v2882
        %v2884 = vpop.xlane.xlu0 %2883
        %v2885 = vmul.f32 %v2884, %v1453
        %v2886 = vsub.f32 %v2879, %v2885
        %v2887 = vmul.f32 %v2886, %v2886
        %v2888 = vsel %vm610, %v2887, 0.0
        %2889 = vadd.xlane.f32.xlu0 %v2888
        %v2890 = vpop.xlane.xlu0 %2889
        %v2891 = vmul.f32 %v2890, %v1453
        %v2892 = vadd.f32 %v2891, 1e-12
        %v2893 = vrsqrt.pop %v2892
        %v2894 = vmul.f32 %v2886, %v2893
        %v2896 = vlaneseq
        %v2897 = vshrl.u32 %v2896, 7
        %v2898 = vsub.s32 0, %v2897
        %v2899 = vrot.slane %v2880, %v2898
        %v2901 = vmul.f32 %v2894, %v2899
        %v2903 = vlaneseq
        %v2904 = vshrl.u32 %v2903, 7
        %v2905 = vsub.s32 0, %v2904
        %v2906 = vrot.slane %v2881, %v2905
        %v2908 = vadd.f32 %v2901, %v2906
        %v2909 = vld [vmem:[%s17] sm:$0xff]
        %v2910 = vld [vmem:[%s17 + $0x8] sm:$0xff]
        %v2911 = vld [vmem:[%s17 + $0x10] sm:$0xff]
        %v2912 = vld [vmem:[%s17 + $0x18] sm:$0xff]
        %v2913 = vld [vmem:[%s18] sm:$0x1]
        %v2915 = vlaneseq
        %v2916 = vshrl.u32 %v2915, 7
        %v2917 = vsub.s32 0, %v2916
        %v2918 = vrot.slane %v2913, %v2917
        %v2921 = vsel %vm610, %v2908, 0
        %2923 = vmatprep.subr.mxu0 0.0
        %2924 = vmatpush1.msra.mxu0 0.0
        %2925 = vmatprep.subr.mxu0 0.0
        %2926 = vmatpush1.msra.mxu0 0.0
        %2927 = vmatprep.subr.mxu0 0.0
        %2928 = vmatpush1.msra.mxu0 0.0
        %2929 = vmatprep.subr.mxu0 0.0
        %2930 = vmatpush1.msra.mxu0 0.0
        %2931 = vmatprep.subr.mxu0 0.0
        %2932 = vmatpush1.msra.mxu0 0.0
        %2933 = vmatprep.subr.mxu0 0.0
        %2934 = vmatpush1.msra.mxu0 0.0
        %2935 = vmatprep.subr.mxu0 0.0
        %2936 = vmatpush1.msra.mxu0 0.0
        %2937 = vmatprep.subr.mxu0 0.0
        %2938 = vmatpush1.msra.mxu0 0.0
        %2939 = vmatprep.subr.mxu0 0.0
        %2940 = vmatpush1.msra.mxu0 0.0
        %2941 = vmatprep.subr.mxu0 0.0
        %2942 = vmatpush1.msra.mxu0 0.0
        %2943 = vmatprep.subr.mxu0 0.0
        %2944 = vmatpush1.msra.mxu0 0.0
        %2945 = vmatprep.subr.mxu0 0.0
        %2946 = vmatpush1.msra.mxu0 0.0
        %2947 = vmatprep.subr.mxu0 0.0
        %2948 = vmatpush1.msra.mxu0 %v2912
        %2949 = vmatprep.subr.mxu0 0.0
        %2950 = vmatpush1.msra.mxu0 %v2911
        %2951 = vmatprep.subr.mxu0 0.0
        %2952 = vmatpush1.msra.mxu0 %v2910
        %2953 = vmatprep.subr.mxu0 0.0
        %2954 = vmatpush1.msra.mxu0 %v2909
        %2955 = vmatprep.subr.mxu0 0.0
        %2956 = vmatpush2.msra.mxu0 0.0
        %2957 = vmatprep.subr.mxu0 0.0
        %2958 = vmatpush2.msra.mxu0 0.0
        %2959 = vmatprep.subr.mxu0 0.0
        %2960 = vmatpush2.msra.mxu0 0.0
        %2961 = vmatprep.subr.mxu0 0.0
        %2962 = vmatpush2.msra.mxu0 0.0
        %2963 = vmatprep.subr.mxu0 0.0
        %2964 = vmatpush2.msra.mxu0 0.0
        %2965 = vmatprep.subr.mxu0 0.0
        %2966 = vmatpush2.msra.mxu0 0.0
        %2967 = vmatprep.subr.mxu0 0.0
        %2968 = vmatpush2.msra.mxu0 0.0
        %2969 = vmatprep.subr.mxu0 0.0
        %2970 = vmatpush2.msra.mxu0 0.0
        %2971 = vmatprep.subr.mxu0 0.0
        %2972 = vmatpush2.msra.mxu0 0.0
        %2973 = vmatprep.subr.mxu0 0.0
        %2974 = vmatpush2.msra.mxu0 0.0
        %2975 = vmatprep.subr.mxu0 0.0
        %2976 = vmatpush2.msra.mxu0 0.0
        %2977 = vmatprep.subr.mxu0 0.0
        %2978 = vmatpush2.msra.mxu0 0.0
        %2979 = vmatprep.subr.mxu0 0.0
        %2980 = vmatpush2.msra.mxu0 0.0
        %2981 = vmatprep.subr.mxu0 0.0
        %2982 = vmatpush2.msra.mxu0 0.0
        %2983 = vmatprep.subr.mxu0 0.0
        %2984 = vmatpush2.msra.mxu0 0.0
        %2985 = vmatprep.subr.mxu0 0.0
        %2986 = vmatpush2.msra.mxu0 0.0
        %2987 = vmatprep.mubr.f32.mxu0 0.0
        %2988 = vmatmul.mubr.f32.gmra.mxu0 %v2921
        %v2989 = vpop.f32.mrf.mxu0
        %v2990 = vadd.f32 %v2918, %v2989
        %v2991 = vpop.f32.mrf.mxu0
        %2992 = vdwg.mxu0
        %2993 = vst.msk [vmem:[%s593] sm:$0xff] %vm1586, %v2990
        %s2994 = sand.u32 %s445, 1
        %s2995 = scalar_lea.sflag [#allocation3], %s2994
        %s2996 = sand.u32 %s445, 1
        %s2997 = smul.addr %s2996, 8
        %s2998 = scalar_lea.vmem [#allocation2], %s2997
        // Predicated region
        $region97: #{longformer_mlm_forward.1} parent=95 // pred_check
          %p2999 = pneg %p455
        $region98: #{longformer_mlm_forward.1} parent=95 // pred_check_branch
          %3001 = sbr.rel (%p2999) target = $region100
        $region99: #{longformer_mlm_forward.1} parent=95 // pred_region
          %s3003 = ssub.s32 128, 128
          %3004 = vsyncadd %s2995, %s3003
          %s3005 = smul.addr %s33, 128
          %s3006 = scalar_lea.hbm %s19, %s3005
          %s3008 = sshll.u32 %s2998, 4
          %s3009 = int_to_ptr.vmem [resolvable:$true] %s3008
          %3011 = dma.vmem_to_hbm [thread:$0]  %s3009, 128, %s3006, %s2995
        $region100: #{longformer_mlm_forward.1} parent=95 // pred_fallthru
          _
      $region96: #{longformer_mlm_forward.1} parent=5 // pred_fallthru
        _
      %p3012 = scmp.le.s32.totalorder 2, %s28
      // Predicated region
      $region101: #{longformer_mlm_forward.1} parent=5 // pred_check
        %p3013 = pneg %p3012
      $region102: #{longformer_mlm_forward.1} parent=5 // pred_check_branch
        %3015 = sbr.rel (%p3013) target = $region104
      $region103: #{longformer_mlm_forward.1} parent=5 // pred_region
        %s3016 = ssub.s32 %s28, 2
        // Predicated region
        $region105: #{longformer_mlm_forward.1} parent=103 // pred_check
          %p3017 = pneg %p461
        $region106: #{longformer_mlm_forward.1} parent=103 // pred_check_branch
          %3019 = sbr.rel (%p3017) target = $region108
        $region107: #{longformer_mlm_forward.1} parent=103 // pred_region
          %s3020 = sand.u32 %s446, 1
          %s3021 = scalar_lea.sflag [#allocation3], %s3020
          %s3022 = sand.u32 %s446, 1
          %s3023 = smul.addr %s3022, 8
          %s3024 = scalar_lea.vmem [#allocation2], %s3023
          %3025 = dma.done %s3021, 128
        $region108: #{longformer_mlm_forward.1} parent=103 // pred_fallthru
          _
      $region104: #{longformer_mlm_forward.1} parent=5 // pred_fallthru
        _
    $region6: #{longformer_mlm_forward.1} parent=1 // loop_footer
      %s32 = sadd.s32 1, %s28
    $region7: #{longformer_mlm_forward.1} parent=1 // loop_footer_branch
      %27 = sbr.rel target = $region3
    $region8: #{longformer_mlm_forward.1} parent=1 // loop_exit
      _
    %3026 = vsyncpa [#allocation3], 1
    %s3027 = scalar_lea.sflag [#allocation3], 1
    %3028 = vsyncpa %s3027, 1

</llo_original>
